<compile_context>
chip_gen: v7x
topology: tpu7x:2x2x1
jax: 0.10.0
libtpu: 0.0.40
codegen_flags: <defaults>
</compile_context>

<pallas_src>
import jax
import jax.numpy as jnp
from jax.experimental import pallas as pl
from jax.experimental.pallas import tpu as pltpu

K_IN = 28 * 28        # 784
K_PAD = 896           # 7 * 128 (zero-padded contraction dim)
HID = 512
OUT = 10
OUT_PAD = 128         # lane-dense padded output width


def _round_up(x, m):
    return ((x + m - 1) // m) * m


def mlp_kernel(x_ref, w1_ref, b1_ref, w2_ref, b2_ref, w3_ref, b3_ref, o_ref):
    # x_ref: (TILE_M, K_PAD) bf16; weights bf16; biases f32; o_ref: (TILE_M, OUT_PAD) f32.
    x = x_ref[...]
    # Layer 1: MXU matmul with f32 accumulation; bias + ReLU in f32, cast to bf16 only
    # for the next matmul operand.
    h1 = jnp.dot(x, w1_ref[...], preferred_element_type=jnp.float32) + b1_ref[...]
    h1 = jnp.maximum(h1, 0.0).astype(jnp.bfloat16)
    h2 = jnp.dot(h1, w2_ref[...], preferred_element_type=jnp.float32) + b2_ref[...]
    h2 = jnp.maximum(h2, 0.0).astype(jnp.bfloat16)
    o_ref[...] = jnp.dot(h2, w3_ref[...], preferred_element_type=jnp.float32) + b3_ref[...]


def simple_nn_forward(x, params):
    """x: (B, 1, 28, 28) float32  ->  logits (B, 10) float32.

    params: (w1 (784,512), b1 (1,512), w2 (512,512), b2 (1,512), w3 (512,10), b3 (1,10)),
    all float32, weights stored (in_features, out_features) so the kernel computes
    x @ W + b (matches PyTorch x @ W.T with W=(out,in)).
    """
    w1, b1, w2, b2, w3, b3 = params
    B = x.shape[0]
    x2d = x.reshape(B, K_IN)  # nn.Flatten()

    # Batch tiling: one 128-row tile per grid step (8-aligned single tile for tiny B).
    TILE_M = 128 if B >= 128 else _round_up(max(B, 1), 8)
    B_pad = _round_up(B, TILE_M)
    grid = (B_pad // TILE_M,)

    # Pad + cast inputs/weights (bf16 operands, f32 biases).
    xp = jnp.zeros((B_pad, K_PAD), jnp.bfloat16).at[:B, :K_IN].set(
        x2d.astype(jnp.bfloat16))
    w1p = jnp.zeros((K_PAD, HID), jnp.bfloat16).at[:K_IN, :].set(
        w1.astype(jnp.bfloat16))
    w2b = w2.astype(jnp.bfloat16)
    w3p = jnp.zeros((HID, OUT_PAD), jnp.bfloat16).at[:, :OUT].set(
        w3.astype(jnp.bfloat16))
    b1f = b1.astype(jnp.float32)
    b2f = b2.astype(jnp.float32)
    b3p = jnp.zeros((1, OUT_PAD), jnp.float32).at[:, :OUT].set(
        b3.astype(jnp.float32))

    # x/out move per grid step; weights & biases use constant index_maps so they stay
    # resident in VMEM across the (parallel) batch axis.
    const2d = lambda shape: pl.BlockSpec(shape, lambda i: (0, 0))

    out_pad = pl.pallas_call(
        mlp_kernel,
        out_shape=jax.ShapeDtypeStruct((B_pad, OUT_PAD), jnp.float32),
        grid=grid,
        in_specs=[
            pl.BlockSpec((TILE_M, K_PAD), lambda i: (i, 0)),   # x tile
            const2d((K_PAD, HID)),                             # w1
            const2d((1, HID)),                                 # b1
            const2d((HID, HID)),                               # w2
            const2d((1, HID)),                                 # b2
            const2d((HID, OUT_PAD)),                           # w3 (lane-dense padded)
            const2d((1, OUT_PAD)),                             # b3 (padded)
        ],
        out_specs=pl.BlockSpec((TILE_M, OUT_PAD), lambda i: (i, 0)),
        compiler_params=pltpu.CompilerParams(
            dimension_semantics=("parallel",)),
    )(xp, w1p, b1f, w2b, b2f, w3p, b3p)

    return out_pad[:B, :OUT]


def init_params(key):
    """Deterministic init mimicking PyTorch's default Linear init (uniform +/- 1/sqrt(fan_in))."""
    dims = [(K_IN, HID), (HID, HID), (HID, OUT)]
    params = []
    keys = jax.random.split(key, 2 * len(dims))
    for i, (fan_in, fan_out) in enumerate(dims):
        bound = 1.0 / jnp.sqrt(fan_in)
        w = jax.random.uniform(keys[2 * i], (fan_in, fan_out), jnp.float32, -bound, bound)
        b = jax.random.uniform(keys[2 * i + 1], (1, fan_out), jnp.float32, -bound, bound)
        params += [w, b]
    return tuple(params)


if __name__ == "__main__":
    key = jax.random.PRNGKey(0)
    k_x, k_p = jax.random.split(key)

    B = 200  # ragged batch: exercises batch-grid (2 tiles of 128) + padding + slicing
    x = jax.random.normal(k_x, (B, 1, 28, 28), dtype=jnp.float32)
    params = init_params(k_p)

    out = simple_nn_forward(x, params)
    jax.block_until_ready(out)
    assert out.shape == (B, OUT)

    # Plain-JAX reference following the same bf16-operand / f32-accumulate recipe.
    w1, b1, w2, b2, w3, b3 = params
    xf = x.reshape(B, -1).astype(jnp.bfloat16)
    w1b, w2b, w3b = (w.astype(jnp.bfloat16) for w in (w1, w2, w3))
    r1 = jnp.maximum(jnp.dot(xf, w1b, preferred_element_type=jnp.float32) + b1, 0.0)
    r2 = jnp.maximum(
        jnp.dot(r1.astype(jnp.bfloat16), w2b, preferred_element_type=jnp.float32) + b2, 0.0)
    ref = jnp.dot(r2.astype(jnp.bfloat16), w3b, preferred_element_type=jnp.float32) + b3

    assert jnp.allclose(out, ref, atol=2e-2, rtol=2e-2), (
        float(jnp.max(jnp.abs(out - ref))))

    print("KERNEL_OK")
</pallas_src>

<mosaic_0001>
module attributes {stable_mosaic.version = 11 : i64} {
  func.func @mlp_kernel(%arg0: i32, %arg1: memref<128x896xbf16, #tpu.memory_space<vmem>>, %arg2: memref<896x512xbf16, #tpu.memory_space<vmem>>, %arg3: memref<1x512xf32, #tpu.memory_space<vmem>>, %arg4: memref<512x512xbf16, #tpu.memory_space<vmem>>, %arg5: memref<1x512xf32, #tpu.memory_space<vmem>>, %arg6: memref<512x128xbf16, #tpu.memory_space<vmem>>, %arg7: memref<1x128xf32, #tpu.memory_space<vmem>>, %arg8: memref<128x128xf32, #tpu.memory_space<vmem>>) attributes {dimension_semantics = [#tpu.dimension_semantics<parallel>], iteration_bounds = array<i64: 2>, scalar_prefetch = 0 : i64, scratch_operands = 0 : i64, tpu.core_type = #tpu.core_type<tc>, window_params = [{transform_indices = @transform_0, window_bounds = array<i64: 128, 896>}, {pipeline_mode = #tpu.pipeline_mode<synchronous>, transform_indices = @transform_1, window_bounds = array<i64: 896, 512>}, {pipeline_mode = #tpu.pipeline_mode<synchronous>, transform_indices = @transform_2, window_bounds = array<i64: 1, 512>}, {pipeline_mode = #tpu.pipeline_mode<synchronous>, transform_indices = @transform_3, window_bounds = array<i64: 512, 512>}, {pipeline_mode = #tpu.pipeline_mode<synchronous>, transform_indices = @transform_4, window_bounds = array<i64: 1, 512>}, {pipeline_mode = #tpu.pipeline_mode<synchronous>, transform_indices = @transform_5, window_bounds = array<i64: 512, 128>}, {pipeline_mode = #tpu.pipeline_mode<synchronous>, transform_indices = @transform_6, window_bounds = array<i64: 1, 128>}, {transform_indices = @transform_7, window_bounds = array<i64: 128, 128>}]} {
    %c0 = arith.constant 0 : index
    %c0_0 = arith.constant 0 : index
    %0 = vector.load %arg1[%c0, %c0_0] : memref<128x896xbf16, #tpu.memory_space<vmem>>, vector<128x896xbf16>
    %c0_1 = arith.constant 0 : index
    %c0_2 = arith.constant 0 : index
    %1 = vector.load %arg2[%c0_1, %c0_2] : memref<896x512xbf16, #tpu.memory_space<vmem>>, vector<896x512xbf16>
    %cst = arith.constant dense<0.000000e+00> : vector<128x512xf32>
    %2 = tpu.matmul %0, %1, %cst {dimension_numbers = #tpu.dot_dimension_numbers<[1], [0], [0], [1], [0, 0, 1, 1], [], []>} : vector<128x896xbf16>, vector<896x512xbf16>, vector<128x512xf32> -> vector<128x512xf32>
    %c0_3 = arith.constant 0 : index
    %c0_4 = arith.constant 0 : index
    %3 = vector.load %arg3[%c0_3, %c0_4] : memref<1x512xf32, #tpu.memory_space<vmem>>, vector<1x512xf32>
    %4 = vector.broadcast %3 : vector<1x512xf32> to vector<128x512xf32>
    %5 = arith.addf %2, %4 : vector<128x512xf32>
    %cst_5 = arith.constant 0.000000e+00 : f32
    %6 = vector.broadcast %cst_5 : f32 to vector<128x512xf32>
    %7 = arith.maximumf %5, %6 : vector<128x512xf32>
    %8 = arith.truncf %7 : vector<128x512xf32> to vector<128x512xbf16>
    %c0_6 = arith.constant 0 : index
    %c0_7 = arith.constant 0 : index
    %9 = vector.load %arg4[%c0_6, %c0_7] : memref<512x512xbf16, #tpu.memory_space<vmem>>, vector<512x512xbf16>
    %cst_8 = arith.constant dense<0.000000e+00> : vector<128x512xf32>
    %10 = tpu.matmul %8, %9, %cst_8 {dimension_numbers = #tpu.dot_dimension_numbers<[1], [0], [0], [1], [0, 0, 1, 1], [], []>} : vector<128x512xbf16>, vector<512x512xbf16>, vector<128x512xf32> -> vector<128x512xf32>
    %c0_9 = arith.constant 0 : index
    %c0_10 = arith.constant 0 : index
    %11 = vector.load %arg5[%c0_9, %c0_10] : memref<1x512xf32, #tpu.memory_space<vmem>>, vector<1x512xf32>
    %12 = vector.broadcast %11 : vector<1x512xf32> to vector<128x512xf32>
    %13 = arith.addf %10, %12 : vector<128x512xf32>
    %cst_11 = arith.constant 0.000000e+00 : f32
    %14 = vector.broadcast %cst_11 : f32 to vector<128x512xf32>
    %15 = arith.maximumf %13, %14 : vector<128x512xf32>
    %16 = arith.truncf %15 : vector<128x512xf32> to vector<128x512xbf16>
    %c0_12 = arith.constant 0 : index
    %c0_13 = arith.constant 0 : index
    %17 = vector.load %arg6[%c0_12, %c0_13] : memref<512x128xbf16, #tpu.memory_space<vmem>>, vector<512x128xbf16>
    %cst_14 = arith.constant dense<0.000000e+00> : vector<128x128xf32>
    %18 = tpu.matmul %16, %17, %cst_14 {dimension_numbers = #tpu.dot_dimension_numbers<[1], [0], [0], [1], [0, 0, 1, 1], [], []>} : vector<128x512xbf16>, vector<512x128xbf16>, vector<128x128xf32> -> vector<128x128xf32>
    %c0_15 = arith.constant 0 : index
    %c0_16 = arith.constant 0 : index
    %19 = vector.load %arg7[%c0_15, %c0_16] : memref<1x128xf32, #tpu.memory_space<vmem>>, vector<1x128xf32>
    %20 = vector.broadcast %19 : vector<1x128xf32> to vector<128x128xf32>
    %21 = arith.addf %18, %20 : vector<128x128xf32>
    %c0_17 = arith.constant 0 : index
    %c0_18 = arith.constant 0 : index
    %22 = vector.load %arg8[%c0_17, %c0_18] : memref<128x128xf32, #tpu.memory_space<vmem>>, vector<128x128xf32>
    tpu.vector_store %arg8[%c0_17, %c0_18], %21 {strides = array<i32>} : memref<128x128xf32, #tpu.memory_space<vmem>>, vector<128x128xf32>,
    return
  }
  func.func @transform_0(%arg0: i32) -> (i32, i32) {
    %c0_i32 = arith.constant 0 : i32
    %c0_i32_0 = arith.constant 0 : i32
    return %arg0, %c0_i32 : i32, i32
  }
  func.func @transform_1(%arg0: i32) -> (i32, i32) {
    %c0_i32 = arith.constant 0 : i32
    %c0_i32_0 = arith.constant 0 : i32
    %c0_i32_1 = arith.constant 0 : i32
    return %c0_i32, %c0_i32_0 : i32, i32
  }
  func.func @transform_2(%arg0: i32) -> (i32, i32) {
    %c0_i32 = arith.constant 0 : i32
    %c0_i32_0 = arith.constant 0 : i32
    %c0_i32_1 = arith.constant 0 : i32
    return %c0_i32, %c0_i32_0 : i32, i32
  }
  func.func @transform_3(%arg0: i32) -> (i32, i32) {
    %c0_i32 = arith.constant 0 : i32
    %c0_i32_0 = arith.constant 0 : i32
    %c0_i32_1 = arith.constant 0 : i32
    return %c0_i32, %c0_i32_0 : i32, i32
  }
  func.func @transform_4(%arg0: i32) -> (i32, i32) {
    %c0_i32 = arith.constant 0 : i32
    %c0_i32_0 = arith.constant 0 : i32
    %c0_i32_1 = arith.constant 0 : i32
    return %c0_i32, %c0_i32_0 : i32, i32
  }
  func.func @transform_5(%arg0: i32) -> (i32, i32) {
    %c0_i32 = arith.constant 0 : i32
    %c0_i32_0 = arith.constant 0 : i32
    %c0_i32_1 = arith.constant 0 : i32
    return %c0_i32, %c0_i32_0 : i32, i32
  }
  func.func @transform_6(%arg0: i32) -> (i32, i32) {
    %c0_i32 = arith.constant 0 : i32
    %c0_i32_0 = arith.constant 0 : i32
    %c0_i32_1 = arith.constant 0 : i32
    return %c0_i32, %c0_i32_0 : i32, i32
  }
  func.func @transform_7(%arg0: i32) -> (i32, i32) {
    %c0_i32 = arith.constant 0 : i32
    %c0_i32_0 = arith.constant 0 : i32
    return %arg0, %c0_i32 : i32, i32
  }
}

</mosaic_0001>

<llo_original>
// kernel: tpu_custom_call.1
$region0: #{tpu_custom_call.1}
  #allocation0 [shape = 'u32[]', space=smem, size = 0x4, offset = 0x4, fixed_abs, tag = 'smem constant byte address 0x4 - core index']
  #allocation1 [shape = 'u32[144,128]{1,0:T(1,128)}', space=vmem, size = 0x12000, scoped, tag = 'internal scratch']
  %s0 = inlined_call_operand.hbm [shape: bf16[256,896], index: 0, kind: input, shape index: {}]
  %s1 = inlined_call_operand.hbm [shape: bf16[896,512], index: 1, kind: input, shape index: {}]
  %s2 = inlined_call_operand.vmem [shape: f32[1,512], index: 2, kind: input, shape index: {}]
  %s3 = inlined_call_operand.hbm [shape: bf16[512,512], index: 3, kind: input, shape index: {}]
  %s4 = inlined_call_operand.vmem [shape: f32[1,512], index: 4, kind: input, shape index: {}]
  %s5 = inlined_call_operand.hbm [shape: bf16[512,128], index: 5, kind: input, shape index: {}]
  %s6 = inlined_call_operand.vmem [shape: f32[1,128], index: 6, kind: input, shape index: {}]
  %s7 = inlined_call_operand.hbm [shape: f32[256,128], index: 7, kind: output, shape index: {}]
  %s8 = sld [smem:[#allocation0]]
  $region77: #{tpu_custom_call.1} parent=0
    _
  %s10 = ssub.s32 1, %s8
  %s11 = scalar_select 0, %s10, %s8
  $region1: #{tpu_custom_call.1} parent=0
    #allocation2 [shape = 'u8[458752]{0}', space=vmem, size = 0x70000, scoped, tag = 'input window, operand 0']
    #allocation3 [shape = 's32[2]{0}', space=sflag, size = 0x8, scoped, tag = 'scoped memory for tpu_custom_call.1']
    #allocation4 [shape = 's32[2]{0}', space=sflag, size = 0x8, scoped, tag = 'scoped memory for tpu_custom_call.1']
    #allocation5 [shape = 'u8[917504]{0}', space=vmem, size = 0xe0000, scoped, tag = 'input window, operand 1, single buffered']
    #allocation6 [shape = 's32[1]{0}', space=sflag, size = 0x4, scoped, tag = 'scoped memory for tpu_custom_call.1']
    #allocation7 [shape = 'u8[524288]{0}', space=vmem, size = 0x80000, scoped, tag = 'input window, operand 3, single buffered']
    #allocation8 [shape = 'u8[131072]{0}', space=vmem, size = 0x20000, scoped, tag = 'input window, operand 5, single buffered']
    #allocation9 [shape = 's32[1]{0}', space=sflag, size = 0x4, scoped, tag = 'scoped memory for tpu_custom_call.1']
    #allocation10 [shape = 'u8[131072]{0}', space=vmem, size = 0x20000, scoped, tag = 'output window, operand 0']
    %12 = vsyncpa [#allocation3], 0
    %s13 = scalar_lea.sflag [#allocation3], 1
    %14 = vsyncpa %s13, 0
    %15 = vsyncpa [#allocation6], 0
    %16 = vsyncpa [#allocation9], 0
    %17 = vsyncpa [#allocation4], 0
    %s18 = scalar_lea.sflag [#allocation4], 1
    %19 = vsyncpa %s18, 0
    loop: start=0, step=1, limit=4
    $region2: #{tpu_custom_call.1} parent=1 // loop_pre_header
      _
    $region3: #{tpu_custom_call.1} parent=1 // loop_header
      %s21 = sphi 0, %s25
      %p22 = scmp.ge.s32.totalorder %s21, 4
      %s31 = sphi 0, %s33
      %s34 = sphi 0, %s31
      %s35 = sphi 0, %s34
      %s51 = sphi 0, %s35
      %s55 = sphi 0, %s55
      %s57 = sphi 0, %s55
      %s58 = sphi 0, %s57
      %s72 = sphi 0, %s58
      %s76 = sphi 0, %s76
      %s78 = sphi 0, %s76
      %s79 = sphi 0, %s78
      %s93 = sphi 0, %s79
      %s97 = sphi 0, %s97
      %s99 = sphi 0, %s97
      %s100 = sphi 0, %s99
      %s114 = sphi 0, %s100
      %s118 = sphi 0, %s118
      %s120 = sphi 0, %s118
      %s121 = sphi 0, %s120
      %s135 = sphi 0, %s121
      %s139 = sphi 0, %s139
      %s141 = sphi 0, %s139
      %s142 = sphi 0, %s141
      %s156 = sphi 0, %s142
      %s160 = sphi 0, %s160
      %s162 = sphi 0, %s160
      %s163 = sphi 0, %s162
      %s177 = sphi 0, %s163
      %s183 = sphi 0, %s185
      %s186 = sphi 0, %s183
      %s187 = sphi 0, %s186
      %s203 = sphi 0, %s187
    $region4: #{tpu_custom_call.1} parent=1 // loop_header_branch
      %24 = sbr.rel (%p22) target = $region8
    $region5: #{tpu_custom_call.1} parent=1 // loop_body
      %s26 = ssub.s32 %s21, 1
      %s27 = ssub.s32 %s21, 2
      %s28 = sadd.s32 %s21, 1
      %s29 = ssub.s32 %s21, %s28
      %p30 = scmp.eq.s32.totalorder %s29, 0
      %s32 = sadd.s32 %s31, 1
      %s33 = scalar_select %p30, %s31, %s32
      %p36 = pneg %p30
      %p37 = scmp.eq.s32.totalorder %s21, 1
      %p38 = por %p36, %p37
      %p39 = scmp.ne.s32.totalorder %s31, %s34
      %p40 = scmp.eq.s32.totalorder %s21, 0
      %p41 = por %p39, %p40
      %p42 = scmp.ne.s32.totalorder %s31, %s34
      %p43 = scmp.eq.s32.totalorder %s26, 1
      %p44 = por %p42, %p43
      %p45 = scmp.ne.s32.totalorder %s34, %s35
      %p46 = scmp.eq.s32.totalorder %s26, 0
      %p47 = por %p45, %p46
      %p48 = scmp.ne.s32.totalorder %s34, %s35
      %p49 = scmp.eq.s32.totalorder %s27, 1
      %p50 = por %p48, %p49
      %p52 = scmp.ne.s32.totalorder %s35, %s51
      %p53 = scmp.eq.s32.totalorder %s27, 0
      %p54 = por %p52, %p53
      %s56 = sadd.s32 %s55, 1
      %p59 = scmp.eq.s32.totalorder %s21, 1
      %p60 = scmp.ne.s32.totalorder %s55, %s57
      %p61 = scmp.eq.s32.totalorder %s21, 0
      %p62 = por %p60, %p61
      %p63 = scmp.ne.s32.totalorder %s55, %s57
      %p64 = scmp.eq.s32.totalorder %s26, 1
      %p65 = por %p63, %p64
      %p66 = scmp.ne.s32.totalorder %s57, %s58
      %p67 = scmp.eq.s32.totalorder %s26, 0
      %p68 = por %p66, %p67
      %p69 = scmp.ne.s32.totalorder %s57, %s58
      %p70 = scmp.eq.s32.totalorder %s27, 1
      %p71 = por %p69, %p70
      %p73 = scmp.ne.s32.totalorder %s58, %s72
      %p74 = scmp.eq.s32.totalorder %s27, 0
      %p75 = por %p73, %p74
      %s77 = sadd.s32 %s76, 1
      %p80 = scmp.eq.s32.totalorder %s21, 1
      %p81 = scmp.ne.s32.totalorder %s76, %s78
      %p82 = scmp.eq.s32.totalorder %s21, 0
      %p83 = por %p81, %p82
      %p84 = scmp.ne.s32.totalorder %s76, %s78
      %p85 = scmp.eq.s32.totalorder %s26, 1
      %p86 = por %p84, %p85
      %p87 = scmp.ne.s32.totalorder %s78, %s79
      %p88 = scmp.eq.s32.totalorder %s26, 0
      %p89 = por %p87, %p88
      %p90 = scmp.ne.s32.totalorder %s78, %s79
      %p91 = scmp.eq.s32.totalorder %s27, 1
      %p92 = por %p90, %p91
      %p94 = scmp.ne.s32.totalorder %s79, %s93
      %p95 = scmp.eq.s32.totalorder %s27, 0
      %p96 = por %p94, %p95
      %s98 = sadd.s32 %s97, 1
      %p101 = scmp.eq.s32.totalorder %s21, 1
      %p102 = scmp.ne.s32.totalorder %s97, %s99
      %p103 = scmp.eq.s32.totalorder %s21, 0
      %p104 = por %p102, %p103
      %p105 = scmp.ne.s32.totalorder %s97, %s99
      %p106 = scmp.eq.s32.totalorder %s26, 1
      %p107 = por %p105, %p106
      %p108 = scmp.ne.s32.totalorder %s99, %s100
      %p109 = scmp.eq.s32.totalorder %s26, 0
      %p110 = por %p108, %p109
      %p111 = scmp.ne.s32.totalorder %s99, %s100
      %p112 = scmp.eq.s32.totalorder %s27, 1
      %p113 = por %p111, %p112
      %p115 = scmp.ne.s32.totalorder %s100, %s114
      %p116 = scmp.eq.s32.totalorder %s27, 0
      %p117 = por %p115, %p116
      %s119 = sadd.s32 %s118, 1
      %p122 = scmp.eq.s32.totalorder %s21, 1
      %p123 = scmp.ne.s32.totalorder %s118, %s120
      %p124 = scmp.eq.s32.totalorder %s21, 0
      %p125 = por %p123, %p124
      %p126 = scmp.ne.s32.totalorder %s118, %s120
      %p127 = scmp.eq.s32.totalorder %s26, 1
      %p128 = por %p126, %p127
      %p129 = scmp.ne.s32.totalorder %s120, %s121
      %p130 = scmp.eq.s32.totalorder %s26, 0
      %p131 = por %p129, %p130
      %p132 = scmp.ne.s32.totalorder %s120, %s121
      %p133 = scmp.eq.s32.totalorder %s27, 1
      %p134 = por %p132, %p133
      %p136 = scmp.ne.s32.totalorder %s121, %s135
      %p137 = scmp.eq.s32.totalorder %s27, 0
      %p138 = por %p136, %p137
      %s140 = sadd.s32 %s139, 1
      %p143 = scmp.eq.s32.totalorder %s21, 1
      %p144 = scmp.ne.s32.totalorder %s139, %s141
      %p145 = scmp.eq.s32.totalorder %s21, 0
      %p146 = por %p144, %p145
      %p147 = scmp.ne.s32.totalorder %s139, %s141
      %p148 = scmp.eq.s32.totalorder %s26, 1
      %p149 = por %p147, %p148
      %p150 = scmp.ne.s32.totalorder %s141, %s142
      %p151 = scmp.eq.s32.totalorder %s26, 0
      %p152 = por %p150, %p151
      %p153 = scmp.ne.s32.totalorder %s141, %s142
      %p154 = scmp.eq.s32.totalorder %s27, 1
      %p155 = por %p153, %p154
      %p157 = scmp.ne.s32.totalorder %s142, %s156
      %p158 = scmp.eq.s32.totalorder %s27, 0
      %p159 = por %p157, %p158
      %s161 = sadd.s32 %s160, 1
      %p164 = scmp.eq.s32.totalorder %s21, 1
      %p165 = scmp.ne.s32.totalorder %s160, %s162
      %p166 = scmp.eq.s32.totalorder %s21, 0
      %p167 = por %p165, %p166
      %p168 = scmp.ne.s32.totalorder %s160, %s162
      %p169 = scmp.eq.s32.totalorder %s26, 1
      %p170 = por %p168, %p169
      %p171 = scmp.ne.s32.totalorder %s162, %s163
      %p172 = scmp.eq.s32.totalorder %s26, 0
      %p173 = por %p171, %p172
      %p174 = scmp.ne.s32.totalorder %s162, %s163
      %p175 = scmp.eq.s32.totalorder %s27, 1
      %p176 = por %p174, %p175
      %p178 = scmp.ne.s32.totalorder %s163, %s177
      %p179 = scmp.eq.s32.totalorder %s27, 0
      %p180 = por %p178, %p179
      %s181 = ssub.s32 %s21, %s28
      %p182 = scmp.eq.s32.totalorder %s181, 0
      %s184 = sadd.s32 %s183, 1
      %s185 = scalar_select %p182, %s183, %s184
      %p188 = pneg %p182
      %p189 = scmp.eq.s32.totalorder %s21, 1
      %p190 = por %p188, %p189
      %p191 = scmp.ne.s32.totalorder %s183, %s186
      %p192 = scmp.eq.s32.totalorder %s21, 0
      %p193 = por %p191, %p192
      %p194 = scmp.ne.s32.totalorder %s183, %s186
      %p195 = scmp.eq.s32.totalorder %s26, 1
      %p196 = por %p194, %p195
      %p197 = scmp.ne.s32.totalorder %s186, %s187
      %p198 = scmp.eq.s32.totalorder %s26, 0
      %p199 = por %p197, %p198
      %p200 = scmp.ne.s32.totalorder %s186, %s187
      %p201 = scmp.eq.s32.totalorder %s27, 1
      %p202 = por %p200, %p201
      %p204 = scmp.ne.s32.totalorder %s187, %s203
      %p205 = scmp.eq.s32.totalorder %s27, 0
      %p206 = por %p204, %p205
      %p207 = scmp.le.s32.totalorder 1, %s21
      %p208 = scmp.lt.s32.totalorder %s21, 3
      %p209 = pnand %p207, %p208
      %p210 = pneg %p209
      // Predicated region
      $region9: #{tpu_custom_call.1} parent=5 // pred_check
        _
      $region10: #{tpu_custom_call.1} parent=5 // pred_check_branch
        %212 = sbr.rel (%p209) target = $region12
      $region11: #{tpu_custom_call.1} parent=5 // pred_region
        %s213 = ssub.s32 %s21, 1
        // Predicated region
        $region13: #{tpu_custom_call.1} parent=11 // pred_check
          %p214 = pneg %p68
        $region14: #{tpu_custom_call.1} parent=11 // pred_check_branch
          %216 = sbr.rel (%p214) target = $region16
        $region15: #{tpu_custom_call.1} parent=11 // pred_region
          %s218 = ssub.s32 28672, 28672
          %219 = vsyncadd [#allocation6], %s218
          %s220 = sshll.u32 [#allocation5], 4
          %s221 = int_to_ptr.vmem [resolvable:$true] %s220
          %226 = dma.hbm_to_vmem [thread:$0]  %s1, 28672, %s221, [#allocation6], 256, 256, 16
        $region16: #{tpu_custom_call.1} parent=11 // pred_fallthru
          _
        // Predicated region
        $region17: #{tpu_custom_call.1} parent=11 // pred_check
          %p227 = pneg %p89
        $region18: #{tpu_custom_call.1} parent=11 // pred_check_branch
          %229 = sbr.rel (%p227) target = $region20
        $region19: #{tpu_custom_call.1} parent=11 // pred_region
          _
        $region20: #{tpu_custom_call.1} parent=11 // pred_fallthru
          _
        // Predicated region
        $region21: #{tpu_custom_call.1} parent=11 // pred_check
          %p230 = pneg %p110
        $region22: #{tpu_custom_call.1} parent=11 // pred_check_branch
          %232 = sbr.rel (%p230) target = $region24
        $region23: #{tpu_custom_call.1} parent=11 // pred_region
          %s234 = ssub.s32 16384, 16384
          %235 = vsyncadd [#allocation6], %s234
          %s236 = sshll.u32 [#allocation7], 4
          %s237 = int_to_ptr.vmem [resolvable:$true] %s236
          %242 = dma.hbm_to_vmem [thread:$0]  %s3, 16384, %s237, [#allocation6], 256, 256, 16
        $region24: #{tpu_custom_call.1} parent=11 // pred_fallthru
          _
        // Predicated region
        $region25: #{tpu_custom_call.1} parent=11 // pred_check
          %p243 = pneg %p131
        $region26: #{tpu_custom_call.1} parent=11 // pred_check_branch
          %245 = sbr.rel (%p243) target = $region28
        $region27: #{tpu_custom_call.1} parent=11 // pred_region
          _
        $region28: #{tpu_custom_call.1} parent=11 // pred_fallthru
          _
        // Predicated region
        $region29: #{tpu_custom_call.1} parent=11 // pred_check
          %p246 = pneg %p152
        $region30: #{tpu_custom_call.1} parent=11 // pred_check_branch
          %248 = sbr.rel (%p246) target = $region32
        $region31: #{tpu_custom_call.1} parent=11 // pred_region
          %s250 = ssub.s32 4096, 4096
          %251 = vsyncadd [#allocation9], %s250
          %s252 = sshll.u32 [#allocation8], 4
          %s253 = int_to_ptr.vmem [resolvable:$true] %s252
          %258 = dma.hbm_to_vmem [thread:$0]  %s5, 4096, %s253, [#allocation9], 64, 64, 4
        $region32: #{tpu_custom_call.1} parent=11 // pred_fallthru
          _
        // Predicated region
        $region33: #{tpu_custom_call.1} parent=11 // pred_check
          %p259 = pneg %p173
        $region34: #{tpu_custom_call.1} parent=11 // pred_check_branch
          %261 = sbr.rel (%p259) target = $region36
        $region35: #{tpu_custom_call.1} parent=11 // pred_region
          _
        $region36: #{tpu_custom_call.1} parent=11 // pred_fallthru
          _
      $region12: #{tpu_custom_call.1} parent=5 // pred_fallthru
        _
      %p262 = scmp.lt.s32.totalorder %s21, 2
      // Predicated region
      $region37: #{tpu_custom_call.1} parent=5 // pred_check
        %p263 = pneg %p262
      $region38: #{tpu_custom_call.1} parent=5 // pred_check_branch
        %265 = sbr.rel (%p263) target = $region40
      $region39: #{tpu_custom_call.1} parent=5 // pred_region
        // Predicated region
        $region41: #{tpu_custom_call.1} parent=39 // pred_check
          %p266 = pneg %p41
        $region42: #{tpu_custom_call.1} parent=39 // pred_check_branch
          %268 = sbr.rel (%p266) target = $region44
        $region43: #{tpu_custom_call.1} parent=39 // pred_region
          %s269 = sand.u32 %s31, 1
          %s270 = scalar_lea.sflag [#allocation3], %s269
          %s271 = sand.u32 %s31, 1
          %s272 = smul.addr %s271, 448
          %s273 = scalar_lea.vmem [#allocation2], %s272
          %s274 = smul.u32 16, %s21
          %s276 = ssub.s32 7168, 7168
          %277 = vsyncadd %s270, %s276
          %s278 = smul.addr %s274, 7
          %s279 = smul.addr %s278, 64
          %s280 = scalar_lea.hbm %s0, %s279
          %s281 = sshll.u32 %s273, 4
          %s282 = int_to_ptr.vmem [resolvable:$true] %s281
          %287 = dma.hbm_to_vmem [thread:$0]  %s280, 7168, %s282, %s270, 448, 448, 28
        $region44: #{tpu_custom_call.1} parent=39 // pred_fallthru
          _
      $region40: #{tpu_custom_call.1} parent=5 // pred_fallthru
        _
      %p288 = scmp.le.s32.totalorder 1, %s21
      %p289 = scmp.lt.s32.totalorder %s21, 3
      %p290 = pnand %p288, %p289
      %p291 = pneg %p290
      // Predicated region
      $region45: #{tpu_custom_call.1} parent=5 // pred_check
        _
      $region46: #{tpu_custom_call.1} parent=5 // pred_check_branch
        %293 = sbr.rel (%p290) target = $region48
      $region47: #{tpu_custom_call.1} parent=5 // pred_region
        %s294 = ssub.s32 %s21, 1
        %s295 = sand.u32 %s34, 1
        %s296 = scalar_lea.sflag [#allocation3], %s295
        %s297 = sand.u32 %s34, 1
        %s298 = smul.addr %s297, 448
        %s299 = scalar_lea.vmem [#allocation2], %s298
        // Predicated region
        $region49: #{tpu_custom_call.1} parent=47 // pred_check
          %p300 = pneg %p47
        $region50: #{tpu_custom_call.1} parent=47 // pred_check_branch
          %302 = sbr.rel (%p300) target = $region52
        $region51: #{tpu_custom_call.1} parent=47 // pred_region
          %303 = dma.done %s296, 7168
        $region52: #{tpu_custom_call.1} parent=47 // pred_fallthru
          _
        // Predicated region
        $region53: #{tpu_custom_call.1} parent=47 // pred_check
          %p304 = pneg %p68
        $region54: #{tpu_custom_call.1} parent=47 // pred_check_branch
          %306 = sbr.rel (%p304) target = $region56
        $region55: #{tpu_custom_call.1} parent=47 // pred_region
          %307 = dma.done [#allocation6], 28672
        $region56: #{tpu_custom_call.1} parent=47 // pred_fallthru
          _
        // Predicated region
        $region57: #{tpu_custom_call.1} parent=47 // pred_check
          %p308 = pneg %p110
        $region58: #{tpu_custom_call.1} parent=47 // pred_check_branch
          %310 = sbr.rel (%p308) target = $region60
        $region59: #{tpu_custom_call.1} parent=47 // pred_region
          %311 = dma.done [#allocation6], 16384
        $region60: #{tpu_custom_call.1} parent=47 // pred_fallthru
          _
        // Predicated region
        $region61: #{tpu_custom_call.1} parent=47 // pred_check
          %p312 = pneg %p152
        $region62: #{tpu_custom_call.1} parent=47 // pred_check_branch
          %314 = sbr.rel (%p312) target = $region64
        $region63: #{tpu_custom_call.1} parent=47 // pred_region
          %315 = dma.done [#allocation9], 4096
        $region64: #{tpu_custom_call.1} parent=47 // pred_fallthru
          _
        %s316 = sand.u32 %s34, 1
        %s317 = scalar_lea.sflag [#allocation3], %s316
        %s318 = sand.u32 %s34, 1
        %s319 = smul.addr %s318, 448
        %s320 = scalar_lea.vmem [#allocation2], %s319
        %p321 = pneg %p47
        %p322 = pneg %p44
        %p323 = pneg %p68
        %p324 = pneg %p65
        %p325 = pneg %p89
        %p326 = pneg %p86
        %p327 = pneg %p110
        %p328 = pneg %p107
        %p329 = pneg %p131
        %p330 = pneg %p128
        %p331 = pneg %p152
        %p332 = pneg %p149
        %p333 = pneg %p173
        %p334 = pneg %p170
        %p335 = pneg %p199
        %p336 = pneg %p196
        %s337 = sand.u32 %s186, 1
        %s338 = scalar_lea.sflag [#allocation4], %s337
        %s339 = sand.u32 %s186, 1
        %s340 = smul.addr %s339, 128
        %s341 = scalar_lea.vmem [#allocation10], %s340
        %s342 = smul.u32 16, %s26
        %s343 = smul.u32 16, %s26
        %v345 = vld [vmem:[%s299] sm:$0xff]
        %v346 = vld [vmem:[%s299 + $0x8] sm:$0xff]
        %v347 = vld [vmem:[%s299 + $0x10] sm:$0xff]
        %v348 = vld [vmem:[%s299 + $0x18] sm:$0xf]
        %v349 = vld [vmem:[%s299 + $0x1c] sm:$0xff]
        %v350 = vld [vmem:[%s299 + $0x24] sm:$0xff]
        %v351 = vld [vmem:[%s299 + $0x2c] sm:$0xff]
        %v352 = vld [vmem:[%s299 + $0x34] sm:$0xf]
        %v353 = vld [vmem:[%s299 + $0x38] sm:$0xff]
        %v354 = vld [vmem:[%s299 + $0x40] sm:$0xff]
        %v355 = vld [vmem:[%s299 + $0x48] sm:$0xff]
        %v356 = vld [vmem:[%s299 + $0x50] sm:$0xf]
        %v357 = vld [vmem:[%s299 + $0x54] sm:$0xff]
        %v358 = vld [vmem:[%s299 + $0x5c] sm:$0xff]
        %v359 = vld [vmem:[%s299 + $0x64] sm:$0xff]
        %v360 = vld [vmem:[%s299 + $0x6c] sm:$0xf]
        %v361 = vld [vmem:[%s299 + $0x70] sm:$0xff]
        %v362 = vld [vmem:[%s299 + $0x78] sm:$0xff]
        %v363 = vld [vmem:[%s299 + $0x80] sm:$0xff]
        %v364 = vld [vmem:[%s299 + $0x88] sm:$0xf]
        %v365 = vld [vmem:[%s299 + $0x8c] sm:$0xff]
        %v366 = vld [vmem:[%s299 + $0x94] sm:$0xff]
        %v367 = vld [vmem:[%s299 + $0x9c] sm:$0xff]
        %v368 = vld [vmem:[%s299 + $0xa4] sm:$0xf]
        %v369 = vld [vmem:[%s299 + $0xa8] sm:$0xff]
        %v370 = vld [vmem:[%s299 + $0xb0] sm:$0xff]
        %v371 = vld [vmem:[%s299 + $0xb8] sm:$0xff]
        %v372 = vld [vmem:[%s299 + $0xc0] sm:$0xf]
        %v373 = vld [vmem:[%s299 + $0xc4] sm:$0xff]
        %v374 = vld [vmem:[%s299 + $0xcc] sm:$0xff]
        %v375 = vld [vmem:[%s299 + $0xd4] sm:$0xff]
        %v376 = vld [vmem:[%s299 + $0xdc] sm:$0xf]
        %v377 = vld [vmem:[%s299 + $0xe0] sm:$0xff]
        %v378 = vld [vmem:[%s299 + $0xe8] sm:$0xff]
        %v379 = vld [vmem:[%s299 + $0xf0] sm:$0xff]
        %v380 = vld [vmem:[%s299 + $0xf8] sm:$0xf]
        %v381 = vld [vmem:[%s299 + $0xfc] sm:$0xff]
        %v382 = vld [vmem:[%s299 + $0x104] sm:$0xff]
        %v383 = vld [vmem:[%s299 + $0x10c] sm:$0xff]
        %v384 = vld [vmem:[%s299 + $0x114] sm:$0xf]
        %v385 = vld [vmem:[%s299 + $0x118] sm:$0xff]
        %v386 = vld [vmem:[%s299 + $0x120] sm:$0xff]
        %v387 = vld [vmem:[%s299 + $0x128] sm:$0xff]
        %v388 = vld [vmem:[%s299 + $0x130] sm:$0xf]
        %v389 = vld [vmem:[%s299 + $0x134] sm:$0xff]
        %v390 = vld [vmem:[%s299 + $0x13c] sm:$0xff]
        %v391 = vld [vmem:[%s299 + $0x144] sm:$0xff]
        %v392 = vld [vmem:[%s299 + $0x14c] sm:$0xf]
        %v393 = vld [vmem:[%s299 + $0x150] sm:$0xff]
        %v394 = vld [vmem:[%s299 + $0x158] sm:$0xff]
        %v395 = vld [vmem:[%s299 + $0x160] sm:$0xff]
        %v396 = vld [vmem:[%s299 + $0x168] sm:$0xf]
        %v397 = vld [vmem:[%s299 + $0x16c] sm:$0xff]
        %v398 = vld [vmem:[%s299 + $0x174] sm:$0xff]
        %v399 = vld [vmem:[%s299 + $0x17c] sm:$0xff]
        %v400 = vld [vmem:[%s299 + $0x184] sm:$0xf]
        %v401 = vld [vmem:[%s299 + $0x188] sm:$0xff]
        %v402 = vld [vmem:[%s299 + $0x190] sm:$0xff]
        %v403 = vld [vmem:[%s299 + $0x198] sm:$0xff]
        %v404 = vld [vmem:[%s299 + $0x1a0] sm:$0xf]
        %v405 = vld [vmem:[%s299 + $0x1a4] sm:$0xff]
        %v406 = vld [vmem:[%s299 + $0x1ac] sm:$0xff]
        %v407 = vld [vmem:[%s299 + $0x1b4] sm:$0xff]
        %v408 = vld [vmem:[%s299 + $0x1bc] sm:$0xf]
        %v409 = vld [vmem:[#allocation5] sm:$0xff]
        %v410 = vld [vmem:[#allocation5 + $0x8] sm:$0xff]
        %v411 = vld [vmem:[#allocation5 + $0x10] sm:$0xff]
        %v412 = vld [vmem:[#allocation5 + $0x18] sm:$0xff]
        %v413 = vld [vmem:[#allocation5 + $0x20] sm:$0xff]
        %v414 = vld [vmem:[#allocation5 + $0x28] sm:$0xff]
        %v415 = vld [vmem:[#allocation5 + $0x30] sm:$0xff]
        %v416 = vld [vmem:[#allocation5 + $0x38] sm:$0xff]
        %v417 = vld [vmem:[#allocation5 + $0x40] sm:$0xff]
        %v418 = vld [vmem:[#allocation5 + $0x48] sm:$0xff]
        %v419 = vld [vmem:[#allocation5 + $0x50] sm:$0xff]
        %v420 = vld [vmem:[#allocation5 + $0x58] sm:$0xff]
        %v421 = vld [vmem:[#allocation5 + $0x60] sm:$0xff]
        %v422 = vld [vmem:[#allocation5 + $0x68] sm:$0xff]
        %v423 = vld [vmem:[#allocation5 + $0x70] sm:$0xff]
        %v424 = vld [vmem:[#allocation5 + $0x78] sm:$0xff]
        %v425 = vld [vmem:[#allocation5 + $0x80] sm:$0xff]
        %v426 = vld [vmem:[#allocation5 + $0x88] sm:$0xff]
        %v427 = vld [vmem:[#allocation5 + $0x90] sm:$0xff]
        %v428 = vld [vmem:[#allocation5 + $0x98] sm:$0xff]
        %v429 = vld [vmem:[#allocation5 + $0xa0] sm:$0xff]
        %v430 = vld [vmem:[#allocation5 + $0xa8] sm:$0xff]
        %v431 = vld [vmem:[#allocation5 + $0xb0] sm:$0xff]
        %v432 = vld [vmem:[#allocation5 + $0xb8] sm:$0xff]
        %v433 = vld [vmem:[#allocation5 + $0xc0] sm:$0xff]
        %v434 = vld [vmem:[#allocation5 + $0xc8] sm:$0xff]
        %v435 = vld [vmem:[#allocation5 + $0xd0] sm:$0xff]
        %v436 = vld [vmem:[#allocation5 + $0xd8] sm:$0xff]
        %v437 = vld [vmem:[#allocation5 + $0xe0] sm:$0xff]
        %v438 = vld [vmem:[#allocation5 + $0xe8] sm:$0xff]
        %v439 = vld [vmem:[#allocation5 + $0xf0] sm:$0xff]
        %v440 = vld [vmem:[#allocation5 + $0xf8] sm:$0xff]
        %v441 = vld [vmem:[#allocation5 + $0x100] sm:$0xff]
        %v442 = vld [vmem:[#allocation5 + $0x108] sm:$0xff]
        %v443 = vld [vmem:[#allocation5 + $0x110] sm:$0xff]
        %v444 = vld [vmem:[#allocation5 + $0x118] sm:$0xff]
        %v445 = vld [vmem:[#allocation5 + $0x120] sm:$0xff]
        %v446 = vld [vmem:[#allocation5 + $0x128] sm:$0xff]
        %v447 = vld [vmem:[#allocation5 + $0x130] sm:$0xff]
        %v448 = vld [vmem:[#allocation5 + $0x138] sm:$0xff]
        %v449 = vld [vmem:[#allocation5 + $0x140] sm:$0xff]
        %v450 = vld [vmem:[#allocation5 + $0x148] sm:$0xff]
        %v451 = vld [vmem:[#allocation5 + $0x150] sm:$0xff]
        %v452 = vld [vmem:[#allocation5 + $0x158] sm:$0xff]
        %v453 = vld [vmem:[#allocation5 + $0x160] sm:$0xff]
        %v454 = vld [vmem:[#allocation5 + $0x168] sm:$0xff]
        %v455 = vld [vmem:[#allocation5 + $0x170] sm:$0xff]
        %v456 = vld [vmem:[#allocation5 + $0x178] sm:$0xff]
        %v457 = vld [vmem:[#allocation5 + $0x180] sm:$0xff]
        %v458 = vld [vmem:[#allocation5 + $0x188] sm:$0xff]
        %v459 = vld [vmem:[#allocation5 + $0x190] sm:$0xff]
        %v460 = vld [vmem:[#allocation5 + $0x198] sm:$0xff]
        %v461 = vld [vmem:[#allocation5 + $0x1a0] sm:$0xff]
        %v462 = vld [vmem:[#allocation5 + $0x1a8] sm:$0xff]
        %v463 = vld [vmem:[#allocation5 + $0x1b0] sm:$0xff]
        %v464 = vld [vmem:[#allocation5 + $0x1b8] sm:$0xff]
        %v465 = vld [vmem:[#allocation5 + $0x1c0] sm:$0xff]
        %v466 = vld [vmem:[#allocation5 + $0x1c8] sm:$0xff]
        %v467 = vld [vmem:[#allocation5 + $0x1d0] sm:$0xff]
        %v468 = vld [vmem:[#allocation5 + $0x1d8] sm:$0xff]
        %v469 = vld [vmem:[#allocation5 + $0x1e0] sm:$0xff]
        %v470 = vld [vmem:[#allocation5 + $0x1e8] sm:$0xff]
        %v471 = vld [vmem:[#allocation5 + $0x1f0] sm:$0xff]
        %v472 = vld [vmem:[#allocation5 + $0x1f8] sm:$0xff]
        %v473 = vld [vmem:[#allocation5 + $0x200] sm:$0xff]
        %v474 = vld [vmem:[#allocation5 + $0x208] sm:$0xff]
        %v475 = vld [vmem:[#allocation5 + $0x210] sm:$0xff]
        %v476 = vld [vmem:[#allocation5 + $0x218] sm:$0xff]
        %v477 = vld [vmem:[#allocation5 + $0x220] sm:$0xff]
        %v478 = vld [vmem:[#allocation5 + $0x228] sm:$0xff]
        %v479 = vld [vmem:[#allocation5 + $0x230] sm:$0xff]
        %v480 = vld [vmem:[#allocation5 + $0x238] sm:$0xff]
        %v481 = vld [vmem:[#allocation5 + $0x240] sm:$0xff]
        %v482 = vld [vmem:[#allocation5 + $0x248] sm:$0xff]
        %v483 = vld [vmem:[#allocation5 + $0x250] sm:$0xff]
        %v484 = vld [vmem:[#allocation5 + $0x258] sm:$0xff]
        %v485 = vld [vmem:[#allocation5 + $0x260] sm:$0xff]
        %v486 = vld [vmem:[#allocation5 + $0x268] sm:$0xff]
        %v487 = vld [vmem:[#allocation5 + $0x270] sm:$0xff]
        %v488 = vld [vmem:[#allocation5 + $0x278] sm:$0xff]
        %v489 = vld [vmem:[#allocation5 + $0x280] sm:$0xff]
        %v490 = vld [vmem:[#allocation5 + $0x288] sm:$0xff]
        %v491 = vld [vmem:[#allocation5 + $0x290] sm:$0xff]
        %v492 = vld [vmem:[#allocation5 + $0x298] sm:$0xff]
        %v493 = vld [vmem:[#allocation5 + $0x2a0] sm:$0xff]
        %v494 = vld [vmem:[#allocation5 + $0x2a8] sm:$0xff]
        %v495 = vld [vmem:[#allocation5 + $0x2b0] sm:$0xff]
        %v496 = vld [vmem:[#allocation5 + $0x2b8] sm:$0xff]
        %v497 = vld [vmem:[#allocation5 + $0x2c0] sm:$0xff]
        %v498 = vld [vmem:[#allocation5 + $0x2c8] sm:$0xff]
        %v499 = vld [vmem:[#allocation5 + $0x2d0] sm:$0xff]
        %v500 = vld [vmem:[#allocation5 + $0x2d8] sm:$0xff]
        %v501 = vld [vmem:[#allocation5 + $0x2e0] sm:$0xff]
        %v502 = vld [vmem:[#allocation5 + $0x2e8] sm:$0xff]
        %v503 = vld [vmem:[#allocation5 + $0x2f0] sm:$0xff]
        %v504 = vld [vmem:[#allocation5 + $0x2f8] sm:$0xff]
        %v505 = vld [vmem:[#allocation5 + $0x300] sm:$0xff]
        %v506 = vld [vmem:[#allocation5 + $0x308] sm:$0xff]
        %v507 = vld [vmem:[#allocation5 + $0x310] sm:$0xff]
        %v508 = vld [vmem:[#allocation5 + $0x318] sm:$0xff]
        %v509 = vld [vmem:[#allocation5 + $0x320] sm:$0xff]
        %v510 = vld [vmem:[#allocation5 + $0x328] sm:$0xff]
        %v511 = vld [vmem:[#allocation5 + $0x330] sm:$0xff]
        %v512 = vld [vmem:[#allocation5 + $0x338] sm:$0xff]
        %v513 = vld [vmem:[#allocation5 + $0x340] sm:$0xff]
        %v514 = vld [vmem:[#allocation5 + $0x348] sm:$0xff]
        %v515 = vld [vmem:[#allocation5 + $0x350] sm:$0xff]
        %v516 = vld [vmem:[#allocation5 + $0x358] sm:$0xff]
        %v517 = vld [vmem:[#allocation5 + $0x360] sm:$0xff]
        %v518 = vld [vmem:[#allocation5 + $0x368] sm:$0xff]
        %v519 = vld [vmem:[#allocation5 + $0x370] sm:$0xff]
        %v520 = vld [vmem:[#allocation5 + $0x378] sm:$0xff]
        %v521 = vld [vmem:[#allocation5 + $0x380] sm:$0xff]
        %v522 = vld [vmem:[#allocation5 + $0x388] sm:$0xff]
        %v523 = vld [vmem:[#allocation5 + $0x390] sm:$0xff]
        %v524 = vld [vmem:[#allocation5 + $0x398] sm:$0xff]
        %v525 = vld [vmem:[#allocation5 + $0x3a0] sm:$0xff]
        %v526 = vld [vmem:[#allocation5 + $0x3a8] sm:$0xff]
        %v527 = vld [vmem:[#allocation5 + $0x3b0] sm:$0xff]
        %v528 = vld [vmem:[#allocation5 + $0x3b8] sm:$0xff]
        %v529 = vld [vmem:[#allocation5 + $0x3c0] sm:$0xff]
        %v530 = vld [vmem:[#allocation5 + $0x3c8] sm:$0xff]
        %v531 = vld [vmem:[#allocation5 + $0x3d0] sm:$0xff]
        %v532 = vld [vmem:[#allocation5 + $0x3d8] sm:$0xff]
        %v533 = vld [vmem:[#allocation5 + $0x3e0] sm:$0xff]
        %v534 = vld [vmem:[#allocation5 + $0x3e8] sm:$0xff]
        %v535 = vld [vmem:[#allocation5 + $0x3f0] sm:$0xff]
        %v536 = vld [vmem:[#allocation5 + $0x3f8] sm:$0xff]
        %v537 = vld [vmem:[#allocation5 + $0x400] sm:$0xff]
        %v538 = vld [vmem:[#allocation5 + $0x408] sm:$0xff]
        %v539 = vld [vmem:[#allocation5 + $0x410] sm:$0xff]
        %v540 = vld [vmem:[#allocation5 + $0x418] sm:$0xff]
        %v541 = vld [vmem:[#allocation5 + $0x420] sm:$0xff]
        %v542 = vld [vmem:[#allocation5 + $0x428] sm:$0xff]
        %v543 = vld [vmem:[#allocation5 + $0x430] sm:$0xff]
        %v544 = vld [vmem:[#allocation5 + $0x438] sm:$0xff]
        %v545 = vld [vmem:[#allocation5 + $0x440] sm:$0xff]
        %v546 = vld [vmem:[#allocation5 + $0x448] sm:$0xff]
        %v547 = vld [vmem:[#allocation5 + $0x450] sm:$0xff]
        %v548 = vld [vmem:[#allocation5 + $0x458] sm:$0xff]
        %v549 = vld [vmem:[#allocation5 + $0x460] sm:$0xff]
        %v550 = vld [vmem:[#allocation5 + $0x468] sm:$0xff]
        %v551 = vld [vmem:[#allocation5 + $0x470] sm:$0xff]
        %v552 = vld [vmem:[#allocation5 + $0x478] sm:$0xff]
        %v553 = vld [vmem:[#allocation5 + $0x480] sm:$0xff]
        %v554 = vld [vmem:[#allocation5 + $0x488] sm:$0xff]
        %v555 = vld [vmem:[#allocation5 + $0x490] sm:$0xff]
        %v556 = vld [vmem:[#allocation5 + $0x498] sm:$0xff]
        %v557 = vld [vmem:[#allocation5 + $0x4a0] sm:$0xff]
        %v558 = vld [vmem:[#allocation5 + $0x4a8] sm:$0xff]
        %v559 = vld [vmem:[#allocation5 + $0x4b0] sm:$0xff]
        %v560 = vld [vmem:[#allocation5 + $0x4b8] sm:$0xff]
        %v561 = vld [vmem:[#allocation5 + $0x4c0] sm:$0xff]
        %v562 = vld [vmem:[#allocation5 + $0x4c8] sm:$0xff]
        %v563 = vld [vmem:[#allocation5 + $0x4d0] sm:$0xff]
        %v564 = vld [vmem:[#allocation5 + $0x4d8] sm:$0xff]
        %v565 = vld [vmem:[#allocation5 + $0x4e0] sm:$0xff]
        %v566 = vld [vmem:[#allocation5 + $0x4e8] sm:$0xff]
        %v567 = vld [vmem:[#allocation5 + $0x4f0] sm:$0xff]
        %v568 = vld [vmem:[#allocation5 + $0x4f8] sm:$0xff]
        %v569 = vld [vmem:[#allocation5 + $0x500] sm:$0xff]
        %v570 = vld [vmem:[#allocation5 + $0x508] sm:$0xff]
        %v571 = vld [vmem:[#allocation5 + $0x510] sm:$0xff]
        %v572 = vld [vmem:[#allocation5 + $0x518] sm:$0xff]
        %v573 = vld [vmem:[#allocation5 + $0x520] sm:$0xff]
        %v574 = vld [vmem:[#allocation5 + $0x528] sm:$0xff]
        %v575 = vld [vmem:[#allocation5 + $0x530] sm:$0xff]
        %v576 = vld [vmem:[#allocation5 + $0x538] sm:$0xff]
        %v577 = vld [vmem:[#allocation5 + $0x540] sm:$0xff]
        %v578 = vld [vmem:[#allocation5 + $0x548] sm:$0xff]
        %v579 = vld [vmem:[#allocation5 + $0x550] sm:$0xff]
        %v580 = vld [vmem:[#allocation5 + $0x558] sm:$0xff]
        %v581 = vld [vmem:[#allocation5 + $0x560] sm:$0xff]
        %v582 = vld [vmem:[#allocation5 + $0x568] sm:$0xff]
        %v583 = vld [vmem:[#allocation5 + $0x570] sm:$0xff]
        %v584 = vld [vmem:[#allocation5 + $0x578] sm:$0xff]
        %v585 = vld [vmem:[#allocation5 + $0x580] sm:$0xff]
        %v586 = vld [vmem:[#allocation5 + $0x588] sm:$0xff]
        %v587 = vld [vmem:[#allocation5 + $0x590] sm:$0xff]
        %v588 = vld [vmem:[#allocation5 + $0x598] sm:$0xff]
        %v589 = vld [vmem:[#allocation5 + $0x5a0] sm:$0xff]
        %v590 = vld [vmem:[#allocation5 + $0x5a8] sm:$0xff]
        %v591 = vld [vmem:[#allocation5 + $0x5b0] sm:$0xff]
        %v592 = vld [vmem:[#allocation5 + $0x5b8] sm:$0xff]
        %v593 = vld [vmem:[#allocation5 + $0x5c0] sm:$0xff]
        %v594 = vld [vmem:[#allocation5 + $0x5c8] sm:$0xff]
        %v595 = vld [vmem:[#allocation5 + $0x5d0] sm:$0xff]
        %v596 = vld [vmem:[#allocation5 + $0x5d8] sm:$0xff]
        %v597 = vld [vmem:[#allocation5 + $0x5e0] sm:$0xff]
        %v598 = vld [vmem:[#allocation5 + $0x5e8] sm:$0xff]
        %v599 = vld [vmem:[#allocation5 + $0x5f0] sm:$0xff]
        %v600 = vld [vmem:[#allocation5 + $0x5f8] sm:$0xff]
        %v601 = vld [vmem:[#allocation5 + $0x600] sm:$0xff]
        %v602 = vld [vmem:[#allocation5 + $0x608] sm:$0xff]
        %v603 = vld [vmem:[#allocation5 + $0x610] sm:$0xff]
        %v604 = vld [vmem:[#allocation5 + $0x618] sm:$0xff]
        %v605 = vld [vmem:[#allocation5 + $0x620] sm:$0xff]
        %v606 = vld [vmem:[#allocation5 + $0x628] sm:$0xff]
        %v607 = vld [vmem:[#allocation5 + $0x630] sm:$0xff]
        %v608 = vld [vmem:[#allocation5 + $0x638] sm:$0xff]
        %v609 = vld [vmem:[#allocation5 + $0x640] sm:$0xff]
        %v610 = vld [vmem:[#allocation5 + $0x648] sm:$0xff]
        %v611 = vld [vmem:[#allocation5 + $0x650] sm:$0xff]
        %v612 = vld [vmem:[#allocation5 + $0x658] sm:$0xff]
        %v613 = vld [vmem:[#allocation5 + $0x660] sm:$0xff]
        %v614 = vld [vmem:[#allocation5 + $0x668] sm:$0xff]
        %v615 = vld [vmem:[#allocation5 + $0x670] sm:$0xff]
        %v616 = vld [vmem:[#allocation5 + $0x678] sm:$0xff]
        %v617 = vld [vmem:[#allocation5 + $0x680] sm:$0xff]
        %v618 = vld [vmem:[#allocation5 + $0x688] sm:$0xff]
        %v619 = vld [vmem:[#allocation5 + $0x690] sm:$0xff]
        %v620 = vld [vmem:[#allocation5 + $0x698] sm:$0xff]
        %v621 = vld [vmem:[#allocation5 + $0x6a0] sm:$0xff]
        %v622 = vld [vmem:[#allocation5 + $0x6a8] sm:$0xff]
        %v623 = vld [vmem:[#allocation5 + $0x6b0] sm:$0xff]
        %v624 = vld [vmem:[#allocation5 + $0x6b8] sm:$0xff]
        %v625 = vld [vmem:[#allocation5 + $0x6c0] sm:$0xff]
        %v626 = vld [vmem:[#allocation5 + $0x6c8] sm:$0xff]
        %v627 = vld [vmem:[#allocation5 + $0x6d0] sm:$0xff]
        %v628 = vld [vmem:[#allocation5 + $0x6d8] sm:$0xff]
        %v629 = vld [vmem:[#allocation5 + $0x6e0] sm:$0xff]
        %v630 = vld [vmem:[#allocation5 + $0x6e8] sm:$0xff]
        %v631 = vld [vmem:[#allocation5 + $0x6f0] sm:$0xff]
        %v632 = vld [vmem:[#allocation5 + $0x6f8] sm:$0xff]
        %v633 = vld [vmem:[%s2] sm:$0xf]
        %v635 = vlaneseq
        %v636 = vshrl.u32 %v635, 7
        %v637 = vsub.s32 0, %v636
        %v638 = vrot.slane %v633, %v637
        %v639 = vlaneseq
        %v640 = vshrl.u32 %v639, 7
        %v641 = vsub.s32 1, %v640
        %v642 = vrot.slane %v633, %v641
        %v643 = vlaneseq
        %v644 = vshrl.u32 %v643, 7
        %v645 = vsub.s32 2, %v644
        %v646 = vrot.slane %v633, %v645
        %v647 = vlaneseq
        %v648 = vshrl.u32 %v647, 7
        %v649 = vsub.s32 3, %v648
        %v650 = vrot.slane %v633, %v649
        %v719 = vunpack.c.l.b16 %v345
        %v720 = vunpack.c.h.b16 %v345
        %v721 = vunpack.c.l.b16 %v346
        %v722 = vunpack.c.h.b16 %v346
        %v723 = vunpack.c.l.b16 %v347
        %v724 = vunpack.c.h.b16 %v347
        %v725 = vunpack.c.l.b16 %v348
        %v726 = vunpack.c.l.b16 %v349
        %v727 = vunpack.c.h.b16 %v349
        %v728 = vunpack.c.l.b16 %v350
        %v729 = vunpack.c.h.b16 %v350
        %v730 = vunpack.c.l.b16 %v351
        %v731 = vunpack.c.h.b16 %v351
        %v732 = vunpack.c.l.b16 %v352
        %v733 = vunpack.c.l.b16 %v353
        %v734 = vunpack.c.h.b16 %v353
        %v735 = vunpack.c.l.b16 %v354
        %v736 = vunpack.c.h.b16 %v354
        %v737 = vunpack.c.l.b16 %v355
        %v738 = vunpack.c.h.b16 %v355
        %v739 = vunpack.c.l.b16 %v356
        %v740 = vunpack.c.l.b16 %v357
        %v741 = vunpack.c.h.b16 %v357
        %v742 = vunpack.c.l.b16 %v358
        %v743 = vunpack.c.h.b16 %v358
        %v744 = vunpack.c.l.b16 %v359
        %v745 = vunpack.c.h.b16 %v359
        %v746 = vunpack.c.l.b16 %v360
        %v747 = vunpack.c.l.b16 %v361
        %v748 = vunpack.c.h.b16 %v361
        %v749 = vunpack.c.l.b16 %v362
        %v750 = vunpack.c.h.b16 %v362
        %v751 = vunpack.c.l.b16 %v363
        %v752 = vunpack.c.h.b16 %v363
        %v753 = vunpack.c.l.b16 %v364
        %v754 = vunpack.c.l.b16 %v365
        %v755 = vunpack.c.h.b16 %v365
        %v756 = vunpack.c.l.b16 %v366
        %v757 = vunpack.c.h.b16 %v366
        %v758 = vunpack.c.l.b16 %v367
        %v759 = vunpack.c.h.b16 %v367
        %v760 = vunpack.c.l.b16 %v368
        %v761 = vunpack.c.l.b16 %v369
        %v762 = vunpack.c.h.b16 %v369
        %v763 = vunpack.c.l.b16 %v370
        %v764 = vunpack.c.h.b16 %v370
        %v765 = vunpack.c.l.b16 %v371
        %v766 = vunpack.c.h.b16 %v371
        %v767 = vunpack.c.l.b16 %v372
        %v768 = vunpack.c.l.b16 %v373
        %v769 = vunpack.c.h.b16 %v373
        %v770 = vunpack.c.l.b16 %v374
        %v771 = vunpack.c.h.b16 %v374
        %v772 = vunpack.c.l.b16 %v375
        %v773 = vunpack.c.h.b16 %v375
        %v774 = vunpack.c.l.b16 %v376
        %v775 = vunpack.c.l.b16 %v377
        %v776 = vunpack.c.h.b16 %v377
        %v777 = vunpack.c.l.b16 %v378
        %v778 = vunpack.c.h.b16 %v378
        %v779 = vunpack.c.l.b16 %v379
        %v780 = vunpack.c.h.b16 %v379
        %v781 = vunpack.c.l.b16 %v380
        %v782 = vunpack.c.l.b16 %v381
        %v783 = vunpack.c.h.b16 %v381
        %v784 = vunpack.c.l.b16 %v382
        %v785 = vunpack.c.h.b16 %v382
        %v786 = vunpack.c.l.b16 %v383
        %v787 = vunpack.c.h.b16 %v383
        %v788 = vunpack.c.l.b16 %v384
        %v789 = vunpack.c.l.b16 %v385
        %v790 = vunpack.c.h.b16 %v385
        %v791 = vunpack.c.l.b16 %v386
        %v792 = vunpack.c.h.b16 %v386
        %v793 = vunpack.c.l.b16 %v387
        %v794 = vunpack.c.h.b16 %v387
        %v795 = vunpack.c.l.b16 %v388
        %v796 = vunpack.c.l.b16 %v389
        %v797 = vunpack.c.h.b16 %v389
        %v798 = vunpack.c.l.b16 %v390
        %v799 = vunpack.c.h.b16 %v390
        %v800 = vunpack.c.l.b16 %v391
        %v801 = vunpack.c.h.b16 %v391
        %v802 = vunpack.c.l.b16 %v392
        %v803 = vunpack.c.l.b16 %v393
        %v804 = vunpack.c.h.b16 %v393
        %v805 = vunpack.c.l.b16 %v394
        %v806 = vunpack.c.h.b16 %v394
        %v807 = vunpack.c.l.b16 %v395
        %v808 = vunpack.c.h.b16 %v395
        %v809 = vunpack.c.l.b16 %v396
        %v810 = vunpack.c.l.b16 %v397
        %v811 = vunpack.c.h.b16 %v397
        %v812 = vunpack.c.l.b16 %v398
        %v813 = vunpack.c.h.b16 %v398
        %v814 = vunpack.c.l.b16 %v399
        %v815 = vunpack.c.h.b16 %v399
        %v816 = vunpack.c.l.b16 %v400
        %v817 = vunpack.c.l.b16 %v401
        %v818 = vunpack.c.h.b16 %v401
        %v819 = vunpack.c.l.b16 %v402
        %v820 = vunpack.c.h.b16 %v402
        %v821 = vunpack.c.l.b16 %v403
        %v822 = vunpack.c.h.b16 %v403
        %v823 = vunpack.c.l.b16 %v404
        %v824 = vunpack.c.l.b16 %v405
        %v825 = vunpack.c.h.b16 %v405
        %v826 = vunpack.c.l.b16 %v406
        %v827 = vunpack.c.h.b16 %v406
        %v828 = vunpack.c.l.b16 %v407
        %v829 = vunpack.c.h.b16 %v407
        %v830 = vunpack.c.l.b16 %v408
        %v831 = vpack.c.b16 %v726, %v719
        %v832 = vpack.c.b16 %v727, %v720
        %v833 = vpack.c.b16 %v728, %v721
        %v834 = vpack.c.b16 %v729, %v722
        %v835 = vpack.c.b16 %v730, %v723
        %v836 = vpack.c.b16 %v731, %v724
        %v837 = vpack.c.b16 %v732, %v725
        %v838 = vpack.c.b16 %v740, %v733
        %v839 = vpack.c.b16 %v741, %v734
        %v840 = vpack.c.b16 %v742, %v735
        %v841 = vpack.c.b16 %v743, %v736
        %v842 = vpack.c.b16 %v744, %v737
        %v843 = vpack.c.b16 %v745, %v738
        %v844 = vpack.c.b16 %v746, %v739
        %v845 = vpack.c.b16 %v754, %v747
        %v846 = vpack.c.b16 %v755, %v748
        %v847 = vpack.c.b16 %v756, %v749
        %v848 = vpack.c.b16 %v757, %v750
        %v849 = vpack.c.b16 %v758, %v751
        %v850 = vpack.c.b16 %v759, %v752
        %v851 = vpack.c.b16 %v760, %v753
        %v852 = vpack.c.b16 %v768, %v761
        %v853 = vpack.c.b16 %v769, %v762
        %v854 = vpack.c.b16 %v770, %v763
        %v855 = vpack.c.b16 %v771, %v764
        %v856 = vpack.c.b16 %v772, %v765
        %v857 = vpack.c.b16 %v773, %v766
        %v858 = vpack.c.b16 %v774, %v767
        %v859 = vpack.c.b16 %v782, %v775
        %v860 = vpack.c.b16 %v783, %v776
        %v861 = vpack.c.b16 %v784, %v777
        %v862 = vpack.c.b16 %v785, %v778
        %v863 = vpack.c.b16 %v786, %v779
        %v864 = vpack.c.b16 %v787, %v780
        %v865 = vpack.c.b16 %v788, %v781
        %v866 = vpack.c.b16 %v796, %v789
        %v867 = vpack.c.b16 %v797, %v790
        %v868 = vpack.c.b16 %v798, %v791
        %v869 = vpack.c.b16 %v799, %v792
        %v870 = vpack.c.b16 %v800, %v793
        %v871 = vpack.c.b16 %v801, %v794
        %v872 = vpack.c.b16 %v802, %v795
        %v873 = vpack.c.b16 %v810, %v803
        %v874 = vpack.c.b16 %v811, %v804
        %v875 = vpack.c.b16 %v812, %v805
        %v876 = vpack.c.b16 %v813, %v806
        %v877 = vpack.c.b16 %v814, %v807
        %v878 = vpack.c.b16 %v815, %v808
        %v879 = vpack.c.b16 %v816, %v809
        %v880 = vpack.c.b16 %v824, %v817
        %v881 = vpack.c.b16 %v825, %v818
        %v882 = vpack.c.b16 %v826, %v819
        %v883 = vpack.c.b16 %v827, %v820
        %v884 = vpack.c.b16 %v828, %v821
        %v885 = vpack.c.b16 %v829, %v822
        %v886 = vpack.c.b16 %v830, %v823
        %v1167 = vunpack.c.l.b16 %v409
        %v1168 = vunpack.c.h.b16 %v409
        %v1169 = vunpack.c.l.b16 %v410
        %v1170 = vunpack.c.h.b16 %v410
        %v1171 = vunpack.c.l.b16 %v411
        %v1172 = vunpack.c.h.b16 %v411
        %v1173 = vunpack.c.l.b16 %v412
        %v1174 = vunpack.c.h.b16 %v412
        %v1175 = vunpack.c.l.b16 %v413
        %v1176 = vunpack.c.h.b16 %v413
        %v1177 = vunpack.c.l.b16 %v414
        %v1178 = vunpack.c.h.b16 %v414
        %v1179 = vunpack.c.l.b16 %v415
        %v1180 = vunpack.c.h.b16 %v415
        %v1181 = vunpack.c.l.b16 %v416
        %v1182 = vunpack.c.h.b16 %v416
        %v1183 = vunpack.c.l.b16 %v417
        %v1184 = vunpack.c.h.b16 %v417
        %v1185 = vunpack.c.l.b16 %v418
        %v1186 = vunpack.c.h.b16 %v418
        %v1187 = vunpack.c.l.b16 %v419
        %v1188 = vunpack.c.h.b16 %v419
        %v1189 = vunpack.c.l.b16 %v420
        %v1190 = vunpack.c.h.b16 %v420
        %v1191 = vunpack.c.l.b16 %v421
        %v1192 = vunpack.c.h.b16 %v421
        %v1193 = vunpack.c.l.b16 %v422
        %v1194 = vunpack.c.h.b16 %v422
        %v1195 = vunpack.c.l.b16 %v423
        %v1196 = vunpack.c.h.b16 %v423
        %v1197 = vunpack.c.l.b16 %v424
        %v1198 = vunpack.c.h.b16 %v424
        %v1199 = vunpack.c.l.b16 %v425
        %v1200 = vunpack.c.h.b16 %v425
        %v1201 = vunpack.c.l.b16 %v426
        %v1202 = vunpack.c.h.b16 %v426
        %v1203 = vunpack.c.l.b16 %v427
        %v1204 = vunpack.c.h.b16 %v427
        %v1205 = vunpack.c.l.b16 %v428
        %v1206 = vunpack.c.h.b16 %v428
        %v1207 = vunpack.c.l.b16 %v429
        %v1208 = vunpack.c.h.b16 %v429
        %v1209 = vunpack.c.l.b16 %v430
        %v1210 = vunpack.c.h.b16 %v430
        %v1211 = vunpack.c.l.b16 %v431
        %v1212 = vunpack.c.h.b16 %v431
        %v1213 = vunpack.c.l.b16 %v432
        %v1214 = vunpack.c.h.b16 %v432
        %v1215 = vunpack.c.l.b16 %v433
        %v1216 = vunpack.c.h.b16 %v433
        %v1217 = vunpack.c.l.b16 %v434
        %v1218 = vunpack.c.h.b16 %v434
        %v1219 = vunpack.c.l.b16 %v435
        %v1220 = vunpack.c.h.b16 %v435
        %v1221 = vunpack.c.l.b16 %v436
        %v1222 = vunpack.c.h.b16 %v436
        %v1223 = vunpack.c.l.b16 %v437
        %v1224 = vunpack.c.h.b16 %v437
        %v1225 = vunpack.c.l.b16 %v438
        %v1226 = vunpack.c.h.b16 %v438
        %v1227 = vunpack.c.l.b16 %v439
        %v1228 = vunpack.c.h.b16 %v439
        %v1229 = vunpack.c.l.b16 %v440
        %v1230 = vunpack.c.h.b16 %v440
        %v1231 = vunpack.c.l.b16 %v441
        %v1232 = vunpack.c.h.b16 %v441
        %v1233 = vunpack.c.l.b16 %v442
        %v1234 = vunpack.c.h.b16 %v442
        %v1235 = vunpack.c.l.b16 %v443
        %v1236 = vunpack.c.h.b16 %v443
        %v1237 = vunpack.c.l.b16 %v444
        %v1238 = vunpack.c.h.b16 %v444
        %v1239 = vunpack.c.l.b16 %v445
        %v1240 = vunpack.c.h.b16 %v445
        %v1241 = vunpack.c.l.b16 %v446
        %v1242 = vunpack.c.h.b16 %v446
        %v1243 = vunpack.c.l.b16 %v447
        %v1244 = vunpack.c.h.b16 %v447
        %v1245 = vunpack.c.l.b16 %v448
        %v1246 = vunpack.c.h.b16 %v448
        %v1247 = vunpack.c.l.b16 %v449
        %v1248 = vunpack.c.h.b16 %v449
        %v1249 = vunpack.c.l.b16 %v450
        %v1250 = vunpack.c.h.b16 %v450
        %v1251 = vunpack.c.l.b16 %v451
        %v1252 = vunpack.c.h.b16 %v451
        %v1253 = vunpack.c.l.b16 %v452
        %v1254 = vunpack.c.h.b16 %v452
        %v1255 = vunpack.c.l.b16 %v453
        %v1256 = vunpack.c.h.b16 %v453
        %v1257 = vunpack.c.l.b16 %v454
        %v1258 = vunpack.c.h.b16 %v454
        %v1259 = vunpack.c.l.b16 %v455
        %v1260 = vunpack.c.h.b16 %v455
        %v1261 = vunpack.c.l.b16 %v456
        %v1262 = vunpack.c.h.b16 %v456
        %v1263 = vunpack.c.l.b16 %v457
        %v1264 = vunpack.c.h.b16 %v457
        %v1265 = vunpack.c.l.b16 %v458
        %v1266 = vunpack.c.h.b16 %v458
        %v1267 = vunpack.c.l.b16 %v459
        %v1268 = vunpack.c.h.b16 %v459
        %v1269 = vunpack.c.l.b16 %v460
        %v1270 = vunpack.c.h.b16 %v460
        %v1271 = vunpack.c.l.b16 %v461
        %v1272 = vunpack.c.h.b16 %v461
        %v1273 = vunpack.c.l.b16 %v462
        %v1274 = vunpack.c.h.b16 %v462
        %v1275 = vunpack.c.l.b16 %v463
        %v1276 = vunpack.c.h.b16 %v463
        %v1277 = vunpack.c.l.b16 %v464
        %v1278 = vunpack.c.h.b16 %v464
        %v1279 = vunpack.c.l.b16 %v465
        %v1280 = vunpack.c.h.b16 %v465
        %v1281 = vunpack.c.l.b16 %v466
        %v1282 = vunpack.c.h.b16 %v466
        %v1283 = vunpack.c.l.b16 %v467
        %v1284 = vunpack.c.h.b16 %v467
        %v1285 = vunpack.c.l.b16 %v468
        %v1286 = vunpack.c.h.b16 %v468
        %v1287 = vunpack.c.l.b16 %v469
        %v1288 = vunpack.c.h.b16 %v469
        %v1289 = vunpack.c.l.b16 %v470
        %v1290 = vunpack.c.h.b16 %v470
        %v1291 = vunpack.c.l.b16 %v471
        %v1292 = vunpack.c.h.b16 %v471
        %v1293 = vunpack.c.l.b16 %v472
        %v1294 = vunpack.c.h.b16 %v472
        %v1295 = vunpack.c.l.b16 %v473
        %v1296 = vunpack.c.h.b16 %v473
        %v1297 = vunpack.c.l.b16 %v474
        %v1298 = vunpack.c.h.b16 %v474
        %v1299 = vunpack.c.l.b16 %v475
        %v1300 = vunpack.c.h.b16 %v475
        %v1301 = vunpack.c.l.b16 %v476
        %v1302 = vunpack.c.h.b16 %v476
        %v1303 = vunpack.c.l.b16 %v477
        %v1304 = vunpack.c.h.b16 %v477
        %v1305 = vunpack.c.l.b16 %v478
        %v1306 = vunpack.c.h.b16 %v478
        %v1307 = vunpack.c.l.b16 %v479
        %v1308 = vunpack.c.h.b16 %v479
        %v1309 = vunpack.c.l.b16 %v480
        %v1310 = vunpack.c.h.b16 %v480
        %v1311 = vunpack.c.l.b16 %v481
        %v1312 = vunpack.c.h.b16 %v481
        %v1313 = vunpack.c.l.b16 %v482
        %v1314 = vunpack.c.h.b16 %v482
        %v1315 = vunpack.c.l.b16 %v483
        %v1316 = vunpack.c.h.b16 %v483
        %v1317 = vunpack.c.l.b16 %v484
        %v1318 = vunpack.c.h.b16 %v484
        %v1319 = vunpack.c.l.b16 %v485
        %v1320 = vunpack.c.h.b16 %v485
        %v1321 = vunpack.c.l.b16 %v486
        %v1322 = vunpack.c.h.b16 %v486
        %v1323 = vunpack.c.l.b16 %v487
        %v1324 = vunpack.c.h.b16 %v487
        %v1325 = vunpack.c.l.b16 %v488
        %v1326 = vunpack.c.h.b16 %v488
        %v1327 = vunpack.c.l.b16 %v489
        %v1328 = vunpack.c.h.b16 %v489
        %v1329 = vunpack.c.l.b16 %v490
        %v1330 = vunpack.c.h.b16 %v490
        %v1331 = vunpack.c.l.b16 %v491
        %v1332 = vunpack.c.h.b16 %v491
        %v1333 = vunpack.c.l.b16 %v492
        %v1334 = vunpack.c.h.b16 %v492
        %v1335 = vunpack.c.l.b16 %v493
        %v1336 = vunpack.c.h.b16 %v493
        %v1337 = vunpack.c.l.b16 %v494
        %v1338 = vunpack.c.h.b16 %v494
        %v1339 = vunpack.c.l.b16 %v495
        %v1340 = vunpack.c.h.b16 %v495
        %v1341 = vunpack.c.l.b16 %v496
        %v1342 = vunpack.c.h.b16 %v496
        %v1343 = vunpack.c.l.b16 %v497
        %v1344 = vunpack.c.h.b16 %v497
        %v1345 = vunpack.c.l.b16 %v498
        %v1346 = vunpack.c.h.b16 %v498
        %v1347 = vunpack.c.l.b16 %v499
        %v1348 = vunpack.c.h.b16 %v499
        %v1349 = vunpack.c.l.b16 %v500
        %v1350 = vunpack.c.h.b16 %v500
        %v1351 = vunpack.c.l.b16 %v501
        %v1352 = vunpack.c.h.b16 %v501
        %v1353 = vunpack.c.l.b16 %v502
        %v1354 = vunpack.c.h.b16 %v502
        %v1355 = vunpack.c.l.b16 %v503
        %v1356 = vunpack.c.h.b16 %v503
        %v1357 = vunpack.c.l.b16 %v504
        %v1358 = vunpack.c.h.b16 %v504
        %v1359 = vunpack.c.l.b16 %v505
        %v1360 = vunpack.c.h.b16 %v505
        %v1361 = vunpack.c.l.b16 %v506
        %v1362 = vunpack.c.h.b16 %v506
        %v1363 = vunpack.c.l.b16 %v507
        %v1364 = vunpack.c.h.b16 %v507
        %v1365 = vunpack.c.l.b16 %v508
        %v1366 = vunpack.c.h.b16 %v508
        %v1367 = vunpack.c.l.b16 %v509
        %v1368 = vunpack.c.h.b16 %v509
        %v1369 = vunpack.c.l.b16 %v510
        %v1370 = vunpack.c.h.b16 %v510
        %v1371 = vunpack.c.l.b16 %v511
        %v1372 = vunpack.c.h.b16 %v511
        %v1373 = vunpack.c.l.b16 %v512
        %v1374 = vunpack.c.h.b16 %v512
        %v1375 = vunpack.c.l.b16 %v513
        %v1376 = vunpack.c.h.b16 %v513
        %v1377 = vunpack.c.l.b16 %v514
        %v1378 = vunpack.c.h.b16 %v514
        %v1379 = vunpack.c.l.b16 %v515
        %v1380 = vunpack.c.h.b16 %v515
        %v1381 = vunpack.c.l.b16 %v516
        %v1382 = vunpack.c.h.b16 %v516
        %v1383 = vunpack.c.l.b16 %v517
        %v1384 = vunpack.c.h.b16 %v517
        %v1385 = vunpack.c.l.b16 %v518
        %v1386 = vunpack.c.h.b16 %v518
        %v1387 = vunpack.c.l.b16 %v519
        %v1388 = vunpack.c.h.b16 %v519
        %v1389 = vunpack.c.l.b16 %v520
        %v1390 = vunpack.c.h.b16 %v520
        %v1391 = vunpack.c.l.b16 %v521
        %v1392 = vunpack.c.h.b16 %v521
        %v1393 = vunpack.c.l.b16 %v522
        %v1394 = vunpack.c.h.b16 %v522
        %v1395 = vunpack.c.l.b16 %v523
        %v1396 = vunpack.c.h.b16 %v523
        %v1397 = vunpack.c.l.b16 %v524
        %v1398 = vunpack.c.h.b16 %v524
        %v1399 = vunpack.c.l.b16 %v525
        %v1400 = vunpack.c.h.b16 %v525
        %v1401 = vunpack.c.l.b16 %v526
        %v1402 = vunpack.c.h.b16 %v526
        %v1403 = vunpack.c.l.b16 %v527
        %v1404 = vunpack.c.h.b16 %v527
        %v1405 = vunpack.c.l.b16 %v528
        %v1406 = vunpack.c.h.b16 %v528
        %v1407 = vunpack.c.l.b16 %v529
        %v1408 = vunpack.c.h.b16 %v529
        %v1409 = vunpack.c.l.b16 %v530
        %v1410 = vunpack.c.h.b16 %v530
        %v1411 = vunpack.c.l.b16 %v531
        %v1412 = vunpack.c.h.b16 %v531
        %v1413 = vunpack.c.l.b16 %v532
        %v1414 = vunpack.c.h.b16 %v532
        %v1415 = vunpack.c.l.b16 %v533
        %v1416 = vunpack.c.h.b16 %v533
        %v1417 = vunpack.c.l.b16 %v534
        %v1418 = vunpack.c.h.b16 %v534
        %v1419 = vunpack.c.l.b16 %v535
        %v1420 = vunpack.c.h.b16 %v535
        %v1421 = vunpack.c.l.b16 %v536
        %v1422 = vunpack.c.h.b16 %v536
        %v1423 = vunpack.c.l.b16 %v537
        %v1424 = vunpack.c.h.b16 %v537
        %v1425 = vunpack.c.l.b16 %v538
        %v1426 = vunpack.c.h.b16 %v538
        %v1427 = vunpack.c.l.b16 %v539
        %v1428 = vunpack.c.h.b16 %v539
        %v1429 = vunpack.c.l.b16 %v540
        %v1430 = vunpack.c.h.b16 %v540
        %v1431 = vunpack.c.l.b16 %v541
        %v1432 = vunpack.c.h.b16 %v541
        %v1433 = vunpack.c.l.b16 %v542
        %v1434 = vunpack.c.h.b16 %v542
        %v1435 = vunpack.c.l.b16 %v543
        %v1436 = vunpack.c.h.b16 %v543
        %v1437 = vunpack.c.l.b16 %v544
        %v1438 = vunpack.c.h.b16 %v544
        %v1439 = vunpack.c.l.b16 %v545
        %v1440 = vunpack.c.h.b16 %v545
        %v1441 = vunpack.c.l.b16 %v546
        %v1442 = vunpack.c.h.b16 %v546
        %v1443 = vunpack.c.l.b16 %v547
        %v1444 = vunpack.c.h.b16 %v547
        %v1445 = vunpack.c.l.b16 %v548
        %v1446 = vunpack.c.h.b16 %v548
        %v1447 = vunpack.c.l.b16 %v549
        %v1448 = vunpack.c.h.b16 %v549
        %v1449 = vunpack.c.l.b16 %v550
        %v1450 = vunpack.c.h.b16 %v550
        %v1451 = vunpack.c.l.b16 %v551
        %v1452 = vunpack.c.h.b16 %v551
        %v1453 = vunpack.c.l.b16 %v552
        %v1454 = vunpack.c.h.b16 %v552
        %v1455 = vunpack.c.l.b16 %v553
        %v1456 = vunpack.c.h.b16 %v553
        %v1457 = vunpack.c.l.b16 %v554
        %v1458 = vunpack.c.h.b16 %v554
        %v1459 = vunpack.c.l.b16 %v555
        %v1460 = vunpack.c.h.b16 %v555
        %v1461 = vunpack.c.l.b16 %v556
        %v1462 = vunpack.c.h.b16 %v556
        %v1463 = vunpack.c.l.b16 %v557
        %v1464 = vunpack.c.h.b16 %v557
        %v1465 = vunpack.c.l.b16 %v558
        %v1466 = vunpack.c.h.b16 %v558
        %v1467 = vunpack.c.l.b16 %v559
        %v1468 = vunpack.c.h.b16 %v559
        %v1469 = vunpack.c.l.b16 %v560
        %v1470 = vunpack.c.h.b16 %v560
        %v1471 = vunpack.c.l.b16 %v561
        %v1472 = vunpack.c.h.b16 %v561
        %v1473 = vunpack.c.l.b16 %v562
        %v1474 = vunpack.c.h.b16 %v562
        %v1475 = vunpack.c.l.b16 %v563
        %v1476 = vunpack.c.h.b16 %v563
        %v1477 = vunpack.c.l.b16 %v564
        %v1478 = vunpack.c.h.b16 %v564
        %v1479 = vunpack.c.l.b16 %v565
        %v1480 = vunpack.c.h.b16 %v565
        %v1481 = vunpack.c.l.b16 %v566
        %v1482 = vunpack.c.h.b16 %v566
        %v1483 = vunpack.c.l.b16 %v567
        %v1484 = vunpack.c.h.b16 %v567
        %v1485 = vunpack.c.l.b16 %v568
        %v1486 = vunpack.c.h.b16 %v568
        %v1487 = vunpack.c.l.b16 %v569
        %v1488 = vunpack.c.h.b16 %v569
        %v1489 = vunpack.c.l.b16 %v570
        %v1490 = vunpack.c.h.b16 %v570
        %v1491 = vunpack.c.l.b16 %v571
        %v1492 = vunpack.c.h.b16 %v571
        %v1493 = vunpack.c.l.b16 %v572
        %v1494 = vunpack.c.h.b16 %v572
        %v1495 = vunpack.c.l.b16 %v573
        %v1496 = vunpack.c.h.b16 %v573
        %v1497 = vunpack.c.l.b16 %v574
        %v1498 = vunpack.c.h.b16 %v574
        %v1499 = vunpack.c.l.b16 %v575
        %v1500 = vunpack.c.h.b16 %v575
        %v1501 = vunpack.c.l.b16 %v576
        %v1502 = vunpack.c.h.b16 %v576
        %v1503 = vunpack.c.l.b16 %v577
        %v1504 = vunpack.c.h.b16 %v577
        %v1505 = vunpack.c.l.b16 %v578
        %v1506 = vunpack.c.h.b16 %v578
        %v1507 = vunpack.c.l.b16 %v579
        %v1508 = vunpack.c.h.b16 %v579
        %v1509 = vunpack.c.l.b16 %v580
        %v1510 = vunpack.c.h.b16 %v580
        %v1511 = vunpack.c.l.b16 %v581
        %v1512 = vunpack.c.h.b16 %v581
        %v1513 = vunpack.c.l.b16 %v582
        %v1514 = vunpack.c.h.b16 %v582
        %v1515 = vunpack.c.l.b16 %v583
        %v1516 = vunpack.c.h.b16 %v583
        %v1517 = vunpack.c.l.b16 %v584
        %v1518 = vunpack.c.h.b16 %v584
        %v1519 = vunpack.c.l.b16 %v585
        %v1520 = vunpack.c.h.b16 %v585
        %v1521 = vunpack.c.l.b16 %v586
        %v1522 = vunpack.c.h.b16 %v586
        %v1523 = vunpack.c.l.b16 %v587
        %v1524 = vunpack.c.h.b16 %v587
        %v1525 = vunpack.c.l.b16 %v588
        %v1526 = vunpack.c.h.b16 %v588
        %v1527 = vunpack.c.l.b16 %v589
        %v1528 = vunpack.c.h.b16 %v589
        %v1529 = vunpack.c.l.b16 %v590
        %v1530 = vunpack.c.h.b16 %v590
        %v1531 = vunpack.c.l.b16 %v591
        %v1532 = vunpack.c.h.b16 %v591
        %v1533 = vunpack.c.l.b16 %v592
        %v1534 = vunpack.c.h.b16 %v592
        %v1535 = vunpack.c.l.b16 %v593
        %v1536 = vunpack.c.h.b16 %v593
        %v1537 = vunpack.c.l.b16 %v594
        %v1538 = vunpack.c.h.b16 %v594
        %v1539 = vunpack.c.l.b16 %v595
        %v1540 = vunpack.c.h.b16 %v595
        %v1541 = vunpack.c.l.b16 %v596
        %v1542 = vunpack.c.h.b16 %v596
        %v1543 = vunpack.c.l.b16 %v597
        %v1544 = vunpack.c.h.b16 %v597
        %v1545 = vunpack.c.l.b16 %v598
        %v1546 = vunpack.c.h.b16 %v598
        %v1547 = vunpack.c.l.b16 %v599
        %v1548 = vunpack.c.h.b16 %v599
        %v1549 = vunpack.c.l.b16 %v600
        %v1550 = vunpack.c.h.b16 %v600
        %v1551 = vunpack.c.l.b16 %v601
        %v1552 = vunpack.c.h.b16 %v601
        %v1553 = vunpack.c.l.b16 %v602
        %v1554 = vunpack.c.h.b16 %v602
        %v1555 = vunpack.c.l.b16 %v603
        %v1556 = vunpack.c.h.b16 %v603
        %v1557 = vunpack.c.l.b16 %v604
        %v1558 = vunpack.c.h.b16 %v604
        %v1559 = vunpack.c.l.b16 %v605
        %v1560 = vunpack.c.h.b16 %v605
        %v1561 = vunpack.c.l.b16 %v606
        %v1562 = vunpack.c.h.b16 %v606
        %v1563 = vunpack.c.l.b16 %v607
        %v1564 = vunpack.c.h.b16 %v607
        %v1565 = vunpack.c.l.b16 %v608
        %v1566 = vunpack.c.h.b16 %v608
        %v1567 = vunpack.c.l.b16 %v609
        %v1568 = vunpack.c.h.b16 %v609
        %v1569 = vunpack.c.l.b16 %v610
        %v1570 = vunpack.c.h.b16 %v610
        %v1571 = vunpack.c.l.b16 %v611
        %v1572 = vunpack.c.h.b16 %v611
        %v1573 = vunpack.c.l.b16 %v612
        %v1574 = vunpack.c.h.b16 %v612
        %v1575 = vunpack.c.l.b16 %v613
        %v1576 = vunpack.c.h.b16 %v613
        %v1577 = vunpack.c.l.b16 %v614
        %v1578 = vunpack.c.h.b16 %v614
        %v1579 = vunpack.c.l.b16 %v615
        %v1580 = vunpack.c.h.b16 %v615
        %v1581 = vunpack.c.l.b16 %v616
        %v1582 = vunpack.c.h.b16 %v616
        %v1583 = vunpack.c.l.b16 %v617
        %v1584 = vunpack.c.h.b16 %v617
        %v1585 = vunpack.c.l.b16 %v618
        %v1586 = vunpack.c.h.b16 %v618
        %v1587 = vunpack.c.l.b16 %v619
        %v1588 = vunpack.c.h.b16 %v619
        %v1589 = vunpack.c.l.b16 %v620
        %v1590 = vunpack.c.h.b16 %v620
        %v1591 = vunpack.c.l.b16 %v621
        %v1592 = vunpack.c.h.b16 %v621
        %v1593 = vunpack.c.l.b16 %v622
        %v1594 = vunpack.c.h.b16 %v622
        %v1595 = vunpack.c.l.b16 %v623
        %v1596 = vunpack.c.h.b16 %v623
        %v1597 = vunpack.c.l.b16 %v624
        %v1598 = vunpack.c.h.b16 %v624
        %v1599 = vunpack.c.l.b16 %v625
        %v1600 = vunpack.c.h.b16 %v625
        %v1601 = vunpack.c.l.b16 %v626
        %v1602 = vunpack.c.h.b16 %v626
        %v1603 = vunpack.c.l.b16 %v627
        %v1604 = vunpack.c.h.b16 %v627
        %v1605 = vunpack.c.l.b16 %v628
        %v1606 = vunpack.c.h.b16 %v628
        %v1607 = vunpack.c.l.b16 %v629
        %v1608 = vunpack.c.h.b16 %v629
        %v1609 = vunpack.c.l.b16 %v630
        %v1610 = vunpack.c.h.b16 %v630
        %v1611 = vunpack.c.l.b16 %v631
        %v1612 = vunpack.c.h.b16 %v631
        %v1613 = vunpack.c.l.b16 %v632
        %v1614 = vunpack.c.h.b16 %v632
        %v1615 = vpack.c.b16 %v1171, %v1167
        %v1616 = vpack.c.b16 %v1172, %v1168
        %v1617 = vpack.c.b16 %v1173, %v1169
        %v1618 = vpack.c.b16 %v1174, %v1170
        %v1619 = vpack.c.b16 %v1179, %v1175
        %v1620 = vpack.c.b16 %v1180, %v1176
        %v1621 = vpack.c.b16 %v1181, %v1177
        %v1622 = vpack.c.b16 %v1182, %v1178
        %v1623 = vpack.c.b16 %v1187, %v1183
        %v1624 = vpack.c.b16 %v1188, %v1184
        %v1625 = vpack.c.b16 %v1189, %v1185
        %v1626 = vpack.c.b16 %v1190, %v1186
        %v1627 = vpack.c.b16 %v1195, %v1191
        %v1628 = vpack.c.b16 %v1196, %v1192
        %v1629 = vpack.c.b16 %v1197, %v1193
        %v1630 = vpack.c.b16 %v1198, %v1194
        %v1631 = vpack.c.b16 %v1203, %v1199
        %v1632 = vpack.c.b16 %v1204, %v1200
        %v1633 = vpack.c.b16 %v1205, %v1201
        %v1634 = vpack.c.b16 %v1206, %v1202
        %v1635 = vpack.c.b16 %v1211, %v1207
        %v1636 = vpack.c.b16 %v1212, %v1208
        %v1637 = vpack.c.b16 %v1213, %v1209
        %v1638 = vpack.c.b16 %v1214, %v1210
        %v1639 = vpack.c.b16 %v1219, %v1215
        %v1640 = vpack.c.b16 %v1220, %v1216
        %v1641 = vpack.c.b16 %v1221, %v1217
        %v1642 = vpack.c.b16 %v1222, %v1218
        %v1643 = vpack.c.b16 %v1227, %v1223
        %v1644 = vpack.c.b16 %v1228, %v1224
        %v1645 = vpack.c.b16 %v1229, %v1225
        %v1646 = vpack.c.b16 %v1230, %v1226
        %v1647 = vpack.c.b16 %v1235, %v1231
        %v1648 = vpack.c.b16 %v1236, %v1232
        %v1649 = vpack.c.b16 %v1237, %v1233
        %v1650 = vpack.c.b16 %v1238, %v1234
        %v1651 = vpack.c.b16 %v1243, %v1239
        %v1652 = vpack.c.b16 %v1244, %v1240
        %v1653 = vpack.c.b16 %v1245, %v1241
        %v1654 = vpack.c.b16 %v1246, %v1242
        %v1655 = vpack.c.b16 %v1251, %v1247
        %v1656 = vpack.c.b16 %v1252, %v1248
        %v1657 = vpack.c.b16 %v1253, %v1249
        %v1658 = vpack.c.b16 %v1254, %v1250
        %v1659 = vpack.c.b16 %v1259, %v1255
        %v1660 = vpack.c.b16 %v1260, %v1256
        %v1661 = vpack.c.b16 %v1261, %v1257
        %v1662 = vpack.c.b16 %v1262, %v1258
        %v1663 = vpack.c.b16 %v1267, %v1263
        %v1664 = vpack.c.b16 %v1268, %v1264
        %v1665 = vpack.c.b16 %v1269, %v1265
        %v1666 = vpack.c.b16 %v1270, %v1266
        %v1667 = vpack.c.b16 %v1275, %v1271
        %v1668 = vpack.c.b16 %v1276, %v1272
        %v1669 = vpack.c.b16 %v1277, %v1273
        %v1670 = vpack.c.b16 %v1278, %v1274
        %v1671 = vpack.c.b16 %v1283, %v1279
        %v1672 = vpack.c.b16 %v1284, %v1280
        %v1673 = vpack.c.b16 %v1285, %v1281
        %v1674 = vpack.c.b16 %v1286, %v1282
        %v1675 = vpack.c.b16 %v1291, %v1287
        %v1676 = vpack.c.b16 %v1292, %v1288
        %v1677 = vpack.c.b16 %v1293, %v1289
        %v1678 = vpack.c.b16 %v1294, %v1290
        %v1679 = vpack.c.b16 %v1299, %v1295
        %v1680 = vpack.c.b16 %v1300, %v1296
        %v1681 = vpack.c.b16 %v1301, %v1297
        %v1682 = vpack.c.b16 %v1302, %v1298
        %v1683 = vpack.c.b16 %v1307, %v1303
        %v1684 = vpack.c.b16 %v1308, %v1304
        %v1685 = vpack.c.b16 %v1309, %v1305
        %v1686 = vpack.c.b16 %v1310, %v1306
        %v1687 = vpack.c.b16 %v1315, %v1311
        %v1688 = vpack.c.b16 %v1316, %v1312
        %v1689 = vpack.c.b16 %v1317, %v1313
        %v1690 = vpack.c.b16 %v1318, %v1314
        %v1691 = vpack.c.b16 %v1323, %v1319
        %v1692 = vpack.c.b16 %v1324, %v1320
        %v1693 = vpack.c.b16 %v1325, %v1321
        %v1694 = vpack.c.b16 %v1326, %v1322
        %v1695 = vpack.c.b16 %v1331, %v1327
        %v1696 = vpack.c.b16 %v1332, %v1328
        %v1697 = vpack.c.b16 %v1333, %v1329
        %v1698 = vpack.c.b16 %v1334, %v1330
        %v1699 = vpack.c.b16 %v1339, %v1335
        %v1700 = vpack.c.b16 %v1340, %v1336
        %v1701 = vpack.c.b16 %v1341, %v1337
        %v1702 = vpack.c.b16 %v1342, %v1338
        %v1703 = vpack.c.b16 %v1347, %v1343
        %v1704 = vpack.c.b16 %v1348, %v1344
        %v1705 = vpack.c.b16 %v1349, %v1345
        %v1706 = vpack.c.b16 %v1350, %v1346
        %v1707 = vpack.c.b16 %v1355, %v1351
        %v1708 = vpack.c.b16 %v1356, %v1352
        %v1709 = vpack.c.b16 %v1357, %v1353
        %v1710 = vpack.c.b16 %v1358, %v1354
        %v1711 = vpack.c.b16 %v1363, %v1359
        %v1712 = vpack.c.b16 %v1364, %v1360
        %v1713 = vpack.c.b16 %v1365, %v1361
        %v1714 = vpack.c.b16 %v1366, %v1362
        %v1715 = vpack.c.b16 %v1371, %v1367
        %v1716 = vpack.c.b16 %v1372, %v1368
        %v1717 = vpack.c.b16 %v1373, %v1369
        %v1718 = vpack.c.b16 %v1374, %v1370
        %v1719 = vpack.c.b16 %v1379, %v1375
        %v1720 = vpack.c.b16 %v1380, %v1376
        %v1721 = vpack.c.b16 %v1381, %v1377
        %v1722 = vpack.c.b16 %v1382, %v1378
        %v1723 = vpack.c.b16 %v1387, %v1383
        %v1724 = vpack.c.b16 %v1388, %v1384
        %v1725 = vpack.c.b16 %v1389, %v1385
        %v1726 = vpack.c.b16 %v1390, %v1386
        %v1727 = vpack.c.b16 %v1395, %v1391
        %v1728 = vpack.c.b16 %v1396, %v1392
        %v1729 = vpack.c.b16 %v1397, %v1393
        %v1730 = vpack.c.b16 %v1398, %v1394
        %v1731 = vpack.c.b16 %v1403, %v1399
        %v1732 = vpack.c.b16 %v1404, %v1400
        %v1733 = vpack.c.b16 %v1405, %v1401
        %v1734 = vpack.c.b16 %v1406, %v1402
        %v1735 = vpack.c.b16 %v1411, %v1407
        %v1736 = vpack.c.b16 %v1412, %v1408
        %v1737 = vpack.c.b16 %v1413, %v1409
        %v1738 = vpack.c.b16 %v1414, %v1410
        %v1739 = vpack.c.b16 %v1419, %v1415
        %v1740 = vpack.c.b16 %v1420, %v1416
        %v1741 = vpack.c.b16 %v1421, %v1417
        %v1742 = vpack.c.b16 %v1422, %v1418
        %v1743 = vpack.c.b16 %v1427, %v1423
        %v1744 = vpack.c.b16 %v1428, %v1424
        %v1745 = vpack.c.b16 %v1429, %v1425
        %v1746 = vpack.c.b16 %v1430, %v1426
        %v1747 = vpack.c.b16 %v1435, %v1431
        %v1748 = vpack.c.b16 %v1436, %v1432
        %v1749 = vpack.c.b16 %v1437, %v1433
        %v1750 = vpack.c.b16 %v1438, %v1434
        %v1751 = vpack.c.b16 %v1443, %v1439
        %v1752 = vpack.c.b16 %v1444, %v1440
        %v1753 = vpack.c.b16 %v1445, %v1441
        %v1754 = vpack.c.b16 %v1446, %v1442
        %v1755 = vpack.c.b16 %v1451, %v1447
        %v1756 = vpack.c.b16 %v1452, %v1448
        %v1757 = vpack.c.b16 %v1453, %v1449
        %v1758 = vpack.c.b16 %v1454, %v1450
        %v1759 = vpack.c.b16 %v1459, %v1455
        %v1760 = vpack.c.b16 %v1460, %v1456
        %v1761 = vpack.c.b16 %v1461, %v1457
        %v1762 = vpack.c.b16 %v1462, %v1458
        %v1763 = vpack.c.b16 %v1467, %v1463
        %v1764 = vpack.c.b16 %v1468, %v1464
        %v1765 = vpack.c.b16 %v1469, %v1465
        %v1766 = vpack.c.b16 %v1470, %v1466
        %v1767 = vpack.c.b16 %v1475, %v1471
        %v1768 = vpack.c.b16 %v1476, %v1472
        %v1769 = vpack.c.b16 %v1477, %v1473
        %v1770 = vpack.c.b16 %v1478, %v1474
        %v1771 = vpack.c.b16 %v1483, %v1479
        %v1772 = vpack.c.b16 %v1484, %v1480
        %v1773 = vpack.c.b16 %v1485, %v1481
        %v1774 = vpack.c.b16 %v1486, %v1482
        %v1775 = vpack.c.b16 %v1491, %v1487
        %v1776 = vpack.c.b16 %v1492, %v1488
        %v1777 = vpack.c.b16 %v1493, %v1489
        %v1778 = vpack.c.b16 %v1494, %v1490
        %v1779 = vpack.c.b16 %v1499, %v1495
        %v1780 = vpack.c.b16 %v1500, %v1496
        %v1781 = vpack.c.b16 %v1501, %v1497
        %v1782 = vpack.c.b16 %v1502, %v1498
        %v1783 = vpack.c.b16 %v1507, %v1503
        %v1784 = vpack.c.b16 %v1508, %v1504
        %v1785 = vpack.c.b16 %v1509, %v1505
        %v1786 = vpack.c.b16 %v1510, %v1506
        %v1787 = vpack.c.b16 %v1515, %v1511
        %v1788 = vpack.c.b16 %v1516, %v1512
        %v1789 = vpack.c.b16 %v1517, %v1513
        %v1790 = vpack.c.b16 %v1518, %v1514
        %v1791 = vpack.c.b16 %v1523, %v1519
        %v1792 = vpack.c.b16 %v1524, %v1520
        %v1793 = vpack.c.b16 %v1525, %v1521
        %v1794 = vpack.c.b16 %v1526, %v1522
        %v1795 = vpack.c.b16 %v1531, %v1527
        %v1796 = vpack.c.b16 %v1532, %v1528
        %v1797 = vpack.c.b16 %v1533, %v1529
        %v1798 = vpack.c.b16 %v1534, %v1530
        %v1799 = vpack.c.b16 %v1539, %v1535
        %v1800 = vpack.c.b16 %v1540, %v1536
        %v1801 = vpack.c.b16 %v1541, %v1537
        %v1802 = vpack.c.b16 %v1542, %v1538
        %v1803 = vpack.c.b16 %v1547, %v1543
        %v1804 = vpack.c.b16 %v1548, %v1544
        %v1805 = vpack.c.b16 %v1549, %v1545
        %v1806 = vpack.c.b16 %v1550, %v1546
        %v1807 = vpack.c.b16 %v1555, %v1551
        %v1808 = vpack.c.b16 %v1556, %v1552
        %v1809 = vpack.c.b16 %v1557, %v1553
        %v1810 = vpack.c.b16 %v1558, %v1554
        %v1811 = vpack.c.b16 %v1563, %v1559
        %v1812 = vpack.c.b16 %v1564, %v1560
        %v1813 = vpack.c.b16 %v1565, %v1561
        %v1814 = vpack.c.b16 %v1566, %v1562
        %v1815 = vpack.c.b16 %v1571, %v1567
        %v1816 = vpack.c.b16 %v1572, %v1568
        %v1817 = vpack.c.b16 %v1573, %v1569
        %v1818 = vpack.c.b16 %v1574, %v1570
        %v1819 = vpack.c.b16 %v1579, %v1575
        %v1820 = vpack.c.b16 %v1580, %v1576
        %v1821 = vpack.c.b16 %v1581, %v1577
        %v1822 = vpack.c.b16 %v1582, %v1578
        %v1823 = vpack.c.b16 %v1587, %v1583
        %v1824 = vpack.c.b16 %v1588, %v1584
        %v1825 = vpack.c.b16 %v1589, %v1585
        %v1826 = vpack.c.b16 %v1590, %v1586
        %v1827 = vpack.c.b16 %v1595, %v1591
        %v1828 = vpack.c.b16 %v1596, %v1592
        %v1829 = vpack.c.b16 %v1597, %v1593
        %v1830 = vpack.c.b16 %v1598, %v1594
        %v1831 = vpack.c.b16 %v1603, %v1599
        %v1832 = vpack.c.b16 %v1604, %v1600
        %v1833 = vpack.c.b16 %v1605, %v1601
        %v1834 = vpack.c.b16 %v1606, %v1602
        %v1835 = vpack.c.b16 %v1611, %v1607
        %v1836 = vpack.c.b16 %v1612, %v1608
        %v1837 = vpack.c.b16 %v1613, %v1609
        %v1838 = vpack.c.b16 %v1614, %v1610
        %2063 = vmatprep.subr.bf16.mxu0 %v1616
        %2064 = vmatpush1.bf16.msra.mxu0 %v1615
        %2065 = vmatprep.subr.bf16.mxu0 %v1620
        %2066 = vmatpush1.bf16.msra.mxu0 %v1619
        %2067 = vmatprep.subr.bf16.mxu0 %v1624
        %2068 = vmatpush1.bf16.msra.mxu0 %v1623
        %2069 = vmatprep.subr.bf16.mxu0 %v1628
        %2070 = vmatpush1.bf16.msra.mxu0 %v1627
        %2071 = vmatprep.subr.bf16.mxu0 %v1632
        %2072 = vmatpush1.bf16.msra.mxu0 %v1631
        %2073 = vmatprep.subr.bf16.mxu0 %v1636
        %2074 = vmatpush1.bf16.msra.mxu0 %v1635
        %2075 = vmatprep.subr.bf16.mxu0 %v1640
        %2076 = vmatpush1.bf16.msra.mxu0 %v1639
        %2077 = vmatprep.subr.bf16.mxu0 %v1644
        %2078 = vmatpush1.bf16.msra.mxu0 %v1643
        %2079 = vmatprep.subr.bf16.mxu0 %v1648
        %2080 = vmatpush1.bf16.msra.mxu0 %v1647
        %2081 = vmatprep.subr.bf16.mxu0 %v1652
        %2082 = vmatpush1.bf16.msra.mxu0 %v1651
        %2083 = vmatprep.subr.bf16.mxu0 %v1656
        %2084 = vmatpush1.bf16.msra.mxu0 %v1655
        %2085 = vmatprep.subr.bf16.mxu0 %v1660
        %2086 = vmatpush1.bf16.msra.mxu0 %v1659
        %2087 = vmatprep.subr.bf16.mxu0 %v1664
        %2088 = vmatpush1.bf16.msra.mxu0 %v1663
        %2089 = vmatprep.subr.bf16.mxu0 %v1668
        %2090 = vmatpush1.bf16.msra.mxu0 %v1667
        %2091 = vmatprep.subr.bf16.mxu0 %v1672
        %2092 = vmatpush1.bf16.msra.mxu0 %v1671
        %2093 = vmatprep.subr.bf16.mxu0 %v1676
        %2094 = vmatpush1.bf16.msra.mxu0 %v1675
        %2095 = vmatprep.mubr.bf16.mxu0 %v832
        %2096 = vmatmul.mubr.bf16.gmra.mrb[0].mxu0 %v831
        %v2097 = vpop.f32.mrb[0].mxu0
        %v2098 = vadd.f32 %v638, %v2097
        %v2099 = vpop.f32.mrb[0].mxu0
        %v2100 = vadd.f32 %v642, %v2099
        %v2101 = vpop.f32.mrb[0].mxu0
        %v2102 = vadd.f32 %v638, %v2101
        %v2103 = vpop.f32.mrb[0].mxu0
        %v2104 = vadd.f32 %v642, %v2103
        %2105 = vmatprep.mubr.bf16.mxu0 %v839
        %2106 = vmatmul.mubr.bf16.gmra.mrb[0].mxu0 %v838
        %v2107 = vpop.f32.mrb[0].mxu0
        %v2108 = vadd.f32 %v638, %v2107
        %v2109 = vpop.f32.mrb[0].mxu0
        %v2110 = vadd.f32 %v642, %v2109
        %v2111 = vpop.f32.mrb[0].mxu0
        %v2112 = vadd.f32 %v638, %v2111
        %v2113 = vpop.f32.mrb[0].mxu0
        %v2114 = vadd.f32 %v642, %v2113
        %2115 = vmatprep.mubr.bf16.mxu0 %v846
        %2116 = vmatmul.mubr.bf16.gmra.mrb[0].mxu0 %v845
        %v2117 = vpop.f32.mrb[0].mxu0
        %v2118 = vadd.f32 %v638, %v2117
        %v2119 = vpop.f32.mrb[0].mxu0
        %v2120 = vadd.f32 %v642, %v2119
        %v2121 = vpop.f32.mrb[0].mxu0
        %v2122 = vadd.f32 %v638, %v2121
        %v2123 = vpop.f32.mrb[0].mxu0
        %v2124 = vadd.f32 %v642, %v2123
        %2125 = vmatprep.mubr.bf16.mxu0 %v853
        %2126 = vmatmul.mubr.bf16.gmra.mrb[0].mxu0 %v852
        %v2127 = vpop.f32.mrb[0].mxu0
        %v2128 = vadd.f32 %v638, %v2127
        %v2129 = vpop.f32.mrb[0].mxu0
        %v2130 = vadd.f32 %v642, %v2129
        %v2131 = vpop.f32.mrb[0].mxu0
        %v2132 = vadd.f32 %v638, %v2131
        %v2133 = vpop.f32.mrb[0].mxu0
        %v2134 = vadd.f32 %v642, %v2133
        %2135 = vmatprep.mubr.bf16.mxu0 %v860
        %2136 = vmatmul.mubr.bf16.gmra.mrb[0].mxu0 %v859
        %v2137 = vpop.f32.mrb[0].mxu0
        %v2138 = vadd.f32 %v638, %v2137
        %v2139 = vpop.f32.mrb[0].mxu0
        %v2140 = vadd.f32 %v642, %v2139
        %v2141 = vpop.f32.mrb[0].mxu0
        %v2142 = vadd.f32 %v638, %v2141
        %v2143 = vpop.f32.mrb[0].mxu0
        %v2144 = vadd.f32 %v642, %v2143
        %2145 = vmatprep.mubr.bf16.mxu0 %v867
        %2146 = vmatmul.mubr.bf16.gmra.mrb[0].mxu0 %v866
        %v2147 = vpop.f32.mrb[0].mxu0
        %v2148 = vadd.f32 %v638, %v2147
        %v2149 = vpop.f32.mrb[0].mxu0
        %v2150 = vadd.f32 %v642, %v2149
        %v2151 = vpop.f32.mrb[0].mxu0
        %v2152 = vadd.f32 %v638, %v2151
        %v2153 = vpop.f32.mrb[0].mxu0
        %v2154 = vadd.f32 %v642, %v2153
        %2155 = vmatprep.mubr.bf16.mxu0 %v874
        %2156 = vmatmul.mubr.bf16.gmra.mrb[0].mxu0 %v873
        %v2157 = vpop.f32.mrb[0].mxu0
        %v2158 = vadd.f32 %v638, %v2157
        %v2159 = vpop.f32.mrb[0].mxu0
        %v2160 = vadd.f32 %v642, %v2159
        %v2161 = vpop.f32.mrb[0].mxu0
        %v2162 = vadd.f32 %v638, %v2161
        %v2163 = vpop.f32.mrb[0].mxu0
        %v2164 = vadd.f32 %v642, %v2163
        %2165 = vmatprep.mubr.bf16.mxu0 %v881
        %2166 = vmatmul.mubr.bf16.gmra.mrb[0].mxu0 %v880
        %v2167 = vpop.f32.mrb[0].mxu0
        %v2168 = vadd.f32 %v638, %v2167
        %v2169 = vpop.f32.mrb[0].mxu0
        %v2170 = vadd.f32 %v642, %v2169
        %v2171 = vpop.f32.mrb[0].mxu0
        %v2172 = vadd.f32 %v638, %v2171
        %v2173 = vpop.f32.mrb[0].mxu0
        %v2174 = vadd.f32 %v642, %v2173
        %2175 = vdwg.mxu0
        %2176 = vmatprep.subr.bf16.mxu0 %v1680
        %2177 = vmatpush1.bf16.msra.mxu0 %v1679
        %2178 = vmatprep.subr.bf16.mxu0 %v1684
        %2179 = vmatpush1.bf16.msra.mxu0 %v1683
        %2180 = vmatprep.subr.bf16.mxu0 %v1688
        %2181 = vmatpush1.bf16.msra.mxu0 %v1687
        %2182 = vmatprep.subr.bf16.mxu0 %v1692
        %2183 = vmatpush1.bf16.msra.mxu0 %v1691
        %2184 = vmatprep.subr.bf16.mxu0 %v1696
        %2185 = vmatpush1.bf16.msra.mxu0 %v1695
        %2186 = vmatprep.subr.bf16.mxu0 %v1700
        %2187 = vmatpush1.bf16.msra.mxu0 %v1699
        %2188 = vmatprep.subr.bf16.mxu0 %v1704
        %2189 = vmatpush1.bf16.msra.mxu0 %v1703
        %2190 = vmatprep.subr.bf16.mxu0 %v1708
        %2191 = vmatpush1.bf16.msra.mxu0 %v1707
        %2192 = vmatprep.subr.bf16.mxu0 %v1712
        %2193 = vmatpush1.bf16.msra.mxu0 %v1711
        %2194 = vmatprep.subr.bf16.mxu0 %v1716
        %2195 = vmatpush1.bf16.msra.mxu0 %v1715
        %2196 = vmatprep.subr.bf16.mxu0 %v1720
        %2197 = vmatpush1.bf16.msra.mxu0 %v1719
        %2198 = vmatprep.subr.bf16.mxu0 %v1724
        %2199 = vmatpush1.bf16.msra.mxu0 %v1723
        %2200 = vmatprep.subr.bf16.mxu0 %v1728
        %2201 = vmatpush1.bf16.msra.mxu0 %v1727
        %2202 = vmatprep.subr.bf16.mxu0 %v1732
        %2203 = vmatpush1.bf16.msra.mxu0 %v1731
        %2204 = vmatprep.subr.bf16.mxu0 %v1736
        %2205 = vmatpush1.bf16.msra.mxu0 %v1735
        %2206 = vmatprep.subr.bf16.mxu0 %v1740
        %2207 = vmatpush1.bf16.msra.mxu0 %v1739
        %2208 = vmatprep.mubr.bf16.mxu0 %v834
        %2209 = vmatmul.mubr.bf16.gmra.mrb[0].mxu0 %v833
        %v2210 = vpop.f32.mrb[0].mxu0
        %v2211 = vadd.f32 %v2098, %v2210
        %v2212 = vpop.f32.mrb[0].mxu0
        %v2213 = vadd.f32 %v2100, %v2212
        %v2214 = vpop.f32.mrb[0].mxu0
        %v2215 = vadd.f32 %v2102, %v2214
        %v2216 = vpop.f32.mrb[0].mxu0
        %v2217 = vadd.f32 %v2104, %v2216
        %2218 = vmatprep.mubr.bf16.mxu0 %v841
        %2219 = vmatmul.mubr.bf16.gmra.mrb[0].mxu0 %v840
        %v2220 = vpop.f32.mrb[0].mxu0
        %v2221 = vadd.f32 %v2108, %v2220
        %v2222 = vpop.f32.mrb[0].mxu0
        %v2223 = vadd.f32 %v2110, %v2222
        %v2224 = vpop.f32.mrb[0].mxu0
        %v2225 = vadd.f32 %v2112, %v2224
        %v2226 = vpop.f32.mrb[0].mxu0
        %v2227 = vadd.f32 %v2114, %v2226
        %2228 = vmatprep.mubr.bf16.mxu0 %v848
        %2229 = vmatmul.mubr.bf16.gmra.mrb[0].mxu0 %v847
        %v2230 = vpop.f32.mrb[0].mxu0
        %v2231 = vadd.f32 %v2118, %v2230
        %v2232 = vpop.f32.mrb[0].mxu0
        %v2233 = vadd.f32 %v2120, %v2232
        %v2234 = vpop.f32.mrb[0].mxu0
        %v2235 = vadd.f32 %v2122, %v2234
        %v2236 = vpop.f32.mrb[0].mxu0
        %v2237 = vadd.f32 %v2124, %v2236
        %2238 = vmatprep.mubr.bf16.mxu0 %v855
        %2239 = vmatmul.mubr.bf16.gmra.mrb[0].mxu0 %v854
        %v2240 = vpop.f32.mrb[0].mxu0
        %v2241 = vadd.f32 %v2128, %v2240
        %v2242 = vpop.f32.mrb[0].mxu0
        %v2243 = vadd.f32 %v2130, %v2242
        %v2244 = vpop.f32.mrb[0].mxu0
        %v2245 = vadd.f32 %v2132, %v2244
        %v2246 = vpop.f32.mrb[0].mxu0
        %v2247 = vadd.f32 %v2134, %v2246
        %2248 = vmatprep.mubr.bf16.mxu0 %v862
        %2249 = vmatmul.mubr.bf16.gmra.mrb[0].mxu0 %v861
        %v2250 = vpop.f32.mrb[0].mxu0
        %v2251 = vadd.f32 %v2138, %v2250
        %v2252 = vpop.f32.mrb[0].mxu0
        %v2253 = vadd.f32 %v2140, %v2252
        %v2254 = vpop.f32.mrb[0].mxu0
        %v2255 = vadd.f32 %v2142, %v2254
        %v2256 = vpop.f32.mrb[0].mxu0
        %v2257 = vadd.f32 %v2144, %v2256
        %2258 = vmatprep.mubr.bf16.mxu0 %v869
        %2259 = vmatmul.mubr.bf16.gmra.mrb[0].mxu0 %v868
        %v2260 = vpop.f32.mrb[0].mxu0
        %v2261 = vadd.f32 %v2148, %v2260
        %v2262 = vpop.f32.mrb[0].mxu0
        %v2263 = vadd.f32 %v2150, %v2262
        %v2264 = vpop.f32.mrb[0].mxu0
        %v2265 = vadd.f32 %v2152, %v2264
        %v2266 = vpop.f32.mrb[0].mxu0
        %v2267 = vadd.f32 %v2154, %v2266
        %2268 = vmatprep.mubr.bf16.mxu0 %v876
        %2269 = vmatmul.mubr.bf16.gmra.mrb[0].mxu0 %v875
        %v2270 = vpop.f32.mrb[0].mxu0
        %v2271 = vadd.f32 %v2158, %v2270
        %v2272 = vpop.f32.mrb[0].mxu0
        %v2273 = vadd.f32 %v2160, %v2272
        %v2274 = vpop.f32.mrb[0].mxu0
        %v2275 = vadd.f32 %v2162, %v2274
        %v2276 = vpop.f32.mrb[0].mxu0
        %v2277 = vadd.f32 %v2164, %v2276
        %2278 = vmatprep.mubr.bf16.mxu0 %v883
        %2279 = vmatmul.mubr.bf16.gmra.mrb[0].mxu0 %v882
        %v2280 = vpop.f32.mrb[0].mxu0
        %v2281 = vadd.f32 %v2168, %v2280
        %v2282 = vpop.f32.mrb[0].mxu0
        %v2283 = vadd.f32 %v2170, %v2282
        %v2284 = vpop.f32.mrb[0].mxu0
        %v2285 = vadd.f32 %v2172, %v2284
        %v2286 = vpop.f32.mrb[0].mxu0
        %v2287 = vadd.f32 %v2174, %v2286
        %2288 = vdwg.mxu0
        %2289 = vmatprep.subr.bf16.mxu0 %v1744
        %2290 = vmatpush1.bf16.msra.mxu0 %v1743
        %2291 = vmatprep.subr.bf16.mxu0 %v1748
        %2292 = vmatpush1.bf16.msra.mxu0 %v1747
        %2293 = vmatprep.subr.bf16.mxu0 %v1752
        %2294 = vmatpush1.bf16.msra.mxu0 %v1751
        %2295 = vmatprep.subr.bf16.mxu0 %v1756
        %2296 = vmatpush1.bf16.msra.mxu0 %v1755
        %2297 = vmatprep.subr.bf16.mxu0 %v1760
        %2298 = vmatpush1.bf16.msra.mxu0 %v1759
        %2299 = vmatprep.subr.bf16.mxu0 %v1764
        %2300 = vmatpush1.bf16.msra.mxu0 %v1763
        %2301 = vmatprep.subr.bf16.mxu0 %v1768
        %2302 = vmatpush1.bf16.msra.mxu0 %v1767
        %2303 = vmatprep.subr.bf16.mxu0 %v1772
        %2304 = vmatpush1.bf16.msra.mxu0 %v1771
        %2305 = vmatprep.subr.bf16.mxu0 %v1776
        %2306 = vmatpush1.bf16.msra.mxu0 %v1775
        %2307 = vmatprep.subr.bf16.mxu0 %v1780
        %2308 = vmatpush1.bf16.msra.mxu0 %v1779
        %2309 = vmatprep.subr.bf16.mxu0 %v1784
        %2310 = vmatpush1.bf16.msra.mxu0 %v1783
        %2311 = vmatprep.subr.bf16.mxu0 %v1788
        %2312 = vmatpush1.bf16.msra.mxu0 %v1787
        %2313 = vmatprep.subr.bf16.mxu0 %v1792
        %2314 = vmatpush1.bf16.msra.mxu0 %v1791
        %2315 = vmatprep.subr.bf16.mxu0 %v1796
        %2316 = vmatpush1.bf16.msra.mxu0 %v1795
        %2317 = vmatprep.subr.bf16.mxu0 %v1800
        %2318 = vmatpush1.bf16.msra.mxu0 %v1799
        %2319 = vmatprep.subr.bf16.mxu0 %v1804
        %2320 = vmatpush1.bf16.msra.mxu0 %v1803
        %2321 = vmatprep.mubr.bf16.mxu0 %v836
        %2322 = vmatmul.mubr.bf16.gmra.mrb[0].mxu0 %v835
        %v2323 = vpop.f32.mrb[0].mxu0
        %v2324 = vadd.f32 %v2211, %v2323
        %v2325 = vpop.f32.mrb[0].mxu0
        %v2326 = vadd.f32 %v2213, %v2325
        %v2327 = vpop.f32.mrb[0].mxu0
        %v2328 = vadd.f32 %v2215, %v2327
        %v2329 = vpop.f32.mrb[0].mxu0
        %v2330 = vadd.f32 %v2217, %v2329
        %2331 = vmatprep.mubr.bf16.mxu0 %v843
        %2332 = vmatmul.mubr.bf16.gmra.mrb[0].mxu0 %v842
        %v2333 = vpop.f32.mrb[0].mxu0
        %v2334 = vadd.f32 %v2221, %v2333
        %v2335 = vpop.f32.mrb[0].mxu0
        %v2336 = vadd.f32 %v2223, %v2335
        %v2337 = vpop.f32.mrb[0].mxu0
        %v2338 = vadd.f32 %v2225, %v2337
        %v2339 = vpop.f32.mrb[0].mxu0
        %v2340 = vadd.f32 %v2227, %v2339
        %2341 = vmatprep.mubr.bf16.mxu0 %v850
        %2342 = vmatmul.mubr.bf16.gmra.mrb[0].mxu0 %v849
        %v2343 = vpop.f32.mrb[0].mxu0
        %v2344 = vadd.f32 %v2231, %v2343
        %v2345 = vpop.f32.mrb[0].mxu0
        %v2346 = vadd.f32 %v2233, %v2345
        %v2347 = vpop.f32.mrb[0].mxu0
        %v2348 = vadd.f32 %v2235, %v2347
        %v2349 = vpop.f32.mrb[0].mxu0
        %v2350 = vadd.f32 %v2237, %v2349
        %2351 = vmatprep.mubr.bf16.mxu0 %v857
        %2352 = vmatmul.mubr.bf16.gmra.mrb[0].mxu0 %v856
        %v2353 = vpop.f32.mrb[0].mxu0
        %v2354 = vadd.f32 %v2241, %v2353
        %v2355 = vpop.f32.mrb[0].mxu0
        %v2356 = vadd.f32 %v2243, %v2355
        %v2357 = vpop.f32.mrb[0].mxu0
        %v2358 = vadd.f32 %v2245, %v2357
        %v2359 = vpop.f32.mrb[0].mxu0
        %v2360 = vadd.f32 %v2247, %v2359
        %2361 = vmatprep.mubr.bf16.mxu0 %v864
        %2362 = vmatmul.mubr.bf16.gmra.mrb[0].mxu0 %v863
        %v2363 = vpop.f32.mrb[0].mxu0
        %v2364 = vadd.f32 %v2251, %v2363
        %v2365 = vpop.f32.mrb[0].mxu0
        %v2366 = vadd.f32 %v2253, %v2365
        %v2367 = vpop.f32.mrb[0].mxu0
        %v2368 = vadd.f32 %v2255, %v2367
        %v2369 = vpop.f32.mrb[0].mxu0
        %v2370 = vadd.f32 %v2257, %v2369
        %2371 = vmatprep.mubr.bf16.mxu0 %v871
        %2372 = vmatmul.mubr.bf16.gmra.mrb[0].mxu0 %v870
        %v2373 = vpop.f32.mrb[0].mxu0
        %v2374 = vadd.f32 %v2261, %v2373
        %v2375 = vpop.f32.mrb[0].mxu0
        %v2376 = vadd.f32 %v2263, %v2375
        %v2377 = vpop.f32.mrb[0].mxu0
        %v2378 = vadd.f32 %v2265, %v2377
        %v2379 = vpop.f32.mrb[0].mxu0
        %v2380 = vadd.f32 %v2267, %v2379
        %2381 = vmatprep.mubr.bf16.mxu0 %v878
        %2382 = vmatmul.mubr.bf16.gmra.mrb[0].mxu0 %v877
        %v2383 = vpop.f32.mrb[0].mxu0
        %v2384 = vadd.f32 %v2271, %v2383
        %v2385 = vpop.f32.mrb[0].mxu0
        %v2386 = vadd.f32 %v2273, %v2385
        %v2387 = vpop.f32.mrb[0].mxu0
        %v2388 = vadd.f32 %v2275, %v2387
        %v2389 = vpop.f32.mrb[0].mxu0
        %v2390 = vadd.f32 %v2277, %v2389
        %2391 = vmatprep.mubr.bf16.mxu0 %v885
        %2392 = vmatmul.mubr.bf16.gmra.mrb[0].mxu0 %v884
        %v2393 = vpop.f32.mrb[0].mxu0
        %v2394 = vadd.f32 %v2281, %v2393
        %v2395 = vpop.f32.mrb[0].mxu0
        %v2396 = vadd.f32 %v2283, %v2395
        %v2397 = vpop.f32.mrb[0].mxu0
        %v2398 = vadd.f32 %v2285, %v2397
        %v2399 = vpop.f32.mrb[0].mxu0
        %v2400 = vadd.f32 %v2287, %v2399
        %2401 = vdwg.mxu0
        %2402 = vmatprep.subr.bf16.mxu0 %v1808
        %2403 = vmatpush1.bf16.msra.mxu0 %v1807
        %2404 = vmatprep.subr.bf16.mxu0 %v1812
        %2405 = vmatpush1.bf16.msra.mxu0 %v1811
        %2406 = vmatprep.subr.bf16.mxu0 %v1816
        %2407 = vmatpush1.bf16.msra.mxu0 %v1815
        %2408 = vmatprep.subr.bf16.mxu0 %v1820
        %2409 = vmatpush1.bf16.msra.mxu0 %v1819
        %2410 = vmatprep.subr.bf16.mxu0 %v1824
        %2411 = vmatpush1.bf16.msra.mxu0 %v1823
        %2412 = vmatprep.subr.bf16.mxu0 %v1828
        %2413 = vmatpush1.bf16.msra.mxu0 %v1827
        %2414 = vmatprep.subr.bf16.mxu0 %v1832
        %2415 = vmatpush1.bf16.msra.mxu0 %v1831
        %2416 = vmatprep.subr.bf16.mxu0 %v1836
        %2417 = vmatpush1.bf16.msra.mxu0 %v1835
        %2418 = vmatprep.subr.bf16.mxu0 0
        %2419 = vmatpush1.bf16.msra.mxu0 0
        %2420 = vmatprep.subr.bf16.mxu0 0
        %2421 = vmatpush1.bf16.msra.mxu0 0
        %2422 = vmatprep.subr.bf16.mxu0 0
        %2423 = vmatpush1.bf16.msra.mxu0 0
        %2424 = vmatprep.subr.bf16.mxu0 0
        %2425 = vmatpush1.bf16.msra.mxu0 0
        %2426 = vmatprep.subr.bf16.mxu0 0
        %2427 = vmatpush1.bf16.msra.mxu0 0
        %2428 = vmatprep.subr.bf16.mxu0 0
        %2429 = vmatpush1.bf16.msra.mxu0 0
        %2430 = vmatprep.subr.bf16.mxu0 0
        %2431 = vmatpush1.bf16.msra.mxu0 0
        %2432 = vmatprep.subr.bf16.mxu0 0
        %2433 = vmatpush1.bf16.msra.mxu0 0
        %2434 = vmatprep.mubr.bf16.mxu0 0
        %2435 = vmatmul.mubr.bf16.gmra.mrb[0].mxu0 %v837
        %v2436 = vpop.f32.mrb[0].mxu0
        %v2437 = vadd.f32 %v2324, %v2436
        %v2438 = vpop.f32.mrb[0].mxu0
        %v2439 = vadd.f32 %v2326, %v2438
        %v2440 = vpop.f32.mrb[0].mxu0
        %v2441 = vadd.f32 %v2328, %v2440
        %v2442 = vpop.f32.mrb[0].mxu0
        %v2443 = vadd.f32 %v2330, %v2442
        %2444 = vmatprep.mubr.bf16.mxu0 0
        %2445 = vmatmul.mubr.bf16.gmra.mrb[0].mxu0 %v844
        %v2446 = vpop.f32.mrb[0].mxu0
        %v2447 = vadd.f32 %v2334, %v2446
        %v2448 = vpop.f32.mrb[0].mxu0
        %v2449 = vadd.f32 %v2336, %v2448
        %v2450 = vpop.f32.mrb[0].mxu0
        %v2451 = vadd.f32 %v2338, %v2450
        %v2452 = vpop.f32.mrb[0].mxu0
        %v2453 = vadd.f32 %v2340, %v2452
        %2454 = vmatprep.mubr.bf16.mxu0 0
        %2455 = vmatmul.mubr.bf16.gmra.mrb[0].mxu0 %v851
        %v2456 = vpop.f32.mrb[0].mxu0
        %v2457 = vadd.f32 %v2344, %v2456
        %v2458 = vpop.f32.mrb[0].mxu0
        %v2459 = vadd.f32 %v2346, %v2458
        %v2460 = vpop.f32.mrb[0].mxu0
        %v2461 = vadd.f32 %v2348, %v2460
        %v2462 = vpop.f32.mrb[0].mxu0
        %v2463 = vadd.f32 %v2350, %v2462
        %2464 = vmatprep.mubr.bf16.mxu0 0
        %2465 = vmatmul.mubr.bf16.gmra.mrb[0].mxu0 %v858
        %v2466 = vpop.f32.mrb[0].mxu0
        %v2467 = vadd.f32 %v2354, %v2466
        %v2468 = vpop.f32.mrb[0].mxu0
        %v2469 = vadd.f32 %v2356, %v2468
        %v2470 = vpop.f32.mrb[0].mxu0
        %v2471 = vadd.f32 %v2358, %v2470
        %v2472 = vpop.f32.mrb[0].mxu0
        %v2473 = vadd.f32 %v2360, %v2472
        %2474 = vmatprep.mubr.bf16.mxu0 0
        %2475 = vmatmul.mubr.bf16.gmra.mrb[0].mxu0 %v865
        %v2476 = vpop.f32.mrb[0].mxu0
        %v2477 = vadd.f32 %v2364, %v2476
        %v2478 = vpop.f32.mrb[0].mxu0
        %v2479 = vadd.f32 %v2366, %v2478
        %v2480 = vpop.f32.mrb[0].mxu0
        %v2481 = vadd.f32 %v2368, %v2480
        %v2482 = vpop.f32.mrb[0].mxu0
        %v2483 = vadd.f32 %v2370, %v2482
        %2484 = vmatprep.mubr.bf16.mxu0 0
        %2485 = vmatmul.mubr.bf16.gmra.mrb[0].mxu0 %v872
        %v2486 = vpop.f32.mrb[0].mxu0
        %v2487 = vadd.f32 %v2374, %v2486
        %v2488 = vpop.f32.mrb[0].mxu0
        %v2489 = vadd.f32 %v2376, %v2488
        %v2490 = vpop.f32.mrb[0].mxu0
        %v2491 = vadd.f32 %v2378, %v2490
        %v2492 = vpop.f32.mrb[0].mxu0
        %v2493 = vadd.f32 %v2380, %v2492
        %2494 = vmatprep.mubr.bf16.mxu0 0
        %2495 = vmatmul.mubr.bf16.gmra.mrb[0].mxu0 %v879
        %v2496 = vpop.f32.mrb[0].mxu0
        %v2497 = vadd.f32 %v2384, %v2496
        %v2498 = vpop.f32.mrb[0].mxu0
        %v2499 = vadd.f32 %v2386, %v2498
        %v2500 = vpop.f32.mrb[0].mxu0
        %v2501 = vadd.f32 %v2388, %v2500
        %v2502 = vpop.f32.mrb[0].mxu0
        %v2503 = vadd.f32 %v2390, %v2502
        %2504 = vmatprep.mubr.bf16.mxu0 0
        %2505 = vmatmul.mubr.bf16.gmra.mrb[0].mxu0 %v886
        %v2506 = vpop.f32.mrb[0].mxu0
        %v2507 = vadd.f32 %v2394, %v2506
        %v2508 = vpop.f32.mrb[0].mxu0
        %v2509 = vadd.f32 %v2396, %v2508
        %v2510 = vpop.f32.mrb[0].mxu0
        %v2511 = vadd.f32 %v2398, %v2510
        %v2512 = vpop.f32.mrb[0].mxu0
        %v2513 = vadd.f32 %v2400, %v2512
        %2514 = vdwg.mxu0
        %2515 = vmatprep.subr.bf16.mxu0 %v1618
        %2516 = vmatpush1.bf16.msra.mxu0 %v1617
        %2517 = vmatprep.subr.bf16.mxu0 %v1622
        %2518 = vmatpush1.bf16.msra.mxu0 %v1621
        %2519 = vmatprep.subr.bf16.mxu0 %v1626
        %2520 = vmatpush1.bf16.msra.mxu0 %v1625
        %2521 = vmatprep.subr.bf16.mxu0 %v1630
        %2522 = vmatpush1.bf16.msra.mxu0 %v1629
        %2523 = vmatprep.subr.bf16.mxu0 %v1634
        %2524 = vmatpush1.bf16.msra.mxu0 %v1633
        %2525 = vmatprep.subr.bf16.mxu0 %v1638
        %2526 = vmatpush1.bf16.msra.mxu0 %v1637
        %2527 = vmatprep.subr.bf16.mxu0 %v1642
        %2528 = vmatpush1.bf16.msra.mxu0 %v1641
        %2529 = vmatprep.subr.bf16.mxu0 %v1646
        %2530 = vmatpush1.bf16.msra.mxu0 %v1645
        %2531 = vmatprep.subr.bf16.mxu0 %v1650
        %2532 = vmatpush1.bf16.msra.mxu0 %v1649
        %2533 = vmatprep.subr.bf16.mxu0 %v1654
        %2534 = vmatpush1.bf16.msra.mxu0 %v1653
        %2535 = vmatprep.subr.bf16.mxu0 %v1658
        %2536 = vmatpush1.bf16.msra.mxu0 %v1657
        %2537 = vmatprep.subr.bf16.mxu0 %v1662
        %2538 = vmatpush1.bf16.msra.mxu0 %v1661
        %2539 = vmatprep.subr.bf16.mxu0 %v1666
        %2540 = vmatpush1.bf16.msra.mxu0 %v1665
        %2541 = vmatprep.subr.bf16.mxu0 %v1670
        %2542 = vmatpush1.bf16.msra.mxu0 %v1669
        %2543 = vmatprep.subr.bf16.mxu0 %v1674
        %2544 = vmatpush1.bf16.msra.mxu0 %v1673
        %2545 = vmatprep.subr.bf16.mxu0 %v1678
        %2546 = vmatpush1.bf16.msra.mxu0 %v1677
        %2547 = vmatprep.mubr.bf16.mxu0 %v832
        %2548 = vmatmul.mubr.bf16.gmra.mrb[0].mxu0 %v831
        %v2549 = vpop.f32.mrb[0].mxu0
        %v2550 = vadd.f32 %v646, %v2549
        %v2551 = vpop.f32.mrb[0].mxu0
        %v2552 = vadd.f32 %v650, %v2551
        %v2553 = vpop.f32.mrb[0].mxu0
        %v2554 = vadd.f32 %v646, %v2553
        %v2555 = vpop.f32.mrb[0].mxu0
        %v2556 = vadd.f32 %v650, %v2555
        %2557 = vmatprep.mubr.bf16.mxu0 %v839
        %2558 = vmatmul.mubr.bf16.gmra.mrb[0].mxu0 %v838
        %v2559 = vpop.f32.mrb[0].mxu0
        %v2560 = vadd.f32 %v646, %v2559
        %v2561 = vpop.f32.mrb[0].mxu0
        %v2562 = vadd.f32 %v650, %v2561
        %v2563 = vpop.f32.mrb[0].mxu0
        %v2564 = vadd.f32 %v646, %v2563
        %v2565 = vpop.f32.mrb[0].mxu0
        %v2566 = vadd.f32 %v650, %v2565
        %2567 = vmatprep.mubr.bf16.mxu0 %v846
        %2568 = vmatmul.mubr.bf16.gmra.mrb[0].mxu0 %v845
        %v2569 = vpop.f32.mrb[0].mxu0
        %v2570 = vadd.f32 %v646, %v2569
        %v2571 = vpop.f32.mrb[0].mxu0
        %v2572 = vadd.f32 %v650, %v2571
        %v2573 = vpop.f32.mrb[0].mxu0
        %v2574 = vadd.f32 %v646, %v2573
        %v2575 = vpop.f32.mrb[0].mxu0
        %v2576 = vadd.f32 %v650, %v2575
        %2577 = vmatprep.mubr.bf16.mxu0 %v853
        %2578 = vmatmul.mubr.bf16.gmra.mrb[0].mxu0 %v852
        %v2579 = vpop.f32.mrb[0].mxu0
        %v2580 = vadd.f32 %v646, %v2579
        %v2581 = vpop.f32.mrb[0].mxu0
        %v2582 = vadd.f32 %v650, %v2581
        %v2583 = vpop.f32.mrb[0].mxu0
        %v2584 = vadd.f32 %v646, %v2583
        %v2585 = vpop.f32.mrb[0].mxu0
        %v2586 = vadd.f32 %v650, %v2585
        %2587 = vmatprep.mubr.bf16.mxu0 %v860
        %2588 = vmatmul.mubr.bf16.gmra.mrb[0].mxu0 %v859
        %v2589 = vpop.f32.mrb[0].mxu0
        %v2590 = vadd.f32 %v646, %v2589
        %v2591 = vpop.f32.mrb[0].mxu0
        %v2592 = vadd.f32 %v650, %v2591
        %v2593 = vpop.f32.mrb[0].mxu0
        %v2594 = vadd.f32 %v646, %v2593
        %v2595 = vpop.f32.mrb[0].mxu0
        %v2596 = vadd.f32 %v650, %v2595
        %2597 = vmatprep.mubr.bf16.mxu0 %v867
        %2598 = vmatmul.mubr.bf16.gmra.mrb[0].mxu0 %v866
        %v2599 = vpop.f32.mrb[0].mxu0
        %v2600 = vadd.f32 %v646, %v2599
        %v2601 = vpop.f32.mrb[0].mxu0
        %v2602 = vadd.f32 %v650, %v2601
        %v2603 = vpop.f32.mrb[0].mxu0
        %v2604 = vadd.f32 %v646, %v2603
        %v2605 = vpop.f32.mrb[0].mxu0
        %v2606 = vadd.f32 %v650, %v2605
        %2607 = vmatprep.mubr.bf16.mxu0 %v874
        %2608 = vmatmul.mubr.bf16.gmra.mrb[0].mxu0 %v873
        %v2609 = vpop.f32.mrb[0].mxu0
        %v2610 = vadd.f32 %v646, %v2609
        %v2611 = vpop.f32.mrb[0].mxu0
        %v2612 = vadd.f32 %v650, %v2611
        %v2613 = vpop.f32.mrb[0].mxu0
        %v2614 = vadd.f32 %v646, %v2613
        %v2615 = vpop.f32.mrb[0].mxu0
        %v2616 = vadd.f32 %v650, %v2615
        %2617 = vmatprep.mubr.bf16.mxu0 %v881
        %2618 = vmatmul.mubr.bf16.gmra.mrb[0].mxu0 %v880
        %v2619 = vpop.f32.mrb[0].mxu0
        %v2620 = vadd.f32 %v646, %v2619
        %v2621 = vpop.f32.mrb[0].mxu0
        %v2622 = vadd.f32 %v650, %v2621
        %v2623 = vpop.f32.mrb[0].mxu0
        %v2624 = vadd.f32 %v646, %v2623
        %v2625 = vpop.f32.mrb[0].mxu0
        %v2626 = vadd.f32 %v650, %v2625
        %2627 = vdwg.mxu0
        %2628 = vmatprep.subr.bf16.mxu0 %v1682
        %2629 = vmatpush1.bf16.msra.mxu0 %v1681
        %2630 = vmatprep.subr.bf16.mxu0 %v1686
        %2631 = vmatpush1.bf16.msra.mxu0 %v1685
        %2632 = vmatprep.subr.bf16.mxu0 %v1690
        %2633 = vmatpush1.bf16.msra.mxu0 %v1689
        %2634 = vmatprep.subr.bf16.mxu0 %v1694
        %2635 = vmatpush1.bf16.msra.mxu0 %v1693
        %2636 = vmatprep.subr.bf16.mxu0 %v1698
        %2637 = vmatpush1.bf16.msra.mxu0 %v1697
        %2638 = vmatprep.subr.bf16.mxu0 %v1702
        %2639 = vmatpush1.bf16.msra.mxu0 %v1701
        %2640 = vmatprep.subr.bf16.mxu0 %v1706
        %2641 = vmatpush1.bf16.msra.mxu0 %v1705
        %2642 = vmatprep.subr.bf16.mxu0 %v1710
        %2643 = vmatpush1.bf16.msra.mxu0 %v1709
        %2644 = vmatprep.subr.bf16.mxu0 %v1714
        %2645 = vmatpush1.bf16.msra.mxu0 %v1713
        %2646 = vmatprep.subr.bf16.mxu0 %v1718
        %2647 = vmatpush1.bf16.msra.mxu0 %v1717
        %2648 = vmatprep.subr.bf16.mxu0 %v1722
        %2649 = vmatpush1.bf16.msra.mxu0 %v1721
        %2650 = vmatprep.subr.bf16.mxu0 %v1726
        %2651 = vmatpush1.bf16.msra.mxu0 %v1725
        %2652 = vmatprep.subr.bf16.mxu0 %v1730
        %2653 = vmatpush1.bf16.msra.mxu0 %v1729
        %2654 = vmatprep.subr.bf16.mxu0 %v1734
        %2655 = vmatpush1.bf16.msra.mxu0 %v1733
        %2656 = vmatprep.subr.bf16.mxu0 %v1738
        %2657 = vmatpush1.bf16.msra.mxu0 %v1737
        %2658 = vmatprep.subr.bf16.mxu0 %v1742
        %2659 = vmatpush1.bf16.msra.mxu0 %v1741
        %2660 = vmatprep.mubr.bf16.mxu0 %v834
        %2661 = vmatmul.mubr.bf16.gmra.mrb[0].mxu0 %v833
        %v2662 = vpop.f32.mrb[0].mxu0
        %v2663 = vadd.f32 %v2550, %v2662
        %v2664 = vpop.f32.mrb[0].mxu0
        %v2665 = vadd.f32 %v2552, %v2664
        %v2666 = vpop.f32.mrb[0].mxu0
        %v2667 = vadd.f32 %v2554, %v2666
        %v2668 = vpop.f32.mrb[0].mxu0
        %v2669 = vadd.f32 %v2556, %v2668
        %2670 = vmatprep.mubr.bf16.mxu0 %v841
        %2671 = vmatmul.mubr.bf16.gmra.mrb[0].mxu0 %v840
        %v2672 = vpop.f32.mrb[0].mxu0
        %v2673 = vadd.f32 %v2560, %v2672
        %v2674 = vpop.f32.mrb[0].mxu0
        %v2675 = vadd.f32 %v2562, %v2674
        %v2676 = vpop.f32.mrb[0].mxu0
        %v2677 = vadd.f32 %v2564, %v2676
        %v2678 = vpop.f32.mrb[0].mxu0
        %v2679 = vadd.f32 %v2566, %v2678
        %2680 = vmatprep.mubr.bf16.mxu0 %v848
        %2681 = vmatmul.mubr.bf16.gmra.mrb[0].mxu0 %v847
        %v2682 = vpop.f32.mrb[0].mxu0
        %v2683 = vadd.f32 %v2570, %v2682
        %v2684 = vpop.f32.mrb[0].mxu0
        %v2685 = vadd.f32 %v2572, %v2684
        %v2686 = vpop.f32.mrb[0].mxu0
        %v2687 = vadd.f32 %v2574, %v2686
        %v2688 = vpop.f32.mrb[0].mxu0
        %v2689 = vadd.f32 %v2576, %v2688
        %2690 = vmatprep.mubr.bf16.mxu0 %v855
        %2691 = vmatmul.mubr.bf16.gmra.mrb[0].mxu0 %v854
        %v2692 = vpop.f32.mrb[0].mxu0
        %v2693 = vadd.f32 %v2580, %v2692
        %v2694 = vpop.f32.mrb[0].mxu0
        %v2695 = vadd.f32 %v2582, %v2694
        %v2696 = vpop.f32.mrb[0].mxu0
        %v2697 = vadd.f32 %v2584, %v2696
        %v2698 = vpop.f32.mrb[0].mxu0
        %v2699 = vadd.f32 %v2586, %v2698
        %2700 = vmatprep.mubr.bf16.mxu0 %v862
        %2701 = vmatmul.mubr.bf16.gmra.mrb[0].mxu0 %v861
        %v2702 = vpop.f32.mrb[0].mxu0
        %v2703 = vadd.f32 %v2590, %v2702
        %v2704 = vpop.f32.mrb[0].mxu0
        %v2705 = vadd.f32 %v2592, %v2704
        %v2706 = vpop.f32.mrb[0].mxu0
        %v2707 = vadd.f32 %v2594, %v2706
        %v2708 = vpop.f32.mrb[0].mxu0
        %v2709 = vadd.f32 %v2596, %v2708
        %2710 = vmatprep.mubr.bf16.mxu0 %v869
        %2711 = vmatmul.mubr.bf16.gmra.mrb[0].mxu0 %v868
        %v2712 = vpop.f32.mrb[0].mxu0
        %v2713 = vadd.f32 %v2600, %v2712
        %v2714 = vpop.f32.mrb[0].mxu0
        %v2715 = vadd.f32 %v2602, %v2714
        %v2716 = vpop.f32.mrb[0].mxu0
        %v2717 = vadd.f32 %v2604, %v2716
        %v2718 = vpop.f32.mrb[0].mxu0
        %v2719 = vadd.f32 %v2606, %v2718
        %2720 = vmatprep.mubr.bf16.mxu0 %v876
        %2721 = vmatmul.mubr.bf16.gmra.mrb[0].mxu0 %v875
        %v2722 = vpop.f32.mrb[0].mxu0
        %v2723 = vadd.f32 %v2610, %v2722
        %v2724 = vpop.f32.mrb[0].mxu0
        %v2725 = vadd.f32 %v2612, %v2724
        %v2726 = vpop.f32.mrb[0].mxu0
        %v2727 = vadd.f32 %v2614, %v2726
        %v2728 = vpop.f32.mrb[0].mxu0
        %v2729 = vadd.f32 %v2616, %v2728
        %2730 = vmatprep.mubr.bf16.mxu0 %v883
        %2731 = vmatmul.mubr.bf16.gmra.mrb[0].mxu0 %v882
        %v2732 = vpop.f32.mrb[0].mxu0
        %v2733 = vadd.f32 %v2620, %v2732
        %v2734 = vpop.f32.mrb[0].mxu0
        %v2735 = vadd.f32 %v2622, %v2734
        %v2736 = vpop.f32.mrb[0].mxu0
        %v2737 = vadd.f32 %v2624, %v2736
        %v2738 = vpop.f32.mrb[0].mxu0
        %v2739 = vadd.f32 %v2626, %v2738
        %2740 = vdwg.mxu0
        %2741 = vmatprep.subr.bf16.mxu0 %v1746
        %2742 = vmatpush1.bf16.msra.mxu0 %v1745
        %2743 = vmatprep.subr.bf16.mxu0 %v1750
        %2744 = vmatpush1.bf16.msra.mxu0 %v1749
        %2745 = vmatprep.subr.bf16.mxu0 %v1754
        %2746 = vmatpush1.bf16.msra.mxu0 %v1753
        %2747 = vmatprep.subr.bf16.mxu0 %v1758
        %2748 = vmatpush1.bf16.msra.mxu0 %v1757
        %2749 = vmatprep.subr.bf16.mxu0 %v1762
        %2750 = vmatpush1.bf16.msra.mxu0 %v1761
        %2751 = vmatprep.subr.bf16.mxu0 %v1766
        %2752 = vmatpush1.bf16.msra.mxu0 %v1765
        %2753 = vmatprep.subr.bf16.mxu0 %v1770
        %2754 = vmatpush1.bf16.msra.mxu0 %v1769
        %2755 = vmatprep.subr.bf16.mxu0 %v1774
        %2756 = vmatpush1.bf16.msra.mxu0 %v1773
        %2757 = vmatprep.subr.bf16.mxu0 %v1778
        %2758 = vmatpush1.bf16.msra.mxu0 %v1777
        %2759 = vmatprep.subr.bf16.mxu0 %v1782
        %2760 = vmatpush1.bf16.msra.mxu0 %v1781
        %2761 = vmatprep.subr.bf16.mxu0 %v1786
        %2762 = vmatpush1.bf16.msra.mxu0 %v1785
        %2763 = vmatprep.subr.bf16.mxu0 %v1790
        %2764 = vmatpush1.bf16.msra.mxu0 %v1789
        %2765 = vmatprep.subr.bf16.mxu0 %v1794
        %2766 = vmatpush1.bf16.msra.mxu0 %v1793
        %2767 = vmatprep.subr.bf16.mxu0 %v1798
        %2768 = vmatpush1.bf16.msra.mxu0 %v1797
        %2769 = vmatprep.subr.bf16.mxu0 %v1802
        %2770 = vmatpush1.bf16.msra.mxu0 %v1801
        %2771 = vmatprep.subr.bf16.mxu0 %v1806
        %2772 = vmatpush1.bf16.msra.mxu0 %v1805
        %2773 = vmatprep.mubr.bf16.mxu0 %v836
        %2774 = vmatmul.mubr.bf16.gmra.mrb[0].mxu0 %v835
        %v2775 = vpop.f32.mrb[0].mxu0
        %v2776 = vadd.f32 %v2663, %v2775
        %v2777 = vpop.f32.mrb[0].mxu0
        %v2778 = vadd.f32 %v2665, %v2777
        %v2779 = vpop.f32.mrb[0].mxu0
        %v2780 = vadd.f32 %v2667, %v2779
        %v2781 = vpop.f32.mrb[0].mxu0
        %v2782 = vadd.f32 %v2669, %v2781
        %2783 = vmatprep.mubr.bf16.mxu0 %v843
        %2784 = vmatmul.mubr.bf16.gmra.mrb[0].mxu0 %v842
        %v2785 = vpop.f32.mrb[0].mxu0
        %v2786 = vadd.f32 %v2673, %v2785
        %v2787 = vpop.f32.mrb[0].mxu0
        %v2788 = vadd.f32 %v2675, %v2787
        %v2789 = vpop.f32.mrb[0].mxu0
        %v2790 = vadd.f32 %v2677, %v2789
        %v2791 = vpop.f32.mrb[0].mxu0
        %v2792 = vadd.f32 %v2679, %v2791
        %2793 = vmatprep.mubr.bf16.mxu0 %v850
        %2794 = vmatmul.mubr.bf16.gmra.mrb[0].mxu0 %v849
        %v2795 = vpop.f32.mrb[0].mxu0
        %v2796 = vadd.f32 %v2683, %v2795
        %v2797 = vpop.f32.mrb[0].mxu0
        %v2798 = vadd.f32 %v2685, %v2797
        %v2799 = vpop.f32.mrb[0].mxu0
        %v2800 = vadd.f32 %v2687, %v2799
        %v2801 = vpop.f32.mrb[0].mxu0
        %v2802 = vadd.f32 %v2689, %v2801
        %2803 = vmatprep.mubr.bf16.mxu0 %v857
        %2804 = vmatmul.mubr.bf16.gmra.mrb[0].mxu0 %v856
        %v2805 = vpop.f32.mrb[0].mxu0
        %v2806 = vadd.f32 %v2693, %v2805
        %v2807 = vpop.f32.mrb[0].mxu0
        %v2808 = vadd.f32 %v2695, %v2807
        %v2809 = vpop.f32.mrb[0].mxu0
        %v2810 = vadd.f32 %v2697, %v2809
        %v2811 = vpop.f32.mrb[0].mxu0
        %v2812 = vadd.f32 %v2699, %v2811
        %2813 = vmatprep.mubr.bf16.mxu0 %v864
        %2814 = vmatmul.mubr.bf16.gmra.mrb[0].mxu0 %v863
        %v2815 = vpop.f32.mrb[0].mxu0
        %v2816 = vadd.f32 %v2703, %v2815
        %v2817 = vpop.f32.mrb[0].mxu0
        %v2818 = vadd.f32 %v2705, %v2817
        %v2819 = vpop.f32.mrb[0].mxu0
        %v2820 = vadd.f32 %v2707, %v2819
        %v2821 = vpop.f32.mrb[0].mxu0
        %v2822 = vadd.f32 %v2709, %v2821
        %2823 = vmatprep.mubr.bf16.mxu0 %v871
        %2824 = vmatmul.mubr.bf16.gmra.mrb[0].mxu0 %v870
        %v2825 = vpop.f32.mrb[0].mxu0
        %v2826 = vadd.f32 %v2713, %v2825
        %v2827 = vpop.f32.mrb[0].mxu0
        %v2828 = vadd.f32 %v2715, %v2827
        %v2829 = vpop.f32.mrb[0].mxu0
        %v2830 = vadd.f32 %v2717, %v2829
        %v2831 = vpop.f32.mrb[0].mxu0
        %v2832 = vadd.f32 %v2719, %v2831
        %2833 = vmatprep.mubr.bf16.mxu0 %v878
        %2834 = vmatmul.mubr.bf16.gmra.mrb[0].mxu0 %v877
        %v2835 = vpop.f32.mrb[0].mxu0
        %v2836 = vadd.f32 %v2723, %v2835
        %v2837 = vpop.f32.mrb[0].mxu0
        %v2838 = vadd.f32 %v2725, %v2837
        %v2839 = vpop.f32.mrb[0].mxu0
        %v2840 = vadd.f32 %v2727, %v2839
        %v2841 = vpop.f32.mrb[0].mxu0
        %v2842 = vadd.f32 %v2729, %v2841
        %2843 = vmatprep.mubr.bf16.mxu0 %v885
        %2844 = vmatmul.mubr.bf16.gmra.mrb[0].mxu0 %v884
        %v2845 = vpop.f32.mrb[0].mxu0
        %v2846 = vadd.f32 %v2733, %v2845
        %v2847 = vpop.f32.mrb[0].mxu0
        %v2848 = vadd.f32 %v2735, %v2847
        %v2849 = vpop.f32.mrb[0].mxu0
        %v2850 = vadd.f32 %v2737, %v2849
        %v2851 = vpop.f32.mrb[0].mxu0
        %v2852 = vadd.f32 %v2739, %v2851
        %2853 = vdwg.mxu0
        %2854 = vmatprep.subr.bf16.mxu0 %v1810
        %2855 = vmatpush1.bf16.msra.mxu0 %v1809
        %2856 = vmatprep.subr.bf16.mxu0 %v1814
        %2857 = vmatpush1.bf16.msra.mxu0 %v1813
        %2858 = vmatprep.subr.bf16.mxu0 %v1818
        %2859 = vmatpush1.bf16.msra.mxu0 %v1817
        %2860 = vmatprep.subr.bf16.mxu0 %v1822
        %2861 = vmatpush1.bf16.msra.mxu0 %v1821
        %2862 = vmatprep.subr.bf16.mxu0 %v1826
        %2863 = vmatpush1.bf16.msra.mxu0 %v1825
        %2864 = vmatprep.subr.bf16.mxu0 %v1830
        %2865 = vmatpush1.bf16.msra.mxu0 %v1829
        %2866 = vmatprep.subr.bf16.mxu0 %v1834
        %2867 = vmatpush1.bf16.msra.mxu0 %v1833
        %2868 = vmatprep.subr.bf16.mxu0 %v1838
        %2869 = vmatpush1.bf16.msra.mxu0 %v1837
        %2870 = vmatprep.subr.bf16.mxu0 0
        %2871 = vmatpush1.bf16.msra.mxu0 0
        %2872 = vmatprep.subr.bf16.mxu0 0
        %2873 = vmatpush1.bf16.msra.mxu0 0
        %2874 = vmatprep.subr.bf16.mxu0 0
        %2875 = vmatpush1.bf16.msra.mxu0 0
        %2876 = vmatprep.subr.bf16.mxu0 0
        %2877 = vmatpush1.bf16.msra.mxu0 0
        %2878 = vmatprep.subr.bf16.mxu0 0
        %2879 = vmatpush1.bf16.msra.mxu0 0
        %2880 = vmatprep.subr.bf16.mxu0 0
        %2881 = vmatpush1.bf16.msra.mxu0 0
        %2882 = vmatprep.subr.bf16.mxu0 0
        %2883 = vmatpush1.bf16.msra.mxu0 0
        %2884 = vmatprep.subr.bf16.mxu0 0
        %2885 = vmatpush1.bf16.msra.mxu0 0
        %2886 = vmatprep.mubr.bf16.mxu0 0
        %2887 = vmatmul.mubr.bf16.gmra.mrb[0].mxu0 %v837
        %v2888 = vpop.f32.mrb[0].mxu0
        %v2889 = vadd.f32 %v2776, %v2888
        %v2890 = vpop.f32.mrb[0].mxu0
        %v2891 = vadd.f32 %v2778, %v2890
        %v2892 = vpop.f32.mrb[0].mxu0
        %v2893 = vadd.f32 %v2780, %v2892
        %v2894 = vpop.f32.mrb[0].mxu0
        %v2895 = vadd.f32 %v2782, %v2894
        %2896 = vmatprep.mubr.bf16.mxu0 0
        %2897 = vmatmul.mubr.bf16.gmra.mrb[0].mxu0 %v844
        %v2898 = vpop.f32.mrb[0].mxu0
        %v2899 = vadd.f32 %v2786, %v2898
        %v2900 = vpop.f32.mrb[0].mxu0
        %v2901 = vadd.f32 %v2788, %v2900
        %v2902 = vpop.f32.mrb[0].mxu0
        %v2903 = vadd.f32 %v2790, %v2902
        %v2904 = vpop.f32.mrb[0].mxu0
        %v2905 = vadd.f32 %v2792, %v2904
        %2906 = vmatprep.mubr.bf16.mxu0 0
        %2907 = vmatmul.mubr.bf16.gmra.mrb[0].mxu0 %v851
        %v2908 = vpop.f32.mrb[0].mxu0
        %v2909 = vadd.f32 %v2796, %v2908
        %v2910 = vpop.f32.mrb[0].mxu0
        %v2911 = vadd.f32 %v2798, %v2910
        %v2912 = vpop.f32.mrb[0].mxu0
        %v2913 = vadd.f32 %v2800, %v2912
        %v2914 = vpop.f32.mrb[0].mxu0
        %v2915 = vadd.f32 %v2802, %v2914
        %2916 = vmatprep.mubr.bf16.mxu0 0
        %2917 = vmatmul.mubr.bf16.gmra.mrb[0].mxu0 %v858
        %v2918 = vpop.f32.mrb[0].mxu0
        %v2919 = vadd.f32 %v2806, %v2918
        %v2920 = vpop.f32.mrb[0].mxu0
        %v2921 = vadd.f32 %v2808, %v2920
        %v2922 = vpop.f32.mrb[0].mxu0
        %v2923 = vadd.f32 %v2810, %v2922
        %v2924 = vpop.f32.mrb[0].mxu0
        %v2925 = vadd.f32 %v2812, %v2924
        %2926 = vmatprep.mubr.bf16.mxu0 0
        %2927 = vmatmul.mubr.bf16.gmra.mrb[0].mxu0 %v865
        %v2928 = vpop.f32.mrb[0].mxu0
        %v2929 = vadd.f32 %v2816, %v2928
        %v2930 = vpop.f32.mrb[0].mxu0
        %v2931 = vadd.f32 %v2818, %v2930
        %v2932 = vpop.f32.mrb[0].mxu0
        %v2933 = vadd.f32 %v2820, %v2932
        %v2934 = vpop.f32.mrb[0].mxu0
        %v2935 = vadd.f32 %v2822, %v2934
        %2936 = vmatprep.mubr.bf16.mxu0 0
        %2937 = vmatmul.mubr.bf16.gmra.mrb[0].mxu0 %v872
        %v2938 = vpop.f32.mrb[0].mxu0
        %v2939 = vadd.f32 %v2826, %v2938
        %v2940 = vpop.f32.mrb[0].mxu0
        %v2941 = vadd.f32 %v2828, %v2940
        %v2942 = vpop.f32.mrb[0].mxu0
        %v2943 = vadd.f32 %v2830, %v2942
        %v2944 = vpop.f32.mrb[0].mxu0
        %v2945 = vadd.f32 %v2832, %v2944
        %2946 = vmatprep.mubr.bf16.mxu0 0
        %2947 = vmatmul.mubr.bf16.gmra.mrb[0].mxu0 %v879
        %v2948 = vpop.f32.mrb[0].mxu0
        %v2949 = vadd.f32 %v2836, %v2948
        %v2950 = vpop.f32.mrb[0].mxu0
        %v2951 = vadd.f32 %v2838, %v2950
        %v2952 = vpop.f32.mrb[0].mxu0
        %v2953 = vadd.f32 %v2840, %v2952
        %v2954 = vpop.f32.mrb[0].mxu0
        %v2955 = vadd.f32 %v2842, %v2954
        %2956 = vmatprep.mubr.bf16.mxu0 0
        %2957 = vmatmul.mubr.bf16.gmra.mrb[0].mxu0 %v886
        %v2958 = vpop.f32.mrb[0].mxu0
        %v2959 = vadd.f32 %v2846, %v2958
        %v2960 = vpop.f32.mrb[0].mxu0
        %v2961 = vadd.f32 %v2848, %v2960
        %v2962 = vpop.f32.mrb[0].mxu0
        %v2963 = vadd.f32 %v2850, %v2962
        %v2964 = vpop.f32.mrb[0].mxu0
        %v2965 = vadd.f32 %v2852, %v2964
        %2966 = vdwg.mxu0
        %v2967 = vmax.f32 %v2437, 0.0
        %v2968 = vmax.f32 %v2439, 0.0
        %v2969 = vmax.f32 %v2889, 0.0
        %v2970 = vmax.f32 %v2891, 0.0
        %v2971 = vmax.f32 %v2441, 0.0
        %v2972 = vmax.f32 %v2443, 0.0
        %v2973 = vmax.f32 %v2893, 0.0
        %v2974 = vmax.f32 %v2895, 0.0
        %v2975 = vmax.f32 %v2447, 0.0
        %v2976 = vmax.f32 %v2449, 0.0
        %v2977 = vmax.f32 %v2899, 0.0
        %v2978 = vmax.f32 %v2901, 0.0
        %v2979 = vmax.f32 %v2451, 0.0
        %v2980 = vmax.f32 %v2453, 0.0
        %v2981 = vmax.f32 %v2903, 0.0
        %v2982 = vmax.f32 %v2905, 0.0
        %v2983 = vmax.f32 %v2457, 0.0
        %v2984 = vmax.f32 %v2459, 0.0
        %v2985 = vmax.f32 %v2909, 0.0
        %v2986 = vmax.f32 %v2911, 0.0
        %v2987 = vmax.f32 %v2461, 0.0
        %v2988 = vmax.f32 %v2463, 0.0
        %v2989 = vmax.f32 %v2913, 0.0
        %v2990 = vmax.f32 %v2915, 0.0
        %v2991 = vmax.f32 %v2467, 0.0
        %v2992 = vmax.f32 %v2469, 0.0
        %v2993 = vmax.f32 %v2919, 0.0
        %v2994 = vmax.f32 %v2921, 0.0
        %v2995 = vmax.f32 %v2471, 0.0
        %v2996 = vmax.f32 %v2473, 0.0
        %v2997 = vmax.f32 %v2923, 0.0
        %v2998 = vmax.f32 %v2925, 0.0
        %v2999 = vmax.f32 %v2477, 0.0
        %v3000 = vmax.f32 %v2479, 0.0
        %v3001 = vmax.f32 %v2929, 0.0
        %v3002 = vmax.f32 %v2931, 0.0
        %v3003 = vmax.f32 %v2481, 0.0
        %v3004 = vmax.f32 %v2483, 0.0
        %v3005 = vmax.f32 %v2933, 0.0
        %v3006 = vmax.f32 %v2935, 0.0
        %v3007 = vmax.f32 %v2487, 0.0
        %v3008 = vmax.f32 %v2489, 0.0
        %v3009 = vmax.f32 %v2939, 0.0
        %v3010 = vmax.f32 %v2941, 0.0
        %v3011 = vmax.f32 %v2491, 0.0
        %v3012 = vmax.f32 %v2493, 0.0
        %v3013 = vmax.f32 %v2943, 0.0
        %v3014 = vmax.f32 %v2945, 0.0
        %v3015 = vmax.f32 %v2497, 0.0
        %v3016 = vmax.f32 %v2499, 0.0
        %v3017 = vmax.f32 %v2949, 0.0
        %v3018 = vmax.f32 %v2951, 0.0
        %v3019 = vmax.f32 %v2501, 0.0
        %v3020 = vmax.f32 %v2503, 0.0
        %v3021 = vmax.f32 %v2953, 0.0
        %v3022 = vmax.f32 %v2955, 0.0
        %v3023 = vmax.f32 %v2507, 0.0
        %v3024 = vmax.f32 %v2509, 0.0
        %v3025 = vmax.f32 %v2959, 0.0
        %v3026 = vmax.f32 %v2961, 0.0
        %v3027 = vmax.f32 %v2511, 0.0
        %v3028 = vmax.f32 %v2513, 0.0
        %v3029 = vmax.f32 %v2963, 0.0
        %v3030 = vmax.f32 %v2965, 0.0
        %v3031 = vpack.c.bf16 %v2971, %v2967
        %v3032 = vpack.c.bf16 %v2972, %v2968
        %v3033 = vpack.c.bf16 %v2973, %v2969
        %v3034 = vpack.c.bf16 %v2974, %v2970
        %v3035 = vpack.c.bf16 %v2979, %v2975
        %v3036 = vpack.c.bf16 %v2980, %v2976
        %v3037 = vpack.c.bf16 %v2981, %v2977
        %v3038 = vpack.c.bf16 %v2982, %v2978
        %v3039 = vpack.c.bf16 %v2987, %v2983
        %v3040 = vpack.c.bf16 %v2988, %v2984
        %v3041 = vpack.c.bf16 %v2989, %v2985
        %v3042 = vpack.c.bf16 %v2990, %v2986
        %v3043 = vpack.c.bf16 %v2995, %v2991
        %v3044 = vpack.c.bf16 %v2996, %v2992
        %v3045 = vpack.c.bf16 %v2997, %v2993
        %v3046 = vpack.c.bf16 %v2998, %v2994
        %v3047 = vpack.c.bf16 %v3003, %v2999
        %v3048 = vpack.c.bf16 %v3004, %v3000
        %v3049 = vpack.c.bf16 %v3005, %v3001
        %v3050 = vpack.c.bf16 %v3006, %v3002
        %v3051 = vpack.c.bf16 %v3011, %v3007
        %v3052 = vpack.c.bf16 %v3012, %v3008
        %v3053 = vpack.c.bf16 %v3013, %v3009
        %v3054 = vpack.c.bf16 %v3014, %v3010
        %v3055 = vpack.c.bf16 %v3019, %v3015
        %v3056 = vpack.c.bf16 %v3020, %v3016
        %v3057 = vpack.c.bf16 %v3021, %v3017
        %v3058 = vpack.c.bf16 %v3022, %v3018
        %v3059 = vpack.c.bf16 %v3027, %v3023
        %v3060 = vpack.c.bf16 %v3028, %v3024
        %v3061 = vpack.c.bf16 %v3029, %v3025
        %v3062 = vpack.c.bf16 %v3030, %v3026
        %v3063 = vld [vmem:[#allocation7] sm:$0xff]
        %v3064 = vld [vmem:[#allocation7 + $0x8] sm:$0xff]
        %v3065 = vld [vmem:[#allocation7 + $0x10] sm:$0xff]
        %v3066 = vld [vmem:[#allocation7 + $0x18] sm:$0xff]
        %v3067 = vld [vmem:[#allocation7 + $0x20] sm:$0xff]
        %v3068 = vld [vmem:[#allocation7 + $0x28] sm:$0xff]
        %v3069 = vld [vmem:[#allocation7 + $0x30] sm:$0xff]
        %v3070 = vld [vmem:[#allocation7 + $0x38] sm:$0xff]
        %v3071 = vld [vmem:[#allocation7 + $0x40] sm:$0xff]
        %v3072 = vld [vmem:[#allocation7 + $0x48] sm:$0xff]
        %v3073 = vld [vmem:[#allocation7 + $0x50] sm:$0xff]
        %v3074 = vld [vmem:[#allocation7 + $0x58] sm:$0xff]
        %v3075 = vld [vmem:[#allocation7 + $0x60] sm:$0xff]
        %v3076 = vld [vmem:[#allocation7 + $0x68] sm:$0xff]
        %v3077 = vld [vmem:[#allocation7 + $0x70] sm:$0xff]
        %v3078 = vld [vmem:[#allocation7 + $0x78] sm:$0xff]
        %v3079 = vld [vmem:[#allocation7 + $0x80] sm:$0xff]
        %v3080 = vld [vmem:[#allocation7 + $0x88] sm:$0xff]
        %v3081 = vld [vmem:[#allocation7 + $0x90] sm:$0xff]
        %v3082 = vld [vmem:[#allocation7 + $0x98] sm:$0xff]
        %v3083 = vld [vmem:[#allocation7 + $0xa0] sm:$0xff]
        %v3084 = vld [vmem:[#allocation7 + $0xa8] sm:$0xff]
        %v3085 = vld [vmem:[#allocation7 + $0xb0] sm:$0xff]
        %v3086 = vld [vmem:[#allocation7 + $0xb8] sm:$0xff]
        %v3087 = vld [vmem:[#allocation7 + $0xc0] sm:$0xff]
        %v3088 = vld [vmem:[#allocation7 + $0xc8] sm:$0xff]
        %v3089 = vld [vmem:[#allocation7 + $0xd0] sm:$0xff]
        %v3090 = vld [vmem:[#allocation7 + $0xd8] sm:$0xff]
        %v3091 = vld [vmem:[#allocation7 + $0xe0] sm:$0xff]
        %v3092 = vld [vmem:[#allocation7 + $0xe8] sm:$0xff]
        %v3093 = vld [vmem:[#allocation7 + $0xf0] sm:$0xff]
        %v3094 = vld [vmem:[#allocation7 + $0xf8] sm:$0xff]
        %v3095 = vld [vmem:[#allocation7 + $0x100] sm:$0xff]
        %v3096 = vld [vmem:[#allocation7 + $0x108] sm:$0xff]
        %v3097 = vld [vmem:[#allocation7 + $0x110] sm:$0xff]
        %v3098 = vld [vmem:[#allocation7 + $0x118] sm:$0xff]
        %v3099 = vld [vmem:[#allocation7 + $0x120] sm:$0xff]
        %v3100 = vld [vmem:[#allocation7 + $0x128] sm:$0xff]
        %v3101 = vld [vmem:[#allocation7 + $0x130] sm:$0xff]
        %v3102 = vld [vmem:[#allocation7 + $0x138] sm:$0xff]
        %v3103 = vld [vmem:[#allocation7 + $0x140] sm:$0xff]
        %v3104 = vld [vmem:[#allocation7 + $0x148] sm:$0xff]
        %v3105 = vld [vmem:[#allocation7 + $0x150] sm:$0xff]
        %v3106 = vld [vmem:[#allocation7 + $0x158] sm:$0xff]
        %v3107 = vld [vmem:[#allocation7 + $0x160] sm:$0xff]
        %v3108 = vld [vmem:[#allocation7 + $0x168] sm:$0xff]
        %v3109 = vld [vmem:[#allocation7 + $0x170] sm:$0xff]
        %v3110 = vld [vmem:[#allocation7 + $0x178] sm:$0xff]
        %v3111 = vld [vmem:[#allocation7 + $0x180] sm:$0xff]
        %v3112 = vld [vmem:[#allocation7 + $0x188] sm:$0xff]
        %v3113 = vld [vmem:[#allocation7 + $0x190] sm:$0xff]
        %v3114 = vld [vmem:[#allocation7 + $0x198] sm:$0xff]
        %v3115 = vld [vmem:[#allocation7 + $0x1a0] sm:$0xff]
        %v3116 = vld [vmem:[#allocation7 + $0x1a8] sm:$0xff]
        %v3117 = vld [vmem:[#allocation7 + $0x1b0] sm:$0xff]
        %v3118 = vld [vmem:[#allocation7 + $0x1b8] sm:$0xff]
        %v3119 = vld [vmem:[#allocation7 + $0x1c0] sm:$0xff]
        %v3120 = vld [vmem:[#allocation7 + $0x1c8] sm:$0xff]
        %v3121 = vld [vmem:[#allocation7 + $0x1d0] sm:$0xff]
        %v3122 = vld [vmem:[#allocation7 + $0x1d8] sm:$0xff]
        %v3123 = vld [vmem:[#allocation7 + $0x1e0] sm:$0xff]
        %v3124 = vld [vmem:[#allocation7 + $0x1e8] sm:$0xff]
        %v3125 = vld [vmem:[#allocation7 + $0x1f0] sm:$0xff]
        %v3126 = vld [vmem:[#allocation7 + $0x1f8] sm:$0xff]
        %v3127 = vld [vmem:[#allocation7 + $0x200] sm:$0xff]
        %v3128 = vld [vmem:[#allocation7 + $0x208] sm:$0xff]
        %v3129 = vld [vmem:[#allocation7 + $0x210] sm:$0xff]
        %v3130 = vld [vmem:[#allocation7 + $0x218] sm:$0xff]
        %v3131 = vld [vmem:[#allocation7 + $0x220] sm:$0xff]
        %v3132 = vld [vmem:[#allocation7 + $0x228] sm:$0xff]
        %v3133 = vld [vmem:[#allocation7 + $0x230] sm:$0xff]
        %v3134 = vld [vmem:[#allocation7 + $0x238] sm:$0xff]
        %v3135 = vld [vmem:[#allocation7 + $0x240] sm:$0xff]
        %v3136 = vld [vmem:[#allocation7 + $0x248] sm:$0xff]
        %v3137 = vld [vmem:[#allocation7 + $0x250] sm:$0xff]
        %v3138 = vld [vmem:[#allocation7 + $0x258] sm:$0xff]
        %v3139 = vld [vmem:[#allocation7 + $0x260] sm:$0xff]
        %v3140 = vld [vmem:[#allocation7 + $0x268] sm:$0xff]
        %v3141 = vld [vmem:[#allocation7 + $0x270] sm:$0xff]
        %v3142 = vld [vmem:[#allocation7 + $0x278] sm:$0xff]
        %v3143 = vld [vmem:[#allocation7 + $0x280] sm:$0xff]
        %v3144 = vld [vmem:[#allocation7 + $0x288] sm:$0xff]
        %v3145 = vld [vmem:[#allocation7 + $0x290] sm:$0xff]
        %v3146 = vld [vmem:[#allocation7 + $0x298] sm:$0xff]
        %v3147 = vld [vmem:[#allocation7 + $0x2a0] sm:$0xff]
        %v3148 = vld [vmem:[#allocation7 + $0x2a8] sm:$0xff]
        %v3149 = vld [vmem:[#allocation7 + $0x2b0] sm:$0xff]
        %v3150 = vld [vmem:[#allocation7 + $0x2b8] sm:$0xff]
        %v3151 = vld [vmem:[#allocation7 + $0x2c0] sm:$0xff]
        %v3152 = vld [vmem:[#allocation7 + $0x2c8] sm:$0xff]
        %v3153 = vld [vmem:[#allocation7 + $0x2d0] sm:$0xff]
        %v3154 = vld [vmem:[#allocation7 + $0x2d8] sm:$0xff]
        %v3155 = vld [vmem:[#allocation7 + $0x2e0] sm:$0xff]
        %v3156 = vld [vmem:[#allocation7 + $0x2e8] sm:$0xff]
        %v3157 = vld [vmem:[#allocation7 + $0x2f0] sm:$0xff]
        %v3158 = vld [vmem:[#allocation7 + $0x2f8] sm:$0xff]
        %v3159 = vld [vmem:[#allocation7 + $0x300] sm:$0xff]
        %v3160 = vld [vmem:[#allocation7 + $0x308] sm:$0xff]
        %v3161 = vld [vmem:[#allocation7 + $0x310] sm:$0xff]
        %v3162 = vld [vmem:[#allocation7 + $0x318] sm:$0xff]
        %v3163 = vld [vmem:[#allocation7 + $0x320] sm:$0xff]
        %v3164 = vld [vmem:[#allocation7 + $0x328] sm:$0xff]
        %v3165 = vld [vmem:[#allocation7 + $0x330] sm:$0xff]
        %v3166 = vld [vmem:[#allocation7 + $0x338] sm:$0xff]
        %v3167 = vld [vmem:[#allocation7 + $0x340] sm:$0xff]
        %v3168 = vld [vmem:[#allocation7 + $0x348] sm:$0xff]
        %v3169 = vld [vmem:[#allocation7 + $0x350] sm:$0xff]
        %v3170 = vld [vmem:[#allocation7 + $0x358] sm:$0xff]
        %v3171 = vld [vmem:[#allocation7 + $0x360] sm:$0xff]
        %v3172 = vld [vmem:[#allocation7 + $0x368] sm:$0xff]
        %v3173 = vld [vmem:[#allocation7 + $0x370] sm:$0xff]
        %v3174 = vld [vmem:[#allocation7 + $0x378] sm:$0xff]
        %v3175 = vld [vmem:[#allocation7 + $0x380] sm:$0xff]
        %v3176 = vld [vmem:[#allocation7 + $0x388] sm:$0xff]
        %v3177 = vld [vmem:[#allocation7 + $0x390] sm:$0xff]
        %v3178 = vld [vmem:[#allocation7 + $0x398] sm:$0xff]
        %v3179 = vld [vmem:[#allocation7 + $0x3a0] sm:$0xff]
        %v3180 = vld [vmem:[#allocation7 + $0x3a8] sm:$0xff]
        %v3181 = vld [vmem:[#allocation7 + $0x3b0] sm:$0xff]
        %v3182 = vld [vmem:[#allocation7 + $0x3b8] sm:$0xff]
        %v3183 = vld [vmem:[#allocation7 + $0x3c0] sm:$0xff]
        %v3184 = vld [vmem:[#allocation7 + $0x3c8] sm:$0xff]
        %v3185 = vld [vmem:[#allocation7 + $0x3d0] sm:$0xff]
        %v3186 = vld [vmem:[#allocation7 + $0x3d8] sm:$0xff]
        %v3187 = vld [vmem:[#allocation7 + $0x3e0] sm:$0xff]
        %v3188 = vld [vmem:[#allocation7 + $0x3e8] sm:$0xff]
        %v3189 = vld [vmem:[#allocation7 + $0x3f0] sm:$0xff]
        %v3190 = vld [vmem:[#allocation7 + $0x3f8] sm:$0xff]
        %v3191 = vld [vmem:[%s4] sm:$0xf]
        %v3193 = vlaneseq
        %v3194 = vshrl.u32 %v3193, 7
        %v3195 = vsub.s32 0, %v3194
        %v3196 = vrot.slane %v3191, %v3195
        %v3197 = vlaneseq
        %v3198 = vshrl.u32 %v3197, 7
        %v3199 = vsub.s32 1, %v3198
        %v3200 = vrot.slane %v3191, %v3199
        %v3201 = vlaneseq
        %v3202 = vshrl.u32 %v3201, 7
        %v3203 = vsub.s32 2, %v3202
        %v3204 = vrot.slane %v3191, %v3203
        %v3205 = vlaneseq
        %v3206 = vshrl.u32 %v3205, 7
        %v3207 = vsub.s32 3, %v3206
        %v3208 = vrot.slane %v3191, %v3207
        %v3341 = vunpack.c.l.b16 %v3063
        %v3342 = vunpack.c.h.b16 %v3063
        %v3343 = vunpack.c.l.b16 %v3064
        %v3344 = vunpack.c.h.b16 %v3064
        %v3345 = vunpack.c.l.b16 %v3065
        %v3346 = vunpack.c.h.b16 %v3065
        %v3347 = vunpack.c.l.b16 %v3066
        %v3348 = vunpack.c.h.b16 %v3066
        %v3349 = vunpack.c.l.b16 %v3067
        %v3350 = vunpack.c.h.b16 %v3067
        %v3351 = vunpack.c.l.b16 %v3068
        %v3352 = vunpack.c.h.b16 %v3068
        %v3353 = vunpack.c.l.b16 %v3069
        %v3354 = vunpack.c.h.b16 %v3069
        %v3355 = vunpack.c.l.b16 %v3070
        %v3356 = vunpack.c.h.b16 %v3070
        %v3357 = vunpack.c.l.b16 %v3071
        %v3358 = vunpack.c.h.b16 %v3071
        %v3359 = vunpack.c.l.b16 %v3072
        %v3360 = vunpack.c.h.b16 %v3072
        %v3361 = vunpack.c.l.b16 %v3073
        %v3362 = vunpack.c.h.b16 %v3073
        %v3363 = vunpack.c.l.b16 %v3074
        %v3364 = vunpack.c.h.b16 %v3074
        %v3365 = vunpack.c.l.b16 %v3075
        %v3366 = vunpack.c.h.b16 %v3075
        %v3367 = vunpack.c.l.b16 %v3076
        %v3368 = vunpack.c.h.b16 %v3076
        %v3369 = vunpack.c.l.b16 %v3077
        %v3370 = vunpack.c.h.b16 %v3077
        %v3371 = vunpack.c.l.b16 %v3078
        %v3372 = vunpack.c.h.b16 %v3078
        %v3373 = vunpack.c.l.b16 %v3079
        %v3374 = vunpack.c.h.b16 %v3079
        %v3375 = vunpack.c.l.b16 %v3080
        %v3376 = vunpack.c.h.b16 %v3080
        %v3377 = vunpack.c.l.b16 %v3081
        %v3378 = vunpack.c.h.b16 %v3081
        %v3379 = vunpack.c.l.b16 %v3082
        %v3380 = vunpack.c.h.b16 %v3082
        %v3381 = vunpack.c.l.b16 %v3083
        %v3382 = vunpack.c.h.b16 %v3083
        %v3383 = vunpack.c.l.b16 %v3084
        %v3384 = vunpack.c.h.b16 %v3084
        %v3385 = vunpack.c.l.b16 %v3085
        %v3386 = vunpack.c.h.b16 %v3085
        %v3387 = vunpack.c.l.b16 %v3086
        %v3388 = vunpack.c.h.b16 %v3086
        %v3389 = vunpack.c.l.b16 %v3087
        %v3390 = vunpack.c.h.b16 %v3087
        %v3391 = vunpack.c.l.b16 %v3088
        %v3392 = vunpack.c.h.b16 %v3088
        %v3393 = vunpack.c.l.b16 %v3089
        %v3394 = vunpack.c.h.b16 %v3089
        %v3395 = vunpack.c.l.b16 %v3090
        %v3396 = vunpack.c.h.b16 %v3090
        %v3397 = vunpack.c.l.b16 %v3091
        %v3398 = vunpack.c.h.b16 %v3091
        %v3399 = vunpack.c.l.b16 %v3092
        %v3400 = vunpack.c.h.b16 %v3092
        %v3401 = vunpack.c.l.b16 %v3093
        %v3402 = vunpack.c.h.b16 %v3093
        %v3403 = vunpack.c.l.b16 %v3094
        %v3404 = vunpack.c.h.b16 %v3094
        %v3405 = vunpack.c.l.b16 %v3095
        %v3406 = vunpack.c.h.b16 %v3095
        %v3407 = vunpack.c.l.b16 %v3096
        %v3408 = vunpack.c.h.b16 %v3096
        %v3409 = vunpack.c.l.b16 %v3097
        %v3410 = vunpack.c.h.b16 %v3097
        %v3411 = vunpack.c.l.b16 %v3098
        %v3412 = vunpack.c.h.b16 %v3098
        %v3413 = vunpack.c.l.b16 %v3099
        %v3414 = vunpack.c.h.b16 %v3099
        %v3415 = vunpack.c.l.b16 %v3100
        %v3416 = vunpack.c.h.b16 %v3100
        %v3417 = vunpack.c.l.b16 %v3101
        %v3418 = vunpack.c.h.b16 %v3101
        %v3419 = vunpack.c.l.b16 %v3102
        %v3420 = vunpack.c.h.b16 %v3102
        %v3421 = vunpack.c.l.b16 %v3103
        %v3422 = vunpack.c.h.b16 %v3103
        %v3423 = vunpack.c.l.b16 %v3104
        %v3424 = vunpack.c.h.b16 %v3104
        %v3425 = vunpack.c.l.b16 %v3105
        %v3426 = vunpack.c.h.b16 %v3105
        %v3427 = vunpack.c.l.b16 %v3106
        %v3428 = vunpack.c.h.b16 %v3106
        %v3429 = vunpack.c.l.b16 %v3107
        %v3430 = vunpack.c.h.b16 %v3107
        %v3431 = vunpack.c.l.b16 %v3108
        %v3432 = vunpack.c.h.b16 %v3108
        %v3433 = vunpack.c.l.b16 %v3109
        %v3434 = vunpack.c.h.b16 %v3109
        %v3435 = vunpack.c.l.b16 %v3110
        %v3436 = vunpack.c.h.b16 %v3110
        %v3437 = vunpack.c.l.b16 %v3111
        %v3438 = vunpack.c.h.b16 %v3111
        %v3439 = vunpack.c.l.b16 %v3112
        %v3440 = vunpack.c.h.b16 %v3112
        %v3441 = vunpack.c.l.b16 %v3113
        %v3442 = vunpack.c.h.b16 %v3113
        %v3443 = vunpack.c.l.b16 %v3114
        %v3444 = vunpack.c.h.b16 %v3114
        %v3445 = vunpack.c.l.b16 %v3115
        %v3446 = vunpack.c.h.b16 %v3115
        %v3447 = vunpack.c.l.b16 %v3116
        %v3448 = vunpack.c.h.b16 %v3116
        %v3449 = vunpack.c.l.b16 %v3117
        %v3450 = vunpack.c.h.b16 %v3117
        %v3451 = vunpack.c.l.b16 %v3118
        %v3452 = vunpack.c.h.b16 %v3118
        %v3453 = vunpack.c.l.b16 %v3119
        %v3454 = vunpack.c.h.b16 %v3119
        %v3455 = vunpack.c.l.b16 %v3120
        %v3456 = vunpack.c.h.b16 %v3120
        %v3457 = vunpack.c.l.b16 %v3121
        %v3458 = vunpack.c.h.b16 %v3121
        %v3459 = vunpack.c.l.b16 %v3122
        %v3460 = vunpack.c.h.b16 %v3122
        %v3461 = vunpack.c.l.b16 %v3123
        %v3462 = vunpack.c.h.b16 %v3123
        %v3463 = vunpack.c.l.b16 %v3124
        %v3464 = vunpack.c.h.b16 %v3124
        %v3465 = vunpack.c.l.b16 %v3125
        %v3466 = vunpack.c.h.b16 %v3125
        %v3467 = vunpack.c.l.b16 %v3126
        %v3468 = vunpack.c.h.b16 %v3126
        %v3469 = vunpack.c.l.b16 %v3127
        %v3470 = vunpack.c.h.b16 %v3127
        %v3471 = vunpack.c.l.b16 %v3128
        %v3472 = vunpack.c.h.b16 %v3128
        %v3473 = vunpack.c.l.b16 %v3129
        %v3474 = vunpack.c.h.b16 %v3129
        %v3475 = vunpack.c.l.b16 %v3130
        %v3476 = vunpack.c.h.b16 %v3130
        %v3477 = vunpack.c.l.b16 %v3131
        %v3478 = vunpack.c.h.b16 %v3131
        %v3479 = vunpack.c.l.b16 %v3132
        %v3480 = vunpack.c.h.b16 %v3132
        %v3481 = vunpack.c.l.b16 %v3133
        %v3482 = vunpack.c.h.b16 %v3133
        %v3483 = vunpack.c.l.b16 %v3134
        %v3484 = vunpack.c.h.b16 %v3134
        %v3485 = vunpack.c.l.b16 %v3135
        %v3486 = vunpack.c.h.b16 %v3135
        %v3487 = vunpack.c.l.b16 %v3136
        %v3488 = vunpack.c.h.b16 %v3136
        %v3489 = vunpack.c.l.b16 %v3137
        %v3490 = vunpack.c.h.b16 %v3137
        %v3491 = vunpack.c.l.b16 %v3138
        %v3492 = vunpack.c.h.b16 %v3138
        %v3493 = vunpack.c.l.b16 %v3139
        %v3494 = vunpack.c.h.b16 %v3139
        %v3495 = vunpack.c.l.b16 %v3140
        %v3496 = vunpack.c.h.b16 %v3140
        %v3497 = vunpack.c.l.b16 %v3141
        %v3498 = vunpack.c.h.b16 %v3141
        %v3499 = vunpack.c.l.b16 %v3142
        %v3500 = vunpack.c.h.b16 %v3142
        %v3501 = vunpack.c.l.b16 %v3143
        %v3502 = vunpack.c.h.b16 %v3143
        %v3503 = vunpack.c.l.b16 %v3144
        %v3504 = vunpack.c.h.b16 %v3144
        %v3505 = vunpack.c.l.b16 %v3145
        %v3506 = vunpack.c.h.b16 %v3145
        %v3507 = vunpack.c.l.b16 %v3146
        %v3508 = vunpack.c.h.b16 %v3146
        %v3509 = vunpack.c.l.b16 %v3147
        %v3510 = vunpack.c.h.b16 %v3147
        %v3511 = vunpack.c.l.b16 %v3148
        %v3512 = vunpack.c.h.b16 %v3148
        %v3513 = vunpack.c.l.b16 %v3149
        %v3514 = vunpack.c.h.b16 %v3149
        %v3515 = vunpack.c.l.b16 %v3150
        %v3516 = vunpack.c.h.b16 %v3150
        %v3517 = vunpack.c.l.b16 %v3151
        %v3518 = vunpack.c.h.b16 %v3151
        %v3519 = vunpack.c.l.b16 %v3152
        %v3520 = vunpack.c.h.b16 %v3152
        %v3521 = vunpack.c.l.b16 %v3153
        %v3522 = vunpack.c.h.b16 %v3153
        %v3523 = vunpack.c.l.b16 %v3154
        %v3524 = vunpack.c.h.b16 %v3154
        %v3525 = vunpack.c.l.b16 %v3155
        %v3526 = vunpack.c.h.b16 %v3155
        %v3527 = vunpack.c.l.b16 %v3156
        %v3528 = vunpack.c.h.b16 %v3156
        %v3529 = vunpack.c.l.b16 %v3157
        %v3530 = vunpack.c.h.b16 %v3157
        %v3531 = vunpack.c.l.b16 %v3158
        %v3532 = vunpack.c.h.b16 %v3158
        %v3533 = vunpack.c.l.b16 %v3159
        %v3534 = vunpack.c.h.b16 %v3159
        %v3535 = vunpack.c.l.b16 %v3160
        %v3536 = vunpack.c.h.b16 %v3160
        %v3537 = vunpack.c.l.b16 %v3161
        %v3538 = vunpack.c.h.b16 %v3161
        %v3539 = vunpack.c.l.b16 %v3162
        %v3540 = vunpack.c.h.b16 %v3162
        %v3541 = vunpack.c.l.b16 %v3163
        %v3542 = vunpack.c.h.b16 %v3163
        %v3543 = vunpack.c.l.b16 %v3164
        %v3544 = vunpack.c.h.b16 %v3164
        %v3545 = vunpack.c.l.b16 %v3165
        %v3546 = vunpack.c.h.b16 %v3165
        %v3547 = vunpack.c.l.b16 %v3166
        %v3548 = vunpack.c.h.b16 %v3166
        %v3549 = vunpack.c.l.b16 %v3167
        %v3550 = vunpack.c.h.b16 %v3167
        %v3551 = vunpack.c.l.b16 %v3168
        %v3552 = vunpack.c.h.b16 %v3168
        %v3553 = vunpack.c.l.b16 %v3169
        %v3554 = vunpack.c.h.b16 %v3169
        %v3555 = vunpack.c.l.b16 %v3170
        %v3556 = vunpack.c.h.b16 %v3170
        %v3557 = vunpack.c.l.b16 %v3171
        %v3558 = vunpack.c.h.b16 %v3171
        %v3559 = vunpack.c.l.b16 %v3172
        %v3560 = vunpack.c.h.b16 %v3172
        %v3561 = vunpack.c.l.b16 %v3173
        %v3562 = vunpack.c.h.b16 %v3173
        %v3563 = vunpack.c.l.b16 %v3174
        %v3564 = vunpack.c.h.b16 %v3174
        %v3565 = vunpack.c.l.b16 %v3175
        %v3566 = vunpack.c.h.b16 %v3175
        %v3567 = vunpack.c.l.b16 %v3176
        %v3568 = vunpack.c.h.b16 %v3176
        %v3569 = vunpack.c.l.b16 %v3177
        %v3570 = vunpack.c.h.b16 %v3177
        %v3571 = vunpack.c.l.b16 %v3178
        %v3572 = vunpack.c.h.b16 %v3178
        %v3573 = vunpack.c.l.b16 %v3179
        %v3574 = vunpack.c.h.b16 %v3179
        %v3575 = vunpack.c.l.b16 %v3180
        %v3576 = vunpack.c.h.b16 %v3180
        %v3577 = vunpack.c.l.b16 %v3181
        %v3578 = vunpack.c.h.b16 %v3181
        %v3579 = vunpack.c.l.b16 %v3182
        %v3580 = vunpack.c.h.b16 %v3182
        %v3581 = vunpack.c.l.b16 %v3183
        %v3582 = vunpack.c.h.b16 %v3183
        %v3583 = vunpack.c.l.b16 %v3184
        %v3584 = vunpack.c.h.b16 %v3184
        %v3585 = vunpack.c.l.b16 %v3185
        %v3586 = vunpack.c.h.b16 %v3185
        %v3587 = vunpack.c.l.b16 %v3186
        %v3588 = vunpack.c.h.b16 %v3186
        %v3589 = vunpack.c.l.b16 %v3187
        %v3590 = vunpack.c.h.b16 %v3187
        %v3591 = vunpack.c.l.b16 %v3188
        %v3592 = vunpack.c.h.b16 %v3188
        %v3593 = vunpack.c.l.b16 %v3189
        %v3594 = vunpack.c.h.b16 %v3189
        %v3595 = vunpack.c.l.b16 %v3190
        %v3596 = vunpack.c.h.b16 %v3190
        %v3597 = vpack.c.b16 %v3345, %v3341
        %v3598 = vpack.c.b16 %v3346, %v3342
        %v3599 = vpack.c.b16 %v3347, %v3343
        %v3600 = vpack.c.b16 %v3348, %v3344
        %v3601 = vpack.c.b16 %v3353, %v3349
        %v3602 = vpack.c.b16 %v3354, %v3350
        %v3603 = vpack.c.b16 %v3355, %v3351
        %v3604 = vpack.c.b16 %v3356, %v3352
        %v3605 = vpack.c.b16 %v3361, %v3357
        %v3606 = vpack.c.b16 %v3362, %v3358
        %v3607 = vpack.c.b16 %v3363, %v3359
        %v3608 = vpack.c.b16 %v3364, %v3360
        %v3609 = vpack.c.b16 %v3369, %v3365
        %v3610 = vpack.c.b16 %v3370, %v3366
        %v3611 = vpack.c.b16 %v3371, %v3367
        %v3612 = vpack.c.b16 %v3372, %v3368
        %v3613 = vpack.c.b16 %v3377, %v3373
        %v3614 = vpack.c.b16 %v3378, %v3374
        %v3615 = vpack.c.b16 %v3379, %v3375
        %v3616 = vpack.c.b16 %v3380, %v3376
        %v3617 = vpack.c.b16 %v3385, %v3381
        %v3618 = vpack.c.b16 %v3386, %v3382
        %v3619 = vpack.c.b16 %v3387, %v3383
        %v3620 = vpack.c.b16 %v3388, %v3384
        %v3621 = vpack.c.b16 %v3393, %v3389
        %v3622 = vpack.c.b16 %v3394, %v3390
        %v3623 = vpack.c.b16 %v3395, %v3391
        %v3624 = vpack.c.b16 %v3396, %v3392
        %v3625 = vpack.c.b16 %v3401, %v3397
        %v3626 = vpack.c.b16 %v3402, %v3398
        %v3627 = vpack.c.b16 %v3403, %v3399
        %v3628 = vpack.c.b16 %v3404, %v3400
        %v3629 = vpack.c.b16 %v3409, %v3405
        %v3630 = vpack.c.b16 %v3410, %v3406
        %v3631 = vpack.c.b16 %v3411, %v3407
        %v3632 = vpack.c.b16 %v3412, %v3408
        %v3633 = vpack.c.b16 %v3417, %v3413
        %v3634 = vpack.c.b16 %v3418, %v3414
        %v3635 = vpack.c.b16 %v3419, %v3415
        %v3636 = vpack.c.b16 %v3420, %v3416
        %v3637 = vpack.c.b16 %v3425, %v3421
        %v3638 = vpack.c.b16 %v3426, %v3422
        %v3639 = vpack.c.b16 %v3427, %v3423
        %v3640 = vpack.c.b16 %v3428, %v3424
        %v3641 = vpack.c.b16 %v3433, %v3429
        %v3642 = vpack.c.b16 %v3434, %v3430
        %v3643 = vpack.c.b16 %v3435, %v3431
        %v3644 = vpack.c.b16 %v3436, %v3432
        %v3645 = vpack.c.b16 %v3441, %v3437
        %v3646 = vpack.c.b16 %v3442, %v3438
        %v3647 = vpack.c.b16 %v3443, %v3439
        %v3648 = vpack.c.b16 %v3444, %v3440
        %v3649 = vpack.c.b16 %v3449, %v3445
        %v3650 = vpack.c.b16 %v3450, %v3446
        %v3651 = vpack.c.b16 %v3451, %v3447
        %v3652 = vpack.c.b16 %v3452, %v3448
        %v3653 = vpack.c.b16 %v3457, %v3453
        %v3654 = vpack.c.b16 %v3458, %v3454
        %v3655 = vpack.c.b16 %v3459, %v3455
        %v3656 = vpack.c.b16 %v3460, %v3456
        %v3657 = vpack.c.b16 %v3465, %v3461
        %v3658 = vpack.c.b16 %v3466, %v3462
        %v3659 = vpack.c.b16 %v3467, %v3463
        %v3660 = vpack.c.b16 %v3468, %v3464
        %v3661 = vpack.c.b16 %v3473, %v3469
        %v3662 = vpack.c.b16 %v3474, %v3470
        %v3663 = vpack.c.b16 %v3475, %v3471
        %v3664 = vpack.c.b16 %v3476, %v3472
        %v3665 = vpack.c.b16 %v3481, %v3477
        %v3666 = vpack.c.b16 %v3482, %v3478
        %v3667 = vpack.c.b16 %v3483, %v3479
        %v3668 = vpack.c.b16 %v3484, %v3480
        %v3669 = vpack.c.b16 %v3489, %v3485
        %v3670 = vpack.c.b16 %v3490, %v3486
        %v3671 = vpack.c.b16 %v3491, %v3487
        %v3672 = vpack.c.b16 %v3492, %v3488
        %v3673 = vpack.c.b16 %v3497, %v3493
        %v3674 = vpack.c.b16 %v3498, %v3494
        %v3675 = vpack.c.b16 %v3499, %v3495
        %v3676 = vpack.c.b16 %v3500, %v3496
        %v3677 = vpack.c.b16 %v3505, %v3501
        %v3678 = vpack.c.b16 %v3506, %v3502
        %v3679 = vpack.c.b16 %v3507, %v3503
        %v3680 = vpack.c.b16 %v3508, %v3504
        %v3681 = vpack.c.b16 %v3513, %v3509
        %v3682 = vpack.c.b16 %v3514, %v3510
        %v3683 = vpack.c.b16 %v3515, %v3511
        %v3684 = vpack.c.b16 %v3516, %v3512
        %v3685 = vpack.c.b16 %v3521, %v3517
        %v3686 = vpack.c.b16 %v3522, %v3518
        %v3687 = vpack.c.b16 %v3523, %v3519
        %v3688 = vpack.c.b16 %v3524, %v3520
        %v3689 = vpack.c.b16 %v3529, %v3525
        %v3690 = vpack.c.b16 %v3530, %v3526
        %v3691 = vpack.c.b16 %v3531, %v3527
        %v3692 = vpack.c.b16 %v3532, %v3528
        %v3693 = vpack.c.b16 %v3537, %v3533
        %v3694 = vpack.c.b16 %v3538, %v3534
        %v3695 = vpack.c.b16 %v3539, %v3535
        %v3696 = vpack.c.b16 %v3540, %v3536
        %v3697 = vpack.c.b16 %v3545, %v3541
        %v3698 = vpack.c.b16 %v3546, %v3542
        %v3699 = vpack.c.b16 %v3547, %v3543
        %v3700 = vpack.c.b16 %v3548, %v3544
        %v3701 = vpack.c.b16 %v3553, %v3549
        %v3702 = vpack.c.b16 %v3554, %v3550
        %v3703 = vpack.c.b16 %v3555, %v3551
        %v3704 = vpack.c.b16 %v3556, %v3552
        %v3705 = vpack.c.b16 %v3561, %v3557
        %v3706 = vpack.c.b16 %v3562, %v3558
        %v3707 = vpack.c.b16 %v3563, %v3559
        %v3708 = vpack.c.b16 %v3564, %v3560
        %v3709 = vpack.c.b16 %v3569, %v3565
        %v3710 = vpack.c.b16 %v3570, %v3566
        %v3711 = vpack.c.b16 %v3571, %v3567
        %v3712 = vpack.c.b16 %v3572, %v3568
        %v3713 = vpack.c.b16 %v3577, %v3573
        %v3714 = vpack.c.b16 %v3578, %v3574
        %v3715 = vpack.c.b16 %v3579, %v3575
        %v3716 = vpack.c.b16 %v3580, %v3576
        %v3717 = vpack.c.b16 %v3585, %v3581
        %v3718 = vpack.c.b16 %v3586, %v3582
        %v3719 = vpack.c.b16 %v3587, %v3583
        %v3720 = vpack.c.b16 %v3588, %v3584
        %v3721 = vpack.c.b16 %v3593, %v3589
        %v3722 = vpack.c.b16 %v3594, %v3590
        %v3723 = vpack.c.b16 %v3595, %v3591
        %v3724 = vpack.c.b16 %v3596, %v3592
        %3853 = vmatprep.subr.bf16.mxu0 %v3598
        %3854 = vmatpush1.bf16.msra.mxu0 %v3597
        %3855 = vmatprep.subr.bf16.mxu0 %v3602
        %3856 = vmatpush1.bf16.msra.mxu0 %v3601
        %3857 = vmatprep.subr.bf16.mxu0 %v3606
        %3858 = vmatpush1.bf16.msra.mxu0 %v3605
        %3859 = vmatprep.subr.bf16.mxu0 %v3610
        %3860 = vmatpush1.bf16.msra.mxu0 %v3609
        %3861 = vmatprep.subr.bf16.mxu0 %v3614
        %3862 = vmatpush1.bf16.msra.mxu0 %v3613
        %3863 = vmatprep.subr.bf16.mxu0 %v3618
        %3864 = vmatpush1.bf16.msra.mxu0 %v3617
        %3865 = vmatprep.subr.bf16.mxu0 %v3622
        %3866 = vmatpush1.bf16.msra.mxu0 %v3621
        %3867 = vmatprep.subr.bf16.mxu0 %v3626
        %3868 = vmatpush1.bf16.msra.mxu0 %v3625
        %3869 = vmatprep.subr.bf16.mxu0 %v3630
        %3870 = vmatpush1.bf16.msra.mxu0 %v3629
        %3871 = vmatprep.subr.bf16.mxu0 %v3634
        %3872 = vmatpush1.bf16.msra.mxu0 %v3633
        %3873 = vmatprep.subr.bf16.mxu0 %v3638
        %3874 = vmatpush1.bf16.msra.mxu0 %v3637
        %3875 = vmatprep.subr.bf16.mxu0 %v3642
        %3876 = vmatpush1.bf16.msra.mxu0 %v3641
        %3877 = vmatprep.subr.bf16.mxu0 %v3646
        %3878 = vmatpush1.bf16.msra.mxu0 %v3645
        %3879 = vmatprep.subr.bf16.mxu0 %v3650
        %3880 = vmatpush1.bf16.msra.mxu0 %v3649
        %3881 = vmatprep.subr.bf16.mxu0 %v3654
        %3882 = vmatpush1.bf16.msra.mxu0 %v3653
        %3883 = vmatprep.subr.bf16.mxu0 %v3658
        %3884 = vmatpush1.bf16.msra.mxu0 %v3657
        %3885 = vmatprep.mubr.bf16.mxu0 %v3032
        %3886 = vmatmul.mubr.bf16.gmra.mrb[0].mxu0 %v3031
        %v3887 = vpop.f32.mrb[0].mxu0
        %v3888 = vadd.f32 %v3196, %v3887
        %v3889 = vpop.f32.mrb[0].mxu0
        %v3890 = vadd.f32 %v3200, %v3889
        %v3891 = vpop.f32.mrb[0].mxu0
        %v3892 = vadd.f32 %v3196, %v3891
        %v3893 = vpop.f32.mrb[0].mxu0
        %v3894 = vadd.f32 %v3200, %v3893
        %3895 = vmatprep.mubr.bf16.mxu0 %v3036
        %3896 = vmatmul.mubr.bf16.gmra.mrb[0].mxu0 %v3035
        %v3897 = vpop.f32.mrb[0].mxu0
        %v3898 = vadd.f32 %v3196, %v3897
        %v3899 = vpop.f32.mrb[0].mxu0
        %v3900 = vadd.f32 %v3200, %v3899
        %v3901 = vpop.f32.mrb[0].mxu0
        %v3902 = vadd.f32 %v3196, %v3901
        %v3903 = vpop.f32.mrb[0].mxu0
        %v3904 = vadd.f32 %v3200, %v3903
        %3905 = vmatprep.mubr.bf16.mxu0 %v3040
        %3906 = vmatmul.mubr.bf16.gmra.mrb[0].mxu0 %v3039
        %v3907 = vpop.f32.mrb[0].mxu0
        %v3908 = vadd.f32 %v3196, %v3907
        %v3909 = vpop.f32.mrb[0].mxu0
        %v3910 = vadd.f32 %v3200, %v3909
        %v3911 = vpop.f32.mrb[0].mxu0
        %v3912 = vadd.f32 %v3196, %v3911
        %v3913 = vpop.f32.mrb[0].mxu0
        %v3914 = vadd.f32 %v3200, %v3913
        %3915 = vmatprep.mubr.bf16.mxu0 %v3044
        %3916 = vmatmul.mubr.bf16.gmra.mrb[0].mxu0 %v3043
        %v3917 = vpop.f32.mrb[0].mxu0
        %v3918 = vadd.f32 %v3196, %v3917
        %v3919 = vpop.f32.mrb[0].mxu0
        %v3920 = vadd.f32 %v3200, %v3919
        %v3921 = vpop.f32.mrb[0].mxu0
        %v3922 = vadd.f32 %v3196, %v3921
        %v3923 = vpop.f32.mrb[0].mxu0
        %v3924 = vadd.f32 %v3200, %v3923
        %3925 = vmatprep.mubr.bf16.mxu0 %v3048
        %3926 = vmatmul.mubr.bf16.gmra.mrb[0].mxu0 %v3047
        %v3927 = vpop.f32.mrb[0].mxu0
        %v3928 = vadd.f32 %v3196, %v3927
        %v3929 = vpop.f32.mrb[0].mxu0
        %v3930 = vadd.f32 %v3200, %v3929
        %v3931 = vpop.f32.mrb[0].mxu0
        %v3932 = vadd.f32 %v3196, %v3931
        %v3933 = vpop.f32.mrb[0].mxu0
        %v3934 = vadd.f32 %v3200, %v3933
        %3935 = vmatprep.mubr.bf16.mxu0 %v3052
        %3936 = vmatmul.mubr.bf16.gmra.mrb[0].mxu0 %v3051
        %v3937 = vpop.f32.mrb[0].mxu0
        %v3938 = vadd.f32 %v3196, %v3937
        %v3939 = vpop.f32.mrb[0].mxu0
        %v3940 = vadd.f32 %v3200, %v3939
        %v3941 = vpop.f32.mrb[0].mxu0
        %v3942 = vadd.f32 %v3196, %v3941
        %v3943 = vpop.f32.mrb[0].mxu0
        %v3944 = vadd.f32 %v3200, %v3943
        %3945 = vmatprep.mubr.bf16.mxu0 %v3056
        %3946 = vmatmul.mubr.bf16.gmra.mrb[0].mxu0 %v3055
        %v3947 = vpop.f32.mrb[0].mxu0
        %v3948 = vadd.f32 %v3196, %v3947
        %v3949 = vpop.f32.mrb[0].mxu0
        %v3950 = vadd.f32 %v3200, %v3949
        %v3951 = vpop.f32.mrb[0].mxu0
        %v3952 = vadd.f32 %v3196, %v3951
        %v3953 = vpop.f32.mrb[0].mxu0
        %v3954 = vadd.f32 %v3200, %v3953
        %3955 = vmatprep.mubr.bf16.mxu0 %v3060
        %3956 = vmatmul.mubr.bf16.gmra.mrb[0].mxu0 %v3059
        %v3957 = vpop.f32.mrb[0].mxu0
        %v3958 = vadd.f32 %v3196, %v3957
        %v3959 = vpop.f32.mrb[0].mxu0
        %v3960 = vadd.f32 %v3200, %v3959
        %v3961 = vpop.f32.mrb[0].mxu0
        %v3962 = vadd.f32 %v3196, %v3961
        %v3963 = vpop.f32.mrb[0].mxu0
        %v3964 = vadd.f32 %v3200, %v3963
        %3965 = vdwg.mxu0
        %3966 = vmatprep.subr.bf16.mxu0 %v3662
        %3967 = vmatpush1.bf16.msra.mxu0 %v3661
        %3968 = vmatprep.subr.bf16.mxu0 %v3666
        %3969 = vmatpush1.bf16.msra.mxu0 %v3665
        %3970 = vmatprep.subr.bf16.mxu0 %v3670
        %3971 = vmatpush1.bf16.msra.mxu0 %v3669
        %3972 = vmatprep.subr.bf16.mxu0 %v3674
        %3973 = vmatpush1.bf16.msra.mxu0 %v3673
        %3974 = vmatprep.subr.bf16.mxu0 %v3678
        %3975 = vmatpush1.bf16.msra.mxu0 %v3677
        %3976 = vmatprep.subr.bf16.mxu0 %v3682
        %3977 = vmatpush1.bf16.msra.mxu0 %v3681
        %3978 = vmatprep.subr.bf16.mxu0 %v3686
        %3979 = vmatpush1.bf16.msra.mxu0 %v3685
        %3980 = vmatprep.subr.bf16.mxu0 %v3690
        %3981 = vmatpush1.bf16.msra.mxu0 %v3689
        %3982 = vmatprep.subr.bf16.mxu0 %v3694
        %3983 = vmatpush1.bf16.msra.mxu0 %v3693
        %3984 = vmatprep.subr.bf16.mxu0 %v3698
        %3985 = vmatpush1.bf16.msra.mxu0 %v3697
        %3986 = vmatprep.subr.bf16.mxu0 %v3702
        %3987 = vmatpush1.bf16.msra.mxu0 %v3701
        %3988 = vmatprep.subr.bf16.mxu0 %v3706
        %3989 = vmatpush1.bf16.msra.mxu0 %v3705
        %3990 = vmatprep.subr.bf16.mxu0 %v3710
        %3991 = vmatpush1.bf16.msra.mxu0 %v3709
        %3992 = vmatprep.subr.bf16.mxu0 %v3714
        %3993 = vmatpush1.bf16.msra.mxu0 %v3713
        %3994 = vmatprep.subr.bf16.mxu0 %v3718
        %3995 = vmatpush1.bf16.msra.mxu0 %v3717
        %3996 = vmatprep.subr.bf16.mxu0 %v3722
        %3997 = vmatpush1.bf16.msra.mxu0 %v3721
        %3998 = vmatprep.mubr.bf16.mxu0 %v3034
        %3999 = vmatmul.mubr.bf16.gmra.mrb[0].mxu0 %v3033
        %v4000 = vpop.f32.mrb[0].mxu0
        %v4001 = vadd.f32 %v3888, %v4000
        %v4002 = vpop.f32.mrb[0].mxu0
        %v4003 = vadd.f32 %v3890, %v4002
        %v4004 = vpop.f32.mrb[0].mxu0
        %v4005 = vadd.f32 %v3892, %v4004
        %v4006 = vpop.f32.mrb[0].mxu0
        %v4007 = vadd.f32 %v3894, %v4006
        %4008 = vmatprep.mubr.bf16.mxu0 %v3038
        %4009 = vmatmul.mubr.bf16.gmra.mrb[0].mxu0 %v3037
        %v4010 = vpop.f32.mrb[0].mxu0
        %v4011 = vadd.f32 %v3898, %v4010
        %v4012 = vpop.f32.mrb[0].mxu0
        %v4013 = vadd.f32 %v3900, %v4012
        %v4014 = vpop.f32.mrb[0].mxu0
        %v4015 = vadd.f32 %v3902, %v4014
        %v4016 = vpop.f32.mrb[0].mxu0
        %v4017 = vadd.f32 %v3904, %v4016
        %4018 = vmatprep.mubr.bf16.mxu0 %v3042
        %4019 = vmatmul.mubr.bf16.gmra.mrb[0].mxu0 %v3041
        %v4020 = vpop.f32.mrb[0].mxu0
        %v4021 = vadd.f32 %v3908, %v4020
        %v4022 = vpop.f32.mrb[0].mxu0
        %v4023 = vadd.f32 %v3910, %v4022
        %v4024 = vpop.f32.mrb[0].mxu0
        %v4025 = vadd.f32 %v3912, %v4024
        %v4026 = vpop.f32.mrb[0].mxu0
        %v4027 = vadd.f32 %v3914, %v4026
        %4028 = vmatprep.mubr.bf16.mxu0 %v3046
        %4029 = vmatmul.mubr.bf16.gmra.mrb[0].mxu0 %v3045
        %v4030 = vpop.f32.mrb[0].mxu0
        %v4031 = vadd.f32 %v3918, %v4030
        %v4032 = vpop.f32.mrb[0].mxu0
        %v4033 = vadd.f32 %v3920, %v4032
        %v4034 = vpop.f32.mrb[0].mxu0
        %v4035 = vadd.f32 %v3922, %v4034
        %v4036 = vpop.f32.mrb[0].mxu0
        %v4037 = vadd.f32 %v3924, %v4036
        %4038 = vmatprep.mubr.bf16.mxu0 %v3050
        %4039 = vmatmul.mubr.bf16.gmra.mrb[0].mxu0 %v3049
        %v4040 = vpop.f32.mrb[0].mxu0
        %v4041 = vadd.f32 %v3928, %v4040
        %v4042 = vpop.f32.mrb[0].mxu0
        %v4043 = vadd.f32 %v3930, %v4042
        %v4044 = vpop.f32.mrb[0].mxu0
        %v4045 = vadd.f32 %v3932, %v4044
        %v4046 = vpop.f32.mrb[0].mxu0
        %v4047 = vadd.f32 %v3934, %v4046
        %4048 = vmatprep.mubr.bf16.mxu0 %v3054
        %4049 = vmatmul.mubr.bf16.gmra.mrb[0].mxu0 %v3053
        %v4050 = vpop.f32.mrb[0].mxu0
        %v4051 = vadd.f32 %v3938, %v4050
        %v4052 = vpop.f32.mrb[0].mxu0
        %v4053 = vadd.f32 %v3940, %v4052
        %v4054 = vpop.f32.mrb[0].mxu0
        %v4055 = vadd.f32 %v3942, %v4054
        %v4056 = vpop.f32.mrb[0].mxu0
        %v4057 = vadd.f32 %v3944, %v4056
        %4058 = vmatprep.mubr.bf16.mxu0 %v3058
        %4059 = vmatmul.mubr.bf16.gmra.mrb[0].mxu0 %v3057
        %v4060 = vpop.f32.mrb[0].mxu0
        %v4061 = vadd.f32 %v3948, %v4060
        %v4062 = vpop.f32.mrb[0].mxu0
        %v4063 = vadd.f32 %v3950, %v4062
        %v4064 = vpop.f32.mrb[0].mxu0
        %v4065 = vadd.f32 %v3952, %v4064
        %v4066 = vpop.f32.mrb[0].mxu0
        %v4067 = vadd.f32 %v3954, %v4066
        %4068 = vmatprep.mubr.bf16.mxu0 %v3062
        %4069 = vmatmul.mubr.bf16.gmra.mrb[0].mxu0 %v3061
        %v4070 = vpop.f32.mrb[0].mxu0
        %v4071 = vadd.f32 %v3958, %v4070
        %v4072 = vpop.f32.mrb[0].mxu0
        %v4073 = vadd.f32 %v3960, %v4072
        %v4074 = vpop.f32.mrb[0].mxu0
        %v4075 = vadd.f32 %v3962, %v4074
        %v4076 = vpop.f32.mrb[0].mxu0
        %v4077 = vadd.f32 %v3964, %v4076
        %4078 = vdwg.mxu0
        %4079 = vmatprep.subr.bf16.mxu0 %v3600
        %4080 = vmatpush1.bf16.msra.mxu0 %v3599
        %4081 = vmatprep.subr.bf16.mxu0 %v3604
        %4082 = vmatpush1.bf16.msra.mxu0 %v3603
        %4083 = vmatprep.subr.bf16.mxu0 %v3608
        %4084 = vmatpush1.bf16.msra.mxu0 %v3607
        %4085 = vmatprep.subr.bf16.mxu0 %v3612
        %4086 = vmatpush1.bf16.msra.mxu0 %v3611
        %4087 = vmatprep.subr.bf16.mxu0 %v3616
        %4088 = vmatpush1.bf16.msra.mxu0 %v3615
        %4089 = vmatprep.subr.bf16.mxu0 %v3620
        %4090 = vmatpush1.bf16.msra.mxu0 %v3619
        %4091 = vmatprep.subr.bf16.mxu0 %v3624
        %4092 = vmatpush1.bf16.msra.mxu0 %v3623
        %4093 = vmatprep.subr.bf16.mxu0 %v3628
        %4094 = vmatpush1.bf16.msra.mxu0 %v3627
        %4095 = vmatprep.subr.bf16.mxu0 %v3632
        %4096 = vmatpush1.bf16.msra.mxu0 %v3631
        %4097 = vmatprep.subr.bf16.mxu0 %v3636
        %4098 = vmatpush1.bf16.msra.mxu0 %v3635
        %4099 = vmatprep.subr.bf16.mxu0 %v3640
        %4100 = vmatpush1.bf16.msra.mxu0 %v3639
        %4101 = vmatprep.subr.bf16.mxu0 %v3644
        %4102 = vmatpush1.bf16.msra.mxu0 %v3643
        %4103 = vmatprep.subr.bf16.mxu0 %v3648
        %4104 = vmatpush1.bf16.msra.mxu0 %v3647
        %4105 = vmatprep.subr.bf16.mxu0 %v3652
        %4106 = vmatpush1.bf16.msra.mxu0 %v3651
        %4107 = vmatprep.subr.bf16.mxu0 %v3656
        %4108 = vmatpush1.bf16.msra.mxu0 %v3655
        %4109 = vmatprep.subr.bf16.mxu0 %v3660
        %4110 = vmatpush1.bf16.msra.mxu0 %v3659
        %4111 = vmatprep.mubr.bf16.mxu0 %v3032
        %4112 = vmatmul.mubr.bf16.gmra.mrb[0].mxu0 %v3031
        %v4113 = vpop.f32.mrb[0].mxu0
        %v4114 = vadd.f32 %v3204, %v4113
        %v4115 = vpop.f32.mrb[0].mxu0
        %v4116 = vadd.f32 %v3208, %v4115
        %v4117 = vpop.f32.mrb[0].mxu0
        %v4118 = vadd.f32 %v3204, %v4117
        %v4119 = vpop.f32.mrb[0].mxu0
        %v4120 = vadd.f32 %v3208, %v4119
        %4121 = vmatprep.mubr.bf16.mxu0 %v3036
        %4122 = vmatmul.mubr.bf16.gmra.mrb[0].mxu0 %v3035
        %v4123 = vpop.f32.mrb[0].mxu0
        %v4124 = vadd.f32 %v3204, %v4123
        %v4125 = vpop.f32.mrb[0].mxu0
        %v4126 = vadd.f32 %v3208, %v4125
        %v4127 = vpop.f32.mrb[0].mxu0
        %v4128 = vadd.f32 %v3204, %v4127
        %v4129 = vpop.f32.mrb[0].mxu0
        %v4130 = vadd.f32 %v3208, %v4129
        %4131 = vmatprep.mubr.bf16.mxu0 %v3040
        %4132 = vmatmul.mubr.bf16.gmra.mrb[0].mxu0 %v3039
        %v4133 = vpop.f32.mrb[0].mxu0
        %v4134 = vadd.f32 %v3204, %v4133
        %v4135 = vpop.f32.mrb[0].mxu0
        %v4136 = vadd.f32 %v3208, %v4135
        %v4137 = vpop.f32.mrb[0].mxu0
        %v4138 = vadd.f32 %v3204, %v4137
        %v4139 = vpop.f32.mrb[0].mxu0
        %v4140 = vadd.f32 %v3208, %v4139
        %4141 = vmatprep.mubr.bf16.mxu0 %v3044
        %4142 = vmatmul.mubr.bf16.gmra.mrb[0].mxu0 %v3043
        %v4143 = vpop.f32.mrb[0].mxu0
        %v4144 = vadd.f32 %v3204, %v4143
        %v4145 = vpop.f32.mrb[0].mxu0
        %v4146 = vadd.f32 %v3208, %v4145
        %v4147 = vpop.f32.mrb[0].mxu0
        %v4148 = vadd.f32 %v3204, %v4147
        %v4149 = vpop.f32.mrb[0].mxu0
        %v4150 = vadd.f32 %v3208, %v4149
        %4151 = vmatprep.mubr.bf16.mxu0 %v3048
        %4152 = vmatmul.mubr.bf16.gmra.mrb[0].mxu0 %v3047
        %v4153 = vpop.f32.mrb[0].mxu0
        %v4154 = vadd.f32 %v3204, %v4153
        %v4155 = vpop.f32.mrb[0].mxu0
        %v4156 = vadd.f32 %v3208, %v4155
        %v4157 = vpop.f32.mrb[0].mxu0
        %v4158 = vadd.f32 %v3204, %v4157
        %v4159 = vpop.f32.mrb[0].mxu0
        %v4160 = vadd.f32 %v3208, %v4159
        %4161 = vmatprep.mubr.bf16.mxu0 %v3052
        %4162 = vmatmul.mubr.bf16.gmra.mrb[0].mxu0 %v3051
        %v4163 = vpop.f32.mrb[0].mxu0
        %v4164 = vadd.f32 %v3204, %v4163
        %v4165 = vpop.f32.mrb[0].mxu0
        %v4166 = vadd.f32 %v3208, %v4165
        %v4167 = vpop.f32.mrb[0].mxu0
        %v4168 = vadd.f32 %v3204, %v4167
        %v4169 = vpop.f32.mrb[0].mxu0
        %v4170 = vadd.f32 %v3208, %v4169
        %4171 = vmatprep.mubr.bf16.mxu0 %v3056
        %4172 = vmatmul.mubr.bf16.gmra.mrb[0].mxu0 %v3055
        %v4173 = vpop.f32.mrb[0].mxu0
        %v4174 = vadd.f32 %v3204, %v4173
        %v4175 = vpop.f32.mrb[0].mxu0
        %v4176 = vadd.f32 %v3208, %v4175
        %v4177 = vpop.f32.mrb[0].mxu0
        %v4178 = vadd.f32 %v3204, %v4177
        %v4179 = vpop.f32.mrb[0].mxu0
        %v4180 = vadd.f32 %v3208, %v4179
        %4181 = vmatprep.mubr.bf16.mxu0 %v3060
        %4182 = vmatmul.mubr.bf16.gmra.mrb[0].mxu0 %v3059
        %v4183 = vpop.f32.mrb[0].mxu0
        %v4184 = vadd.f32 %v3204, %v4183
        %v4185 = vpop.f32.mrb[0].mxu0
        %v4186 = vadd.f32 %v3208, %v4185
        %v4187 = vpop.f32.mrb[0].mxu0
        %v4188 = vadd.f32 %v3204, %v4187
        %v4189 = vpop.f32.mrb[0].mxu0
        %v4190 = vadd.f32 %v3208, %v4189
        %4191 = vdwg.mxu0
        %4192 = vmatprep.subr.bf16.mxu0 %v3664
        %4193 = vmatpush1.bf16.msra.mxu0 %v3663
        %4194 = vmatprep.subr.bf16.mxu0 %v3668
        %4195 = vmatpush1.bf16.msra.mxu0 %v3667
        %4196 = vmatprep.subr.bf16.mxu0 %v3672
        %4197 = vmatpush1.bf16.msra.mxu0 %v3671
        %4198 = vmatprep.subr.bf16.mxu0 %v3676
        %4199 = vmatpush1.bf16.msra.mxu0 %v3675
        %4200 = vmatprep.subr.bf16.mxu0 %v3680
        %4201 = vmatpush1.bf16.msra.mxu0 %v3679
        %4202 = vmatprep.subr.bf16.mxu0 %v3684
        %4203 = vmatpush1.bf16.msra.mxu0 %v3683
        %4204 = vmatprep.subr.bf16.mxu0 %v3688
        %4205 = vmatpush1.bf16.msra.mxu0 %v3687
        %4206 = vmatprep.subr.bf16.mxu0 %v3692
        %4207 = vmatpush1.bf16.msra.mxu0 %v3691
        %4208 = vmatprep.subr.bf16.mxu0 %v3696
        %4209 = vmatpush1.bf16.msra.mxu0 %v3695
        %4210 = vmatprep.subr.bf16.mxu0 %v3700
        %4211 = vmatpush1.bf16.msra.mxu0 %v3699
        %4212 = vmatprep.subr.bf16.mxu0 %v3704
        %4213 = vmatpush1.bf16.msra.mxu0 %v3703
        %4214 = vmatprep.subr.bf16.mxu0 %v3708
        %4215 = vmatpush1.bf16.msra.mxu0 %v3707
        %4216 = vmatprep.subr.bf16.mxu0 %v3712
        %4217 = vmatpush1.bf16.msra.mxu0 %v3711
        %4218 = vmatprep.subr.bf16.mxu0 %v3716
        %4219 = vmatpush1.bf16.msra.mxu0 %v3715
        %4220 = vmatprep.subr.bf16.mxu0 %v3720
        %4221 = vmatpush1.bf16.msra.mxu0 %v3719
        %4222 = vmatprep.subr.bf16.mxu0 %v3724
        %4223 = vmatpush1.bf16.msra.mxu0 %v3723
        %4224 = vmatprep.mubr.bf16.mxu0 %v3034
        %4225 = vmatmul.mubr.bf16.gmra.mrb[0].mxu0 %v3033
        %v4226 = vpop.f32.mrb[0].mxu0
        %v4227 = vadd.f32 %v4114, %v4226
        %v4228 = vpop.f32.mrb[0].mxu0
        %v4229 = vadd.f32 %v4116, %v4228
        %v4230 = vpop.f32.mrb[0].mxu0
        %v4231 = vadd.f32 %v4118, %v4230
        %v4232 = vpop.f32.mrb[0].mxu0
        %v4233 = vadd.f32 %v4120, %v4232
        %4234 = vmatprep.mubr.bf16.mxu0 %v3038
        %4235 = vmatmul.mubr.bf16.gmra.mrb[0].mxu0 %v3037
        %v4236 = vpop.f32.mrb[0].mxu0
        %v4237 = vadd.f32 %v4124, %v4236
        %v4238 = vpop.f32.mrb[0].mxu0
        %v4239 = vadd.f32 %v4126, %v4238
        %v4240 = vpop.f32.mrb[0].mxu0
        %v4241 = vadd.f32 %v4128, %v4240
        %v4242 = vpop.f32.mrb[0].mxu0
        %v4243 = vadd.f32 %v4130, %v4242
        %4244 = vmatprep.mubr.bf16.mxu0 %v3042
        %4245 = vmatmul.mubr.bf16.gmra.mrb[0].mxu0 %v3041
        %v4246 = vpop.f32.mrb[0].mxu0
        %v4247 = vadd.f32 %v4134, %v4246
        %v4248 = vpop.f32.mrb[0].mxu0
        %v4249 = vadd.f32 %v4136, %v4248
        %v4250 = vpop.f32.mrb[0].mxu0
        %v4251 = vadd.f32 %v4138, %v4250
        %v4252 = vpop.f32.mrb[0].mxu0
        %v4253 = vadd.f32 %v4140, %v4252
        %4254 = vmatprep.mubr.bf16.mxu0 %v3046
        %4255 = vmatmul.mubr.bf16.gmra.mrb[0].mxu0 %v3045
        %v4256 = vpop.f32.mrb[0].mxu0
        %v4257 = vadd.f32 %v4144, %v4256
        %v4258 = vpop.f32.mrb[0].mxu0
        %v4259 = vadd.f32 %v4146, %v4258
        %v4260 = vpop.f32.mrb[0].mxu0
        %v4261 = vadd.f32 %v4148, %v4260
        %v4262 = vpop.f32.mrb[0].mxu0
        %v4263 = vadd.f32 %v4150, %v4262
        %4264 = vmatprep.mubr.bf16.mxu0 %v3050
        %4265 = vmatmul.mubr.bf16.gmra.mrb[0].mxu0 %v3049
        %v4266 = vpop.f32.mrb[0].mxu0
        %v4267 = vadd.f32 %v4154, %v4266
        %v4268 = vpop.f32.mrb[0].mxu0
        %v4269 = vadd.f32 %v4156, %v4268
        %v4270 = vpop.f32.mrb[0].mxu0
        %v4271 = vadd.f32 %v4158, %v4270
        %v4272 = vpop.f32.mrb[0].mxu0
        %v4273 = vadd.f32 %v4160, %v4272
        %4274 = vmatprep.mubr.bf16.mxu0 %v3054
        %4275 = vmatmul.mubr.bf16.gmra.mrb[0].mxu0 %v3053
        %v4276 = vpop.f32.mrb[0].mxu0
        %v4277 = vadd.f32 %v4164, %v4276
        %v4278 = vpop.f32.mrb[0].mxu0
        %v4279 = vadd.f32 %v4166, %v4278
        %v4280 = vpop.f32.mrb[0].mxu0
        %v4281 = vadd.f32 %v4168, %v4280
        %v4282 = vpop.f32.mrb[0].mxu0
        %v4283 = vadd.f32 %v4170, %v4282
        %4284 = vmatprep.mubr.bf16.mxu0 %v3058
        %4285 = vmatmul.mubr.bf16.gmra.mrb[0].mxu0 %v3057
        %v4286 = vpop.f32.mrb[0].mxu0
        %v4287 = vadd.f32 %v4174, %v4286
        %v4288 = vpop.f32.mrb[0].mxu0
        %v4289 = vadd.f32 %v4176, %v4288
        %v4290 = vpop.f32.mrb[0].mxu0
        %v4291 = vadd.f32 %v4178, %v4290
        %v4292 = vpop.f32.mrb[0].mxu0
        %v4293 = vadd.f32 %v4180, %v4292
        %4294 = vmatprep.mubr.bf16.mxu0 %v3062
        %4295 = vmatmul.mubr.bf16.gmra.mrb[0].mxu0 %v3061
        %v4296 = vpop.f32.mrb[0].mxu0
        %v4297 = vadd.f32 %v4184, %v4296
        %v4298 = vpop.f32.mrb[0].mxu0
        %v4299 = vadd.f32 %v4186, %v4298
        %v4300 = vpop.f32.mrb[0].mxu0
        %v4301 = vadd.f32 %v4188, %v4300
        %v4302 = vpop.f32.mrb[0].mxu0
        %v4303 = vadd.f32 %v4190, %v4302
        %4304 = vdwg.mxu0
        %v4305 = vmax.f32 %v4001, 0.0
        %v4306 = vmax.f32 %v4003, 0.0
        %v4307 = vmax.f32 %v4227, 0.0
        %v4308 = vmax.f32 %v4229, 0.0
        %v4309 = vmax.f32 %v4005, 0.0
        %v4310 = vmax.f32 %v4007, 0.0
        %v4311 = vmax.f32 %v4231, 0.0
        %v4312 = vmax.f32 %v4233, 0.0
        %v4313 = vmax.f32 %v4011, 0.0
        %v4314 = vmax.f32 %v4013, 0.0
        %v4315 = vmax.f32 %v4237, 0.0
        %v4316 = vmax.f32 %v4239, 0.0
        %v4317 = vmax.f32 %v4015, 0.0
        %v4318 = vmax.f32 %v4017, 0.0
        %v4319 = vmax.f32 %v4241, 0.0
        %v4320 = vmax.f32 %v4243, 0.0
        %v4321 = vmax.f32 %v4021, 0.0
        %v4322 = vmax.f32 %v4023, 0.0
        %v4323 = vmax.f32 %v4247, 0.0
        %v4324 = vmax.f32 %v4249, 0.0
        %v4325 = vmax.f32 %v4025, 0.0
        %v4326 = vmax.f32 %v4027, 0.0
        %v4327 = vmax.f32 %v4251, 0.0
        %v4328 = vmax.f32 %v4253, 0.0
        %v4329 = vmax.f32 %v4031, 0.0
        %v4330 = vmax.f32 %v4033, 0.0
        %v4331 = vmax.f32 %v4257, 0.0
        %v4332 = vmax.f32 %v4259, 0.0
        %v4333 = vmax.f32 %v4035, 0.0
        %v4334 = vmax.f32 %v4037, 0.0
        %v4335 = vmax.f32 %v4261, 0.0
        %v4336 = vmax.f32 %v4263, 0.0
        %v4337 = vmax.f32 %v4041, 0.0
        %v4338 = vmax.f32 %v4043, 0.0
        %v4339 = vmax.f32 %v4267, 0.0
        %v4340 = vmax.f32 %v4269, 0.0
        %v4341 = vmax.f32 %v4045, 0.0
        %v4342 = vmax.f32 %v4047, 0.0
        %v4343 = vmax.f32 %v4271, 0.0
        %v4344 = vmax.f32 %v4273, 0.0
        %v4345 = vmax.f32 %v4051, 0.0
        %v4346 = vmax.f32 %v4053, 0.0
        %v4347 = vmax.f32 %v4277, 0.0
        %v4348 = vmax.f32 %v4279, 0.0
        %v4349 = vmax.f32 %v4055, 0.0
        %v4350 = vmax.f32 %v4057, 0.0
        %v4351 = vmax.f32 %v4281, 0.0
        %v4352 = vmax.f32 %v4283, 0.0
        %v4353 = vmax.f32 %v4061, 0.0
        %v4354 = vmax.f32 %v4063, 0.0
        %v4355 = vmax.f32 %v4287, 0.0
        %v4356 = vmax.f32 %v4289, 0.0
        %v4357 = vmax.f32 %v4065, 0.0
        %v4358 = vmax.f32 %v4067, 0.0
        %v4359 = vmax.f32 %v4291, 0.0
        %v4360 = vmax.f32 %v4293, 0.0
        %v4361 = vmax.f32 %v4071, 0.0
        %v4362 = vmax.f32 %v4073, 0.0
        %v4363 = vmax.f32 %v4297, 0.0
        %v4364 = vmax.f32 %v4299, 0.0
        %v4365 = vmax.f32 %v4075, 0.0
        %v4366 = vmax.f32 %v4077, 0.0
        %v4367 = vmax.f32 %v4301, 0.0
        %v4368 = vmax.f32 %v4303, 0.0
        %v4369 = vpack.c.bf16 %v4309, %v4305
        %v4370 = vpack.c.bf16 %v4310, %v4306
        %v4371 = vpack.c.bf16 %v4311, %v4307
        %v4372 = vpack.c.bf16 %v4312, %v4308
        %v4373 = vpack.c.bf16 %v4317, %v4313
        %v4374 = vpack.c.bf16 %v4318, %v4314
        %v4375 = vpack.c.bf16 %v4319, %v4315
        %v4376 = vpack.c.bf16 %v4320, %v4316
        %v4377 = vpack.c.bf16 %v4325, %v4321
        %v4378 = vpack.c.bf16 %v4326, %v4322
        %v4379 = vpack.c.bf16 %v4327, %v4323
        %v4380 = vpack.c.bf16 %v4328, %v4324
        %v4381 = vpack.c.bf16 %v4333, %v4329
        %v4382 = vpack.c.bf16 %v4334, %v4330
        %v4383 = vpack.c.bf16 %v4335, %v4331
        %v4384 = vpack.c.bf16 %v4336, %v4332
        %v4385 = vpack.c.bf16 %v4341, %v4337
        %v4386 = vpack.c.bf16 %v4342, %v4338
        %v4387 = vpack.c.bf16 %v4343, %v4339
        %v4388 = vpack.c.bf16 %v4344, %v4340
        %v4389 = vpack.c.bf16 %v4349, %v4345
        %v4390 = vpack.c.bf16 %v4350, %v4346
        %v4391 = vpack.c.bf16 %v4351, %v4347
        %v4392 = vpack.c.bf16 %v4352, %v4348
        %v4393 = vpack.c.bf16 %v4357, %v4353
        %v4394 = vpack.c.bf16 %v4358, %v4354
        %v4395 = vpack.c.bf16 %v4359, %v4355
        %v4396 = vpack.c.bf16 %v4360, %v4356
        %v4397 = vpack.c.bf16 %v4365, %v4361
        %v4398 = vpack.c.bf16 %v4366, %v4362
        %v4399 = vpack.c.bf16 %v4367, %v4363
        %v4400 = vpack.c.bf16 %v4368, %v4364
        %v4401 = vld [vmem:[#allocation8] sm:$0xf]
        %v4402 = vld [vmem:[#allocation8 + $0x4] sm:$0xf]
        %v4403 = vld [vmem:[#allocation8 + $0x8] sm:$0xf]
        %v4404 = vld [vmem:[#allocation8 + $0xc] sm:$0xf]
        %v4405 = vld [vmem:[#allocation8 + $0x10] sm:$0xf]
        %v4406 = vld [vmem:[#allocation8 + $0x14] sm:$0xf]
        %v4407 = vld [vmem:[#allocation8 + $0x18] sm:$0xf]
        %v4408 = vld [vmem:[#allocation8 + $0x1c] sm:$0xf]
        %v4409 = vld [vmem:[#allocation8 + $0x20] sm:$0xf]
        %v4410 = vld [vmem:[#allocation8 + $0x24] sm:$0xf]
        %v4411 = vld [vmem:[#allocation8 + $0x28] sm:$0xf]
        %v4412 = vld [vmem:[#allocation8 + $0x2c] sm:$0xf]
        %v4413 = vld [vmem:[#allocation8 + $0x30] sm:$0xf]
        %v4414 = vld [vmem:[#allocation8 + $0x34] sm:$0xf]
        %v4415 = vld [vmem:[#allocation8 + $0x38] sm:$0xf]
        %v4416 = vld [vmem:[#allocation8 + $0x3c] sm:$0xf]
        %v4417 = vld [vmem:[#allocation8 + $0x40] sm:$0xf]
        %v4418 = vld [vmem:[#allocation8 + $0x44] sm:$0xf]
        %v4419 = vld [vmem:[#allocation8 + $0x48] sm:$0xf]
        %v4420 = vld [vmem:[#allocation8 + $0x4c] sm:$0xf]
        %v4421 = vld [vmem:[#allocation8 + $0x50] sm:$0xf]
        %v4422 = vld [vmem:[#allocation8 + $0x54] sm:$0xf]
        %v4423 = vld [vmem:[#allocation8 + $0x58] sm:$0xf]
        %v4424 = vld [vmem:[#allocation8 + $0x5c] sm:$0xf]
        %v4425 = vld [vmem:[#allocation8 + $0x60] sm:$0xf]
        %v4426 = vld [vmem:[#allocation8 + $0x64] sm:$0xf]
        %v4427 = vld [vmem:[#allocation8 + $0x68] sm:$0xf]
        %v4428 = vld [vmem:[#allocation8 + $0x6c] sm:$0xf]
        %v4429 = vld [vmem:[#allocation8 + $0x70] sm:$0xf]
        %v4430 = vld [vmem:[#allocation8 + $0x74] sm:$0xf]
        %v4431 = vld [vmem:[#allocation8 + $0x78] sm:$0xf]
        %v4432 = vld [vmem:[#allocation8 + $0x7c] sm:$0xf]
        %v4433 = vld [vmem:[#allocation8 + $0x80] sm:$0xf]
        %v4434 = vld [vmem:[#allocation8 + $0x84] sm:$0xf]
        %v4435 = vld [vmem:[#allocation8 + $0x88] sm:$0xf]
        %v4436 = vld [vmem:[#allocation8 + $0x8c] sm:$0xf]
        %v4437 = vld [vmem:[#allocation8 + $0x90] sm:$0xf]
        %v4438 = vld [vmem:[#allocation8 + $0x94] sm:$0xf]
        %v4439 = vld [vmem:[#allocation8 + $0x98] sm:$0xf]
        %v4440 = vld [vmem:[#allocation8 + $0x9c] sm:$0xf]
        %v4441 = vld [vmem:[#allocation8 + $0xa0] sm:$0xf]
        %v4442 = vld [vmem:[#allocation8 + $0xa4] sm:$0xf]
        %v4443 = vld [vmem:[#allocation8 + $0xa8] sm:$0xf]
        %v4444 = vld [vmem:[#allocation8 + $0xac] sm:$0xf]
        %v4445 = vld [vmem:[#allocation8 + $0xb0] sm:$0xf]
        %v4446 = vld [vmem:[#allocation8 + $0xb4] sm:$0xf]
        %v4447 = vld [vmem:[#allocation8 + $0xb8] sm:$0xf]
        %v4448 = vld [vmem:[#allocation8 + $0xbc] sm:$0xf]
        %v4449 = vld [vmem:[#allocation8 + $0xc0] sm:$0xf]
        %v4450 = vld [vmem:[#allocation8 + $0xc4] sm:$0xf]
        %v4451 = vld [vmem:[#allocation8 + $0xc8] sm:$0xf]
        %v4452 = vld [vmem:[#allocation8 + $0xcc] sm:$0xf]
        %v4453 = vld [vmem:[#allocation8 + $0xd0] sm:$0xf]
        %v4454 = vld [vmem:[#allocation8 + $0xd4] sm:$0xf]
        %v4455 = vld [vmem:[#allocation8 + $0xd8] sm:$0xf]
        %v4456 = vld [vmem:[#allocation8 + $0xdc] sm:$0xf]
        %v4457 = vld [vmem:[#allocation8 + $0xe0] sm:$0xf]
        %v4458 = vld [vmem:[#allocation8 + $0xe4] sm:$0xf]
        %v4459 = vld [vmem:[#allocation8 + $0xe8] sm:$0xf]
        %v4460 = vld [vmem:[#allocation8 + $0xec] sm:$0xf]
        %v4461 = vld [vmem:[#allocation8 + $0xf0] sm:$0xf]
        %v4462 = vld [vmem:[#allocation8 + $0xf4] sm:$0xf]
        %v4463 = vld [vmem:[#allocation8 + $0xf8] sm:$0xf]
        %v4464 = vld [vmem:[#allocation8 + $0xfc] sm:$0xf]
        %v4465 = vld [vmem:[%s6] sm:$0x1]
        %v4467 = vlaneseq
        %v4468 = vshrl.u32 %v4467, 7
        %v4469 = vsub.s32 0, %v4468
        %v4470 = vrot.slane %v4465, %v4469
        %v4536 = vunpack.c.l.b16 %v4401
        %v4537 = vunpack.c.l.b16 %v4402
        %v4538 = vunpack.c.l.b16 %v4403
        %v4539 = vunpack.c.l.b16 %v4404
        %v4540 = vunpack.c.l.b16 %v4405
        %v4541 = vunpack.c.l.b16 %v4406
        %v4542 = vunpack.c.l.b16 %v4407
        %v4543 = vunpack.c.l.b16 %v4408
        %v4544 = vunpack.c.l.b16 %v4409
        %v4545 = vunpack.c.l.b16 %v4410
        %v4546 = vunpack.c.l.b16 %v4411
        %v4547 = vunpack.c.l.b16 %v4412
        %v4548 = vunpack.c.l.b16 %v4413
        %v4549 = vunpack.c.l.b16 %v4414
        %v4550 = vunpack.c.l.b16 %v4415
        %v4551 = vunpack.c.l.b16 %v4416
        %v4552 = vunpack.c.l.b16 %v4417
        %v4553 = vunpack.c.l.b16 %v4418
        %v4554 = vunpack.c.l.b16 %v4419
        %v4555 = vunpack.c.l.b16 %v4420
        %v4556 = vunpack.c.l.b16 %v4421
        %v4557 = vunpack.c.l.b16 %v4422
        %v4558 = vunpack.c.l.b16 %v4423
        %v4559 = vunpack.c.l.b16 %v4424
        %v4560 = vunpack.c.l.b16 %v4425
        %v4561 = vunpack.c.l.b16 %v4426
        %v4562 = vunpack.c.l.b16 %v4427
        %v4563 = vunpack.c.l.b16 %v4428
        %v4564 = vunpack.c.l.b16 %v4429
        %v4565 = vunpack.c.l.b16 %v4430
        %v4566 = vunpack.c.l.b16 %v4431
        %v4567 = vunpack.c.l.b16 %v4432
        %v4568 = vunpack.c.l.b16 %v4433
        %v4569 = vunpack.c.l.b16 %v4434
        %v4570 = vunpack.c.l.b16 %v4435
        %v4571 = vunpack.c.l.b16 %v4436
        %v4572 = vunpack.c.l.b16 %v4437
        %v4573 = vunpack.c.l.b16 %v4438
        %v4574 = vunpack.c.l.b16 %v4439
        %v4575 = vunpack.c.l.b16 %v4440
        %v4576 = vunpack.c.l.b16 %v4441
        %v4577 = vunpack.c.l.b16 %v4442
        %v4578 = vunpack.c.l.b16 %v4443
        %v4579 = vunpack.c.l.b16 %v4444
        %v4580 = vunpack.c.l.b16 %v4445
        %v4581 = vunpack.c.l.b16 %v4446
        %v4582 = vunpack.c.l.b16 %v4447
        %v4583 = vunpack.c.l.b16 %v4448
        %v4584 = vunpack.c.l.b16 %v4449
        %v4585 = vunpack.c.l.b16 %v4450
        %v4586 = vunpack.c.l.b16 %v4451
        %v4587 = vunpack.c.l.b16 %v4452
        %v4588 = vunpack.c.l.b16 %v4453
        %v4589 = vunpack.c.l.b16 %v4454
        %v4590 = vunpack.c.l.b16 %v4455
        %v4591 = vunpack.c.l.b16 %v4456
        %v4592 = vunpack.c.l.b16 %v4457
        %v4593 = vunpack.c.l.b16 %v4458
        %v4594 = vunpack.c.l.b16 %v4459
        %v4595 = vunpack.c.l.b16 %v4460
        %v4596 = vunpack.c.l.b16 %v4461
        %v4597 = vunpack.c.l.b16 %v4462
        %v4598 = vunpack.c.l.b16 %v4463
        %v4599 = vunpack.c.l.b16 %v4464
        %v4600 = vpack.c.b16 %v4537, %v4536
        %v4601 = vpack.c.b16 %v4539, %v4538
        %v4602 = vpack.c.b16 %v4541, %v4540
        %v4603 = vpack.c.b16 %v4543, %v4542
        %v4604 = vpack.c.b16 %v4545, %v4544
        %v4605 = vpack.c.b16 %v4547, %v4546
        %v4606 = vpack.c.b16 %v4549, %v4548
        %v4607 = vpack.c.b16 %v4551, %v4550
        %v4608 = vpack.c.b16 %v4553, %v4552
        %v4609 = vpack.c.b16 %v4555, %v4554
        %v4610 = vpack.c.b16 %v4557, %v4556
        %v4611 = vpack.c.b16 %v4559, %v4558
        %v4612 = vpack.c.b16 %v4561, %v4560
        %v4613 = vpack.c.b16 %v4563, %v4562
        %v4614 = vpack.c.b16 %v4565, %v4564
        %v4615 = vpack.c.b16 %v4567, %v4566
        %v4616 = vpack.c.b16 %v4569, %v4568
        %v4617 = vpack.c.b16 %v4571, %v4570
        %v4618 = vpack.c.b16 %v4573, %v4572
        %v4619 = vpack.c.b16 %v4575, %v4574
        %v4620 = vpack.c.b16 %v4577, %v4576
        %v4621 = vpack.c.b16 %v4579, %v4578
        %v4622 = vpack.c.b16 %v4581, %v4580
        %v4623 = vpack.c.b16 %v4583, %v4582
        %v4624 = vpack.c.b16 %v4585, %v4584
        %v4625 = vpack.c.b16 %v4587, %v4586
        %v4626 = vpack.c.b16 %v4589, %v4588
        %v4627 = vpack.c.b16 %v4591, %v4590
        %v4628 = vpack.c.b16 %v4593, %v4592
        %v4629 = vpack.c.b16 %v4595, %v4594
        %v4630 = vpack.c.b16 %v4597, %v4596
        %v4631 = vpack.c.b16 %v4599, %v4598
        %4664 = vmatprep.subr.bf16.mxu0 0
        %4665 = vmatpush1.bf16.msra.mxu0 %v4600
        %4666 = vmatprep.subr.bf16.mxu0 0
        %4667 = vmatpush1.bf16.msra.mxu0 %v4601
        %4668 = vmatprep.subr.bf16.mxu0 0
        %4669 = vmatpush1.bf16.msra.mxu0 %v4602
        %4670 = vmatprep.subr.bf16.mxu0 0
        %4671 = vmatpush1.bf16.msra.mxu0 %v4603
        %4672 = vmatprep.subr.bf16.mxu0 0
        %4673 = vmatpush1.bf16.msra.mxu0 %v4604
        %4674 = vmatprep.subr.bf16.mxu0 0
        %4675 = vmatpush1.bf16.msra.mxu0 %v4605
        %4676 = vmatprep.subr.bf16.mxu0 0
        %4677 = vmatpush1.bf16.msra.mxu0 %v4606
        %4678 = vmatprep.subr.bf16.mxu0 0
        %4679 = vmatpush1.bf16.msra.mxu0 %v4607
        %4680 = vmatprep.subr.bf16.mxu0 0
        %4681 = vmatpush1.bf16.msra.mxu0 %v4608
        %4682 = vmatprep.subr.bf16.mxu0 0
        %4683 = vmatpush1.bf16.msra.mxu0 %v4609
        %4684 = vmatprep.subr.bf16.mxu0 0
        %4685 = vmatpush1.bf16.msra.mxu0 %v4610
        %4686 = vmatprep.subr.bf16.mxu0 0
        %4687 = vmatpush1.bf16.msra.mxu0 %v4611
        %4688 = vmatprep.subr.bf16.mxu0 0
        %4689 = vmatpush1.bf16.msra.mxu0 %v4612
        %4690 = vmatprep.subr.bf16.mxu0 0
        %4691 = vmatpush1.bf16.msra.mxu0 %v4613
        %4692 = vmatprep.subr.bf16.mxu0 0
        %4693 = vmatpush1.bf16.msra.mxu0 %v4614
        %4694 = vmatprep.subr.bf16.mxu0 0
        %4695 = vmatpush1.bf16.msra.mxu0 %v4615
        %4696 = vmatprep.mubr.bf16.mxu0 %v4370
        %4697 = vmatmul.mubr.bf16.gmra.mrb[0].mxu0 %v4369
        %v4698 = vpop.f32.mrb[0].mxu0
        %v4699 = vadd.f32 %v4470, %v4698
        %v4700 = vpop.f32.mrb[0].mxu0
        %v4701 = vpop.f32.mrb[0].mxu0
        %v4702 = vadd.f32 %v4470, %v4701
        %v4703 = vpop.f32.mrb[0].mxu0
        %4704 = vmatprep.mubr.bf16.mxu0 %v4374
        %4705 = vmatmul.mubr.bf16.gmra.mrb[0].mxu0 %v4373
        %v4706 = vpop.f32.mrb[0].mxu0
        %v4707 = vadd.f32 %v4470, %v4706
        %v4708 = vpop.f32.mrb[0].mxu0
        %v4709 = vpop.f32.mrb[0].mxu0
        %v4710 = vadd.f32 %v4470, %v4709
        %v4711 = vpop.f32.mrb[0].mxu0
        %4712 = vmatprep.mubr.bf16.mxu0 %v4378
        %4713 = vmatmul.mubr.bf16.gmra.mrb[0].mxu0 %v4377
        %v4714 = vpop.f32.mrb[0].mxu0
        %v4715 = vadd.f32 %v4470, %v4714
        %v4716 = vpop.f32.mrb[0].mxu0
        %v4717 = vpop.f32.mrb[0].mxu0
        %v4718 = vadd.f32 %v4470, %v4717
        %v4719 = vpop.f32.mrb[0].mxu0
        %4720 = vmatprep.mubr.bf16.mxu0 %v4382
        %4721 = vmatmul.mubr.bf16.gmra.mrb[0].mxu0 %v4381
        %v4722 = vpop.f32.mrb[0].mxu0
        %v4723 = vadd.f32 %v4470, %v4722
        %v4724 = vpop.f32.mrb[0].mxu0
        %v4725 = vpop.f32.mrb[0].mxu0
        %v4726 = vadd.f32 %v4470, %v4725
        %v4727 = vpop.f32.mrb[0].mxu0
        %4728 = vmatprep.mubr.bf16.mxu0 %v4386
        %4729 = vmatmul.mubr.bf16.gmra.mrb[0].mxu0 %v4385
        %v4730 = vpop.f32.mrb[0].mxu0
        %v4731 = vadd.f32 %v4470, %v4730
        %v4732 = vpop.f32.mrb[0].mxu0
        %v4733 = vpop.f32.mrb[0].mxu0
        %v4734 = vadd.f32 %v4470, %v4733
        %v4735 = vpop.f32.mrb[0].mxu0
        %4736 = vmatprep.mubr.bf16.mxu0 %v4390
        %4737 = vmatmul.mubr.bf16.gmra.mrb[0].mxu0 %v4389
        %v4738 = vpop.f32.mrb[0].mxu0
        %v4739 = vadd.f32 %v4470, %v4738
        %v4740 = vpop.f32.mrb[0].mxu0
        %v4741 = vpop.f32.mrb[0].mxu0
        %v4742 = vadd.f32 %v4470, %v4741
        %v4743 = vpop.f32.mrb[0].mxu0
        %4744 = vmatprep.mubr.bf16.mxu0 %v4394
        %4745 = vmatmul.mubr.bf16.gmra.mrb[0].mxu0 %v4393
        %v4746 = vpop.f32.mrb[0].mxu0
        %v4747 = vadd.f32 %v4470, %v4746
        %v4748 = vpop.f32.mrb[0].mxu0
        %v4749 = vpop.f32.mrb[0].mxu0
        %v4750 = vadd.f32 %v4470, %v4749
        %v4751 = vpop.f32.mrb[0].mxu0
        %4752 = vmatprep.mubr.bf16.mxu0 %v4398
        %4753 = vmatmul.mubr.bf16.gmra.mrb[0].mxu0 %v4397
        %v4754 = vpop.f32.mrb[0].mxu0
        %v4755 = vadd.f32 %v4470, %v4754
        %v4756 = vpop.f32.mrb[0].mxu0
        %v4757 = vpop.f32.mrb[0].mxu0
        %v4758 = vadd.f32 %v4470, %v4757
        %v4759 = vpop.f32.mrb[0].mxu0
        %4760 = vdwg.mxu0
        %4761 = vmatprep.subr.bf16.mxu0 0
        %4762 = vmatpush1.bf16.msra.mxu0 %v4616
        %4763 = vmatprep.subr.bf16.mxu0 0
        %4764 = vmatpush1.bf16.msra.mxu0 %v4617
        %4765 = vmatprep.subr.bf16.mxu0 0
        %4766 = vmatpush1.bf16.msra.mxu0 %v4618
        %4767 = vmatprep.subr.bf16.mxu0 0
        %4768 = vmatpush1.bf16.msra.mxu0 %v4619
        %4769 = vmatprep.subr.bf16.mxu0 0
        %4770 = vmatpush1.bf16.msra.mxu0 %v4620
        %4771 = vmatprep.subr.bf16.mxu0 0
        %4772 = vmatpush1.bf16.msra.mxu0 %v4621
        %4773 = vmatprep.subr.bf16.mxu0 0
        %4774 = vmatpush1.bf16.msra.mxu0 %v4622
        %4775 = vmatprep.subr.bf16.mxu0 0
        %4776 = vmatpush1.bf16.msra.mxu0 %v4623
        %4777 = vmatprep.subr.bf16.mxu0 0
        %4778 = vmatpush1.bf16.msra.mxu0 %v4624
        %4779 = vmatprep.subr.bf16.mxu0 0
        %4780 = vmatpush1.bf16.msra.mxu0 %v4625
        %4781 = vmatprep.subr.bf16.mxu0 0
        %4782 = vmatpush1.bf16.msra.mxu0 %v4626
        %4783 = vmatprep.subr.bf16.mxu0 0
        %4784 = vmatpush1.bf16.msra.mxu0 %v4627
        %4785 = vmatprep.subr.bf16.mxu0 0
        %4786 = vmatpush1.bf16.msra.mxu0 %v4628
        %4787 = vmatprep.subr.bf16.mxu0 0
        %4788 = vmatpush1.bf16.msra.mxu0 %v4629
        %4789 = vmatprep.subr.bf16.mxu0 0
        %4790 = vmatpush1.bf16.msra.mxu0 %v4630
        %4791 = vmatprep.subr.bf16.mxu0 0
        %4792 = vmatpush1.bf16.msra.mxu0 %v4631
        %4793 = vmatprep.mubr.bf16.mxu0 %v4372
        %4794 = vmatmul.mubr.bf16.gmra.mrb[0].mxu0 %v4371
        %v4795 = vpop.f32.mrb[0].mxu0
        %v4796 = vadd.f32 %v4699, %v4795
        %v4797 = vpop.f32.mrb[0].mxu0
        %v4798 = vpop.f32.mrb[0].mxu0
        %v4799 = vadd.f32 %v4702, %v4798
        %v4800 = vpop.f32.mrb[0].mxu0
        %4801 = vmatprep.mubr.bf16.mxu0 %v4376
        %4802 = vmatmul.mubr.bf16.gmra.mrb[0].mxu0 %v4375
        %v4803 = vpop.f32.mrb[0].mxu0
        %v4804 = vadd.f32 %v4707, %v4803
        %v4805 = vpop.f32.mrb[0].mxu0
        %v4806 = vpop.f32.mrb[0].mxu0
        %v4807 = vadd.f32 %v4710, %v4806
        %v4808 = vpop.f32.mrb[0].mxu0
        %4809 = vmatprep.mubr.bf16.mxu0 %v4380
        %4810 = vmatmul.mubr.bf16.gmra.mrb[0].mxu0 %v4379
        %v4811 = vpop.f32.mrb[0].mxu0
        %v4812 = vadd.f32 %v4715, %v4811
        %v4813 = vpop.f32.mrb[0].mxu0
        %v4814 = vpop.f32.mrb[0].mxu0
        %v4815 = vadd.f32 %v4718, %v4814
        %v4816 = vpop.f32.mrb[0].mxu0
        %4817 = vmatprep.mubr.bf16.mxu0 %v4384
        %4818 = vmatmul.mubr.bf16.gmra.mrb[0].mxu0 %v4383
        %v4819 = vpop.f32.mrb[0].mxu0
        %v4820 = vadd.f32 %v4723, %v4819
        %v4821 = vpop.f32.mrb[0].mxu0
        %v4822 = vpop.f32.mrb[0].mxu0
        %v4823 = vadd.f32 %v4726, %v4822
        %v4824 = vpop.f32.mrb[0].mxu0
        %4825 = vmatprep.mubr.bf16.mxu0 %v4388
        %4826 = vmatmul.mubr.bf16.gmra.mrb[0].mxu0 %v4387
        %v4827 = vpop.f32.mrb[0].mxu0
        %v4828 = vadd.f32 %v4731, %v4827
        %v4829 = vpop.f32.mrb[0].mxu0
        %v4830 = vpop.f32.mrb[0].mxu0
        %v4831 = vadd.f32 %v4734, %v4830
        %v4832 = vpop.f32.mrb[0].mxu0
        %4833 = vmatprep.mubr.bf16.mxu0 %v4392
        %4834 = vmatmul.mubr.bf16.gmra.mrb[0].mxu0 %v4391
        %v4835 = vpop.f32.mrb[0].mxu0
        %v4836 = vadd.f32 %v4739, %v4835
        %v4837 = vpop.f32.mrb[0].mxu0
        %v4838 = vpop.f32.mrb[0].mxu0
        %v4839 = vadd.f32 %v4742, %v4838
        %v4840 = vpop.f32.mrb[0].mxu0
        %4841 = vmatprep.mubr.bf16.mxu0 %v4396
        %4842 = vmatmul.mubr.bf16.gmra.mrb[0].mxu0 %v4395
        %v4843 = vpop.f32.mrb[0].mxu0
        %v4844 = vadd.f32 %v4747, %v4843
        %v4845 = vpop.f32.mrb[0].mxu0
        %v4846 = vpop.f32.mrb[0].mxu0
        %v4847 = vadd.f32 %v4750, %v4846
        %v4848 = vpop.f32.mrb[0].mxu0
        %4849 = vmatprep.mubr.bf16.mxu0 %v4400
        %4850 = vmatmul.mubr.bf16.gmra.mrb[0].mxu0 %v4399
        %v4851 = vpop.f32.mrb[0].mxu0
        %v4852 = vadd.f32 %v4755, %v4851
        %v4853 = vpop.f32.mrb[0].mxu0
        %v4854 = vpop.f32.mrb[0].mxu0
        %v4855 = vadd.f32 %v4758, %v4854
        %v4856 = vpop.f32.mrb[0].mxu0
        %4857 = vdwg.mxu0
        %4858 = vst [vmem:[%s341] sm:$0xff] %v4796
        %4859 = vst [vmem:[%s341 + $0x8] sm:$0xff] %v4799
        %4860 = vst [vmem:[%s341 + $0x10] sm:$0xff] %v4804
        %4861 = vst [vmem:[%s341 + $0x18] sm:$0xff] %v4807
        %4862 = vst [vmem:[%s341 + $0x20] sm:$0xff] %v4812
        %4863 = vst [vmem:[%s341 + $0x28] sm:$0xff] %v4815
        %4864 = vst [vmem:[%s341 + $0x30] sm:$0xff] %v4820
        %4865 = vst [vmem:[%s341 + $0x38] sm:$0xff] %v4823
        %4866 = vst [vmem:[%s341 + $0x40] sm:$0xff] %v4828
        %4867 = vst [vmem:[%s341 + $0x48] sm:$0xff] %v4831
        %4868 = vst [vmem:[%s341 + $0x50] sm:$0xff] %v4836
        %4869 = vst [vmem:[%s341 + $0x58] sm:$0xff] %v4839
        %4870 = vst [vmem:[%s341 + $0x60] sm:$0xff] %v4844
        %4871 = vst [vmem:[%s341 + $0x68] sm:$0xff] %v4847
        %4872 = vst [vmem:[%s341 + $0x70] sm:$0xff] %v4852
        %4873 = vst [vmem:[%s341 + $0x78] sm:$0xff] %v4855
        %s4874 = sand.u32 %s186, 1
        %s4875 = scalar_lea.sflag [#allocation4], %s4874
        %s4876 = sand.u32 %s186, 1
        %s4877 = smul.addr %s4876, 128
        %s4878 = scalar_lea.vmem [#allocation10], %s4877
        // Predicated region
        $region65: #{tpu_custom_call.1} parent=47 // pred_check
          %p4879 = pneg %p196
        $region66: #{tpu_custom_call.1} parent=47 // pred_check_branch
          %4881 = sbr.rel (%p4879) target = $region68
        $region67: #{tpu_custom_call.1} parent=47 // pred_region
          %s4882 = smul.u32 16, %s26
          %s4884 = ssub.s32 2048, 2048
          %4885 = vsyncadd %s4875, %s4884
          %s4886 = smul.addr %s4882, 128
          %s4887 = scalar_lea.hbm %s7, %s4886
          %s4888 = sshll.u32 %s4878, 4
          %s4889 = int_to_ptr.vmem [resolvable:$true] %s4888
          %4894 = dma.vmem_to_hbm [thread:$0]  %s4889, 2048, %s4887, %s4875, 128, 128, 8
        $region68: #{tpu_custom_call.1} parent=47 // pred_fallthru
          _
      $region48: #{tpu_custom_call.1} parent=5 // pred_fallthru
        _
      %p4895 = scmp.le.s32.totalorder 2, %s21
      // Predicated region
      $region69: #{tpu_custom_call.1} parent=5 // pred_check
        %p4896 = pneg %p4895
      $region70: #{tpu_custom_call.1} parent=5 // pred_check_branch
        %4898 = sbr.rel (%p4896) target = $region72
      $region71: #{tpu_custom_call.1} parent=5 // pred_region
        %s4899 = ssub.s32 %s21, 2
        // Predicated region
        $region73: #{tpu_custom_call.1} parent=71 // pred_check
          %p4900 = pneg %p202
        $region74: #{tpu_custom_call.1} parent=71 // pred_check_branch
          %4902 = sbr.rel (%p4900) target = $region76
        $region75: #{tpu_custom_call.1} parent=71 // pred_region
          %s4903 = sand.u32 %s187, 1
          %s4904 = scalar_lea.sflag [#allocation4], %s4903
          %s4905 = sand.u32 %s187, 1
          %s4906 = smul.addr %s4905, 128
          %s4907 = scalar_lea.vmem [#allocation10], %s4906
          %4908 = dma.done %s4904, 2048
        $region76: #{tpu_custom_call.1} parent=71 // pred_fallthru
          _
      $region72: #{tpu_custom_call.1} parent=5 // pred_fallthru
        _
    $region6: #{tpu_custom_call.1} parent=1 // loop_footer
      %s25 = sadd.s32 1, %s21
    $region7: #{tpu_custom_call.1} parent=1 // loop_footer_branch
      %20 = sbr.rel target = $region3
    $region8: #{tpu_custom_call.1} parent=1 // loop_exit
      _
    %4909 = vsyncpa [#allocation3], 1
    %s4910 = scalar_lea.sflag [#allocation3], 1
    %4911 = vsyncpa %s4910, 1
    %4912 = vsyncpa [#allocation6], 1
    %4913 = vsyncpa [#allocation9], 1
    %4914 = vsyncpa [#allocation4], 1
    %s4915 = scalar_lea.sflag [#allocation4], 1
    %4916 = vsyncpa %s4915, 1

</llo_original>
